<compile_context>
chip_gen: v7x
topology: tpu7x:2x2x1
jax: 0.10.0
libtpu: 0.0.40
codegen_flags: <defaults>
</compile_context>

<pallas_src>
import functools

import jax
import jax.numpy as jnp
from jax.experimental import pallas as pl
from jax.experimental.pallas import tpu as pltpu


_TAPS = tuple((dy, dx) for dy in (-1, 0, 1) for dx in (-1, 0, 1))


# ----------------------------------------------------------------------------
# Fused MsrNet kernel: 6 MXU matmuls (3x3 convs, pad=1, stride=1) on one
# lane-block of images.  Activations are (C, L) with L = images_per_block*H*W
# on the lane axis; intermediate features never leave VMEM.
# ----------------------------------------------------------------------------
def _msrnet_kernel(x_ref, mask_ref,
                   we0, be0, w10, b10, w21, b21,
                   wr1p, wr2f, wr2p, br2,
                   r1_ref, r2_ref, r3_ref,
                   px_sc, pf_sc, pp_sc,
                   *, H, W, F, NC):
    L = x_ref.shape[1]          # lanes in this block

    def patches(a, sc):
        """im2col: a (C, L) f32 -> sc (9*C, L) bf16 scratch, taps (ky,kx)-major.

        Tap (dy, dx): t[p] = a[p + dy*W + dx], realized as a static lane roll
        plus a per-tap validity mask (image top/bottom/left/right edges), so
        rows never wrap across images in the lane-folded batch.  Taps are
        masked in f32 (v5e-safe) and stored bf16 directly into the scratch:
        no pad-concat, no misaligned slices, no extra full-tensor copy.
        """
        c = a.shape[0]
        for k, (dy, dx) in enumerate(_TAPS):
            if dy == 0 and dx == 0:
                t = a
            else:
                s = dy * W + dx
                t = pltpu.roll(a, shift=(-s) % L, axis=1)
                t = t * mask_ref[k:k + 1, :]
            sc[k * c:(k + 1) * c, :] = t.astype(jnp.bfloat16)

    def conv(w_ref, sc):
        # One packed-K MXU matmul: (Cout, 9*Cin) x (9*Cin, L) -> (Cout, L) f32.
        return jnp.dot(w_ref[...], sc[...], preferred_element_type=jnp.float32)

    # Encoder stage 0.
    patches(x_ref[...], px_sc)
    f0 = jnp.maximum(conv(we0, px_sc) + be0[...], 0.0)

    # Stacked matmul on pf0: rows [0:F] -> enc1 (f1), rows [F:] -> ssdecoder (res1).
    patches(f0, pf_sc)
    y = conv(w10, pf_sc) + b10[...]
    f1 = jnp.maximum(y[:F], 0.0)
    res1 = y[F:]

    # repair1 "prev" branch on res1 patches.
    patches(res1, pp_sc)
    r2_prev = conv(wr1p, pp_sc)

    # Stacked matmul on pf1: rows [0:F] -> enc2 (f2), rows [F:] -> repair1 feat branch.
    patches(f1, pf_sc)
    y = conv(w21, pf_sc) + b21[...]
    f2 = jnp.maximum(y[:F], 0.0)
    res2 = y[F:] + r2_prev

    # repair2: prev branch on pr2 + feat branch on pf2.
    patches(res2, pp_sc)
    r3_prev = conv(wr2p, pp_sc)
    patches(f2, pf_sc)
    res3 = conv(wr2f, pf_sc) + r3_prev + br2[...]

    r1_ref[...] = res1.astype(r1_ref.dtype)
    r2_ref[...] = res2.astype(r2_ref.dtype)
    r3_ref[...] = res3.astype(r3_ref.dtype)


# ----------------------------------------------------------------------------
# Wrapper: NCHW public API, (C, N*HW) lane-dense layout inside the kernel.
# ----------------------------------------------------------------------------
def _flatten_w(w):
    """(3, 3, Cin, Cout) HWIO -> (Cout, 9*Cin) bf16; taps (ky,kx) major, cin minor."""
    cout = w.shape[-1]
    return jnp.transpose(w, (3, 0, 1, 2)).reshape(cout, -1).astype(jnp.bfloat16)


def _full_spec(shape):
    nd = len(shape)
    return pl.BlockSpec(tuple(shape), lambda *_: (0,) * nd)


def _tap_masks(n_img, H, W):
    """(9, n_img*H*W) f32 validity mask per tap (1 = in-image neighbour)."""
    L = n_img * H * W
    idx = jnp.arange(L, dtype=jnp.int32) % (H * W)
    yy = idx // W
    xx = idx % W
    rows = []
    for dy, dx in _TAPS:
        m = jnp.ones((L,), jnp.float32)
        if dy == -1:
            m = m * (yy > 0)
        elif dy == 1:
            m = m * (yy < H - 1)
        if dx == -1:
            m = m * (xx > 0)
        elif dx == 1:
            m = m * (xx < W - 1)
        rows.append(m)
    return jnp.stack(rows, axis=0)


def _num_core_blocks(n_batch, hw):
    """v7x has 2 TensorCores/chip: keep a 2-wide parallel grid there; on
    single-TC chips fold the whole batch into one lane block."""
    try:
        kind = jax.devices()[0].device_kind.lower()
    except Exception:
        kind = ""
    cores = 2 if ("v7" in kind or "tpu7" in kind) else 1
    g = cores if (n_batch % cores == 0) else 1
    if g != 1 and ((n_batch // g) * hw) % 128 != 0:
        g = 1
    return g


def msrnet_forward(params, img):
    """img: (N, C, H, W) f32 -> [res1, res2, res3], each (N, num_classes, H, W)."""
    N, C, H, W = img.shape
    HW = H * W
    L = N * HW
    F = params["enc1"]["w"].shape[2]            # encoder feature channels
    NC = params["ssdec"]["w"].shape[3]          # num classes

    # Batch-in-lanes layout: (C, N*HW).  The NCHW <-> (C, N*HW) transpose is a
    # tiny XLA op on a few KB; everything inside the kernel is lane-dense.
    x2 = jnp.transpose(img, (1, 0, 2, 3)).reshape(C, L)

    G = _num_core_blocks(N, HW)
    Lb = L // G
    masks = _tap_masks(N // G, H, W)            # (9, Lb) f32

    def bias(name):
        return params[name]["b"].reshape(-1, 1)

    we0 = _flatten_w(params["enc0"]["w"])
    we1 = _flatten_w(params["enc1"]["w"])
    we2 = _flatten_w(params["enc2"]["w"])
    wsd = _flatten_w(params["ssdec"]["w"])
    # Repair nets: conv(concat(feat, prev), W) == conv(feat, W_f) + conv(prev, W_p).
    wr1f = _flatten_w(params["repair1"]["w"][:, :, :F, :])
    wr1p = _flatten_w(params["repair1"]["w"][:, :, F:, :])
    wr2f = _flatten_w(params["repair2"]["w"][:, :, :F, :])
    wr2p = _flatten_w(params["repair2"]["w"][:, :, F:, :])

    # Stack output channels of convs that share an im2col tensor (pf0, pf1):
    # one fatter MXU issue instead of two skinny ones; rows split in-kernel.
    w10 = jnp.concatenate([we1, wsd], axis=0)                    # (F+NC, 9F)
    w21 = jnp.concatenate([we2, wr1f], axis=0)                   # (F+NC, 9F)
    b10 = jnp.concatenate([bias("enc1"), bias("ssdec")], axis=0)
    b21 = jnp.concatenate([bias("enc2"), bias("repair1")], axis=0)
    be0, br2 = bias("enc0"), bias("repair2")

    weight_ops = (we0, be0, w10, b10, w21, b21, wr1p, wr2f, wr2p, br2)
    operands = (x2, masks) + weight_ops

    in_specs = [pl.BlockSpec((C, Lb), lambda g: (0, g)),
                _full_spec(masks.shape)]
    in_specs += [_full_spec(op.shape) for op in weight_ops]

    out_sds = jax.ShapeDtypeStruct((NC, L), jnp.float32)
    out_spec = pl.BlockSpec((NC, Lb), lambda g: (0, g))

    # Advisory cost hint for XLA's scheduler.
    conv_dims = [(F, C), (F, F), (F, F), (NC, F), (NC, F + NC), (NC, F + NC)]
    flops = 2 * 9 * L * sum(co * ci for co, ci in conv_dims)
    bytes_acc = sum(int(op.size) * op.dtype.itemsize for op in operands)
    bytes_acc += 3 * NC * L * 4

    kernel = functools.partial(_msrnet_kernel, H=H, W=W, F=F, NC=NC)
    r1, r2, r3 = pl.pallas_call(
        kernel,
        out_shape=(out_sds, out_sds, out_sds),
        grid=(G,),
        in_specs=in_specs,
        out_specs=(out_spec, out_spec, out_spec),
        scratch_shapes=[pltpu.VMEM((9 * C, Lb), jnp.bfloat16),   # px
                        pltpu.VMEM((9 * F, Lb), jnp.bfloat16),   # pf0/pf1/pf2
                        pltpu.VMEM((9 * NC, Lb), jnp.bfloat16)], # pr1/pr2
        compiler_params=pltpu.CompilerParams(
            dimension_semantics=("parallel",)),
        cost_estimate=pl.CostEstimate(
            flops=flops, transcendentals=0, bytes_accessed=bytes_acc),
    )(*operands)

    def unfold(r):
        return jnp.transpose(r.reshape(NC, N, H, W), (1, 0, 2, 3))

    return [unfold(r) for r in (r1, r2, r3)]


# ----------------------------------------------------------------------------
# Parameter construction (deterministic, synthetic)
# ----------------------------------------------------------------------------
def _conv_params(key, cin, cout):
    kw, kb = jax.random.split(key)
    scale = 1.0 / jnp.sqrt(jnp.float32(cin * 9))
    w = jax.random.normal(kw, (3, 3, cin, cout), jnp.float32) * scale
    b = jax.random.normal(kb, (cout,), jnp.float32) * 0.01
    return {"w": w, "b": b}


def build_msrnet_params(key, config):
    enc_cfg = config["encoder"]
    dec_cfg = config["ssdecoder"]
    in_ch, feat_ch = enc_cfg["in_ch"], enc_cfg["feat_ch"]
    num_classes = dec_cfg["num_classes"]
    keys = jax.random.split(key, 6)
    return {
        "enc0": _conv_params(keys[0], in_ch, feat_ch),
        "enc1": _conv_params(keys[1], feat_ch, feat_ch),
        "enc2": _conv_params(keys[2], feat_ch, feat_ch),
        "ssdec": _conv_params(keys[3], feat_ch, num_classes),
        "repair1": _conv_params(keys[4], feat_ch + num_classes, num_classes),
        "repair2": _conv_params(keys[5], feat_ch + num_classes, num_classes),
    }


# ----------------------------------------------------------------------------
# Pure-JAX reference (f32) for correctness checking
# ----------------------------------------------------------------------------
def _conv3x3_ref(x, w, b, relu):
    y = jax.lax.conv_general_dilated(
        x, w, window_strides=(1, 1), padding="SAME",
        dimension_numbers=("NCHW", "HWIO", "NCHW"),
        precision=jax.lax.Precision.HIGHEST)
    y = y + b.reshape(1, -1, 1, 1)
    return jnp.maximum(y, 0.0) if relu else y


def msrnet_forward_ref(params, img):
    f0 = _conv3x3_ref(img, params["enc0"]["w"], params["enc0"]["b"], True)
    f1 = _conv3x3_ref(f0, params["enc1"]["w"], params["enc1"]["b"], True)
    f2 = _conv3x3_ref(f1, params["enc2"]["w"], params["enc2"]["b"], True)
    res1 = _conv3x3_ref(f0, params["ssdec"]["w"], params["ssdec"]["b"], False)
    res2 = _conv3x3_ref(jnp.concatenate([f1, res1], axis=1),
                        params["repair1"]["w"], params["repair1"]["b"], False)
    res3 = _conv3x3_ref(jnp.concatenate([f2, res2], axis=1),
                        params["repair2"]["w"], params["repair2"]["b"], False)
    return [res1, res2, res3]


# ----------------------------------------------------------------------------
# Main
# ----------------------------------------------------------------------------
if __name__ == "__main__":
    config = {
        "encoder": {"in_ch": 4, "feat_ch": 16},
        "ssdecoder": {"num_classes": 8},
        "repairnet": {"num_nets": 2},
    }

    key = jax.random.PRNGKey(0)
    k_param, k_input = jax.random.split(key)
    params = build_msrnet_params(k_param, config)

    N, C, H, W = 2, 4, 16, 16
    img = jax.random.normal(k_input, (N, C, H, W), jnp.float32)

    outputs = jax.jit(msrnet_forward)(params, img)
    outputs = jax.block_until_ready(outputs)

    refs = msrnet_forward_ref(params, img)
    for o, r in zip(outputs, refs):
        assert o.shape == r.shape == (N, 8, H, W)
        err = float(jnp.max(jnp.abs(o - r)))
        # bf16 MXU operands vs. f32 reference: values are O(1), so a 0.1 abs
        # tolerance catches structural errors while allowing bf16 rounding
        # compounded over the 6-conv chain.
        assert err < 0.1, f"max |kernel - ref| = {err}"
    print("KERNEL_OK")
</pallas_src>

<mosaic_0001>
module attributes {stable_mosaic.version = 11 : i64} {
  func.func @_msrnet_kernel(%arg0: i32, %arg1: memref<4x512xf32, #tpu.memory_space<vmem>>, %arg2: memref<9x512xf32, #tpu.memory_space<vmem>>, %arg3: memref<16x36xbf16, #tpu.memory_space<vmem>>, %arg4: memref<16x1xf32, #tpu.memory_space<vmem>>, %arg5: memref<24x144xbf16, #tpu.memory_space<vmem>>, %arg6: memref<24x1xf32, #tpu.memory_space<vmem>>, %arg7: memref<24x144xbf16, #tpu.memory_space<vmem>>, %arg8: memref<24x1xf32, #tpu.memory_space<vmem>>, %arg9: memref<8x72xbf16, #tpu.memory_space<vmem>>, %arg10: memref<8x144xbf16, #tpu.memory_space<vmem>>, %arg11: memref<8x72xbf16, #tpu.memory_space<vmem>>, %arg12: memref<8x1xf32, #tpu.memory_space<vmem>>, %arg13: memref<8x512xf32, #tpu.memory_space<vmem>>, %arg14: memref<8x512xf32, #tpu.memory_space<vmem>>, %arg15: memref<8x512xf32, #tpu.memory_space<vmem>>, %arg16: memref<36x512xbf16, #tpu.memory_space<vmem>>, %arg17: memref<144x512xbf16, #tpu.memory_space<vmem>>, %arg18: memref<72x512xbf16, #tpu.memory_space<vmem>>) attributes {dimension_semantics = [#tpu.dimension_semantics<parallel>], iteration_bounds = array<i64: 1>, scalar_prefetch = 0 : i64, scratch_operands = 3 : i64, tpu.core_type = #tpu.core_type<tc>, window_params = [{transform_indices = @transform_0, window_bounds = array<i64: 4, 512>}, {pipeline_mode = #tpu.pipeline_mode<synchronous>, transform_indices = @transform_1, window_bounds = array<i64: 9, 512>}, {pipeline_mode = #tpu.pipeline_mode<synchronous>, transform_indices = @transform_2, window_bounds = array<i64: 16, 36>}, {pipeline_mode = #tpu.pipeline_mode<synchronous>, transform_indices = @transform_3, window_bounds = array<i64: 16, 1>}, {pipeline_mode = #tpu.pipeline_mode<synchronous>, transform_indices = @transform_4, window_bounds = array<i64: 24, 144>}, {pipeline_mode = #tpu.pipeline_mode<synchronous>, transform_indices = @transform_5, window_bounds = array<i64: 24, 1>}, {pipeline_mode = #tpu.pipeline_mode<synchronous>, transform_indices = @transform_6, window_bounds = array<i64: 24, 144>}, {pipeline_mode = #tpu.pipeline_mode<synchronous>, transform_indices = @transform_7, window_bounds = array<i64: 24, 1>}, {pipeline_mode = #tpu.pipeline_mode<synchronous>, transform_indices = @transform_8, window_bounds = array<i64: 8, 72>}, {pipeline_mode = #tpu.pipeline_mode<synchronous>, transform_indices = @transform_9, window_bounds = array<i64: 8, 144>}, {pipeline_mode = #tpu.pipeline_mode<synchronous>, transform_indices = @transform_10, window_bounds = array<i64: 8, 72>}, {pipeline_mode = #tpu.pipeline_mode<synchronous>, transform_indices = @transform_11, window_bounds = array<i64: 8, 1>}, {transform_indices = @transform_12, window_bounds = array<i64: 8, 512>}, {transform_indices = @transform_13, window_bounds = array<i64: 8, 512>}, {transform_indices = @transform_14, window_bounds = array<i64: 8, 512>}]} {
    %c0 = arith.constant 0 : index
    %c0_0 = arith.constant 0 : index
    %0 = vector.load %arg1[%c0, %c0_0] : memref<4x512xf32, #tpu.memory_space<vmem>>, vector<4x512xf32>
    %c17_i32 = arith.constant 17 : i32
    %1 = tpu.dynamic_rotate %0 by %c17_i32 dim 1 : vector<4x512xf32>, i32 -> vector<4x512xf32>
    %c0_1 = arith.constant 0 : index
    %c0_2 = arith.constant 0 : index
    %2 = vector.load %arg2[%c0_1, %c0_2] : memref<9x512xf32, #tpu.memory_space<vmem>>, vector<1x512xf32>
    %3 = vector.broadcast %2 : vector<1x512xf32> to vector<4x512xf32>
    %4 = arith.mulf %1, %3 : vector<4x512xf32>
    %5 = arith.truncf %4 : vector<4x512xf32> to vector<4x512xbf16>
    %c0_3 = arith.constant 0 : index
    %c0_4 = arith.constant 0 : index
    %6 = vector.load %arg16[%c0_3, %c0_4] : memref<36x512xbf16, #tpu.memory_space<vmem>>, vector<4x512xbf16>
    tpu.vector_store %arg16[%c0_3, %c0_4], %5 {strides = array<i32>} : memref<36x512xbf16, #tpu.memory_space<vmem>>, vector<4x512xbf16>,
    %c16_i32 = arith.constant 16 : i32
    %7 = tpu.dynamic_rotate %0 by %c16_i32 dim 1 : vector<4x512xf32>, i32 -> vector<4x512xf32>
    %c1 = arith.constant 1 : index
    %c0_5 = arith.constant 0 : index
    %8 = vector.load %arg2[%c1, %c0_5] : memref<9x512xf32, #tpu.memory_space<vmem>>, vector<1x512xf32>
    %9 = vector.broadcast %8 : vector<1x512xf32> to vector<4x512xf32>
    %10 = arith.mulf %7, %9 : vector<4x512xf32>
    %11 = arith.truncf %10 : vector<4x512xf32> to vector<4x512xbf16>
    %c4 = arith.constant 4 : index
    %c0_6 = arith.constant 0 : index
    %12 = vector.load %arg16[%c4, %c0_6] : memref<36x512xbf16, #tpu.memory_space<vmem>>, vector<4x512xbf16>
    tpu.vector_store %arg16[%c4, %c0_6], %11 {strides = array<i32>} : memref<36x512xbf16, #tpu.memory_space<vmem>>, vector<4x512xbf16>,
    %c15_i32 = arith.constant 15 : i32
    %13 = tpu.dynamic_rotate %0 by %c15_i32 dim 1 : vector<4x512xf32>, i32 -> vector<4x512xf32>
    %c2 = arith.constant 2 : index
    %c0_7 = arith.constant 0 : index
    %14 = vector.load %arg2[%c2, %c0_7] : memref<9x512xf32, #tpu.memory_space<vmem>>, vector<1x512xf32>
    %15 = vector.broadcast %14 : vector<1x512xf32> to vector<4x512xf32>
    %16 = arith.mulf %13, %15 : vector<4x512xf32>
    %17 = arith.truncf %16 : vector<4x512xf32> to vector<4x512xbf16>
    %c8 = arith.constant 8 : index
    %c0_8 = arith.constant 0 : index
    %18 = vector.load %arg16[%c8, %c0_8] : memref<36x512xbf16, #tpu.memory_space<vmem>>, vector<4x512xbf16>
    tpu.vector_store %arg16[%c8, %c0_8], %17 {strides = array<i32>} : memref<36x512xbf16, #tpu.memory_space<vmem>>, vector<4x512xbf16>,
    %c1_i32 = arith.constant 1 : i32
    %19 = tpu.dynamic_rotate %0 by %c1_i32 dim 1 : vector<4x512xf32>, i32 -> vector<4x512xf32>
    %c3 = arith.constant 3 : index
    %c0_9 = arith.constant 0 : index
    %20 = vector.load %arg2[%c3, %c0_9] : memref<9x512xf32, #tpu.memory_space<vmem>>, vector<1x512xf32>
    %21 = vector.broadcast %20 : vector<1x512xf32> to vector<4x512xf32>
    %22 = arith.mulf %19, %21 : vector<4x512xf32>
    %23 = arith.truncf %22 : vector<4x512xf32> to vector<4x512xbf16>
    %c12 = arith.constant 12 : index
    %c0_10 = arith.constant 0 : index
    %24 = vector.load %arg16[%c12, %c0_10] : memref<36x512xbf16, #tpu.memory_space<vmem>>, vector<4x512xbf16>
    tpu.vector_store %arg16[%c12, %c0_10], %23 {strides = array<i32>} : memref<36x512xbf16, #tpu.memory_space<vmem>>, vector<4x512xbf16>,
    %25 = arith.truncf %0 : vector<4x512xf32> to vector<4x512xbf16>
    %c16 = arith.constant 16 : index
    %c0_11 = arith.constant 0 : index
    %26 = vector.load %arg16[%c16, %c0_11] : memref<36x512xbf16, #tpu.memory_space<vmem>>, vector<4x512xbf16>
    tpu.vector_store %arg16[%c16, %c0_11], %25 {strides = array<i32>} : memref<36x512xbf16, #tpu.memory_space<vmem>>, vector<4x512xbf16>,
    %c511_i32 = arith.constant 511 : i32
    %27 = tpu.dynamic_rotate %0 by %c511_i32 dim 1 : vector<4x512xf32>, i32 -> vector<4x512xf32>
    %c5 = arith.constant 5 : index
    %c0_12 = arith.constant 0 : index
    %28 = vector.load %arg2[%c5, %c0_12] : memref<9x512xf32, #tpu.memory_space<vmem>>, vector<1x512xf32>
    %29 = vector.broadcast %28 : vector<1x512xf32> to vector<4x512xf32>
    %30 = arith.mulf %27, %29 : vector<4x512xf32>
    %31 = arith.truncf %30 : vector<4x512xf32> to vector<4x512xbf16>
    %c20 = arith.constant 20 : index
    %c0_13 = arith.constant 0 : index
    %32 = vector.load %arg16[%c20, %c0_13] : memref<36x512xbf16, #tpu.memory_space<vmem>>, vector<4x512xbf16>
    tpu.vector_store %arg16[%c20, %c0_13], %31 {strides = array<i32>} : memref<36x512xbf16, #tpu.memory_space<vmem>>, vector<4x512xbf16>,
    %c497_i32 = arith.constant 497 : i32
    %33 = tpu.dynamic_rotate %0 by %c497_i32 dim 1 : vector<4x512xf32>, i32 -> vector<4x512xf32>
    %c6 = arith.constant 6 : index
    %c0_14 = arith.constant 0 : index
    %34 = vector.load %arg2[%c6, %c0_14] : memref<9x512xf32, #tpu.memory_space<vmem>>, vector<1x512xf32>
    %35 = vector.broadcast %34 : vector<1x512xf32> to vector<4x512xf32>
    %36 = arith.mulf %33, %35 : vector<4x512xf32>
    %37 = arith.truncf %36 : vector<4x512xf32> to vector<4x512xbf16>
    %c24 = arith.constant 24 : index
    %c0_15 = arith.constant 0 : index
    %38 = vector.load %arg16[%c24, %c0_15] : memref<36x512xbf16, #tpu.memory_space<vmem>>, vector<4x512xbf16>
    tpu.vector_store %arg16[%c24, %c0_15], %37 {strides = array<i32>} : memref<36x512xbf16, #tpu.memory_space<vmem>>, vector<4x512xbf16>,
    %c496_i32 = arith.constant 496 : i32
    %39 = tpu.dynamic_rotate %0 by %c496_i32 dim 1 : vector<4x512xf32>, i32 -> vector<4x512xf32>
    %c7 = arith.constant 7 : index
    %c0_16 = arith.constant 0 : index
    %40 = vector.load %arg2[%c7, %c0_16] : memref<9x512xf32, #tpu.memory_space<vmem>>, vector<1x512xf32>
    %41 = vector.broadcast %40 : vector<1x512xf32> to vector<4x512xf32>
    %42 = arith.mulf %39, %41 : vector<4x512xf32>
    %43 = arith.truncf %42 : vector<4x512xf32> to vector<4x512xbf16>
    %c28 = arith.constant 28 : index
    %c0_17 = arith.constant 0 : index
    %44 = vector.load %arg16[%c28, %c0_17] : memref<36x512xbf16, #tpu.memory_space<vmem>>, vector<4x512xbf16>
    tpu.vector_store %arg16[%c28, %c0_17], %43 {strides = array<i32>} : memref<36x512xbf16, #tpu.memory_space<vmem>>, vector<4x512xbf16>,
    %c495_i32 = arith.constant 495 : i32
    %45 = tpu.dynamic_rotate %0 by %c495_i32 dim 1 : vector<4x512xf32>, i32 -> vector<4x512xf32>
    %c8_18 = arith.constant 8 : index
    %c0_19 = arith.constant 0 : index
    %46 = vector.load %arg2[%c8_18, %c0_19] : memref<9x512xf32, #tpu.memory_space<vmem>>, vector<1x512xf32>
    %47 = vector.broadcast %46 : vector<1x512xf32> to vector<4x512xf32>
    %48 = arith.mulf %45, %47 : vector<4x512xf32>
    %49 = arith.truncf %48 : vector<4x512xf32> to vector<4x512xbf16>
    %c32 = arith.constant 32 : index
    %c0_20 = arith.constant 0 : index
    %50 = vector.load %arg16[%c32, %c0_20] : memref<36x512xbf16, #tpu.memory_space<vmem>>, vector<4x512xbf16>
    tpu.vector_store %arg16[%c32, %c0_20], %49 {strides = array<i32>} : memref<36x512xbf16, #tpu.memory_space<vmem>>, vector<4x512xbf16>,
    %c0_21 = arith.constant 0 : index
    %c0_22 = arith.constant 0 : index
    %51 = vector.load %arg3[%c0_21, %c0_22] : memref<16x36xbf16, #tpu.memory_space<vmem>>, vector<16x36xbf16>
    %c0_23 = arith.constant 0 : index
    %c0_24 = arith.constant 0 : index
    %52 = vector.load %arg16[%c0_23, %c0_24] : memref<36x512xbf16, #tpu.memory_space<vmem>>, vector<36x512xbf16>
    %cst = arith.constant dense<0.000000e+00> : vector<16x512xf32>
    %53 = tpu.matmul %51, %52, %cst {dimension_numbers = #tpu.dot_dimension_numbers<[1], [0], [0], [1], [0, 0, 1, 1], [], []>} : vector<16x36xbf16>, vector<36x512xbf16>, vector<16x512xf32> -> vector<16x512xf32>
    %c0_25 = arith.constant 0 : index
    %c0_26 = arith.constant 0 : index
    %54 = vector.load %arg4[%c0_25, %c0_26] : memref<16x1xf32, #tpu.memory_space<vmem>>, vector<16x1xf32>
    %55 = vector.broadcast %54 : vector<16x1xf32> to vector<16x512xf32>
    %56 = arith.addf %53, %55 : vector<16x512xf32>
    %cst_27 = arith.constant 0.000000e+00 : f32
    %57 = vector.broadcast %cst_27 : f32 to vector<16x512xf32>
    %58 = arith.maximumf %56, %57 : vector<16x512xf32>
    %c17_i32_28 = arith.constant 17 : i32
    %59 = tpu.dynamic_rotate %58 by %c17_i32_28 dim 1 : vector<16x512xf32>, i32 -> vector<16x512xf32>
    %c0_29 = arith.constant 0 : index
    %c0_30 = arith.constant 0 : index
    %60 = vector.load %arg2[%c0_29, %c0_30] : memref<9x512xf32, #tpu.memory_space<vmem>>, vector<1x512xf32>
    %61 = vector.broadcast %60 : vector<1x512xf32> to vector<16x512xf32>
    %62 = arith.mulf %59, %61 : vector<16x512xf32>
    %63 = arith.truncf %62 : vector<16x512xf32> to vector<16x512xbf16>
    %c0_31 = arith.constant 0 : index
    %c0_32 = arith.constant 0 : index
    %64 = vector.load %arg17[%c0_31, %c0_32] : memref<144x512xbf16, #tpu.memory_space<vmem>>, vector<16x512xbf16>
    tpu.vector_store %arg17[%c0_31, %c0_32], %63 {strides = array<i32>} : memref<144x512xbf16, #tpu.memory_space<vmem>>, vector<16x512xbf16>,
    %c16_i32_33 = arith.constant 16 : i32
    %65 = tpu.dynamic_rotate %58 by %c16_i32_33 dim 1 : vector<16x512xf32>, i32 -> vector<16x512xf32>
    %c1_34 = arith.constant 1 : index
    %c0_35 = arith.constant 0 : index
    %66 = vector.load %arg2[%c1_34, %c0_35] : memref<9x512xf32, #tpu.memory_space<vmem>>, vector<1x512xf32>
    %67 = vector.broadcast %66 : vector<1x512xf32> to vector<16x512xf32>
    %68 = arith.mulf %65, %67 : vector<16x512xf32>
    %69 = arith.truncf %68 : vector<16x512xf32> to vector<16x512xbf16>
    %c16_36 = arith.constant 16 : index
    %c0_37 = arith.constant 0 : index
    %70 = vector.load %arg17[%c16_36, %c0_37] : memref<144x512xbf16, #tpu.memory_space<vmem>>, vector<16x512xbf16>
    tpu.vector_store %arg17[%c16_36, %c0_37], %69 {strides = array<i32>} : memref<144x512xbf16, #tpu.memory_space<vmem>>, vector<16x512xbf16>,
    %c15_i32_38 = arith.constant 15 : i32
    %71 = tpu.dynamic_rotate %58 by %c15_i32_38 dim 1 : vector<16x512xf32>, i32 -> vector<16x512xf32>
    %c2_39 = arith.constant 2 : index
    %c0_40 = arith.constant 0 : index
    %72 = vector.load %arg2[%c2_39, %c0_40] : memref<9x512xf32, #tpu.memory_space<vmem>>, vector<1x512xf32>
    %73 = vector.broadcast %72 : vector<1x512xf32> to vector<16x512xf32>
    %74 = arith.mulf %71, %73 : vector<16x512xf32>
    %75 = arith.truncf %74 : vector<16x512xf32> to vector<16x512xbf16>
    %c32_41 = arith.constant 32 : index
    %c0_42 = arith.constant 0 : index
    %76 = vector.load %arg17[%c32_41, %c0_42] : memref<144x512xbf16, #tpu.memory_space<vmem>>, vector<16x512xbf16>
    tpu.vector_store %arg17[%c32_41, %c0_42], %75 {strides = array<i32>} : memref<144x512xbf16, #tpu.memory_space<vmem>>, vector<16x512xbf16>,
    %c1_i32_43 = arith.constant 1 : i32
    %77 = tpu.dynamic_rotate %58 by %c1_i32_43 dim 1 : vector<16x512xf32>, i32 -> vector<16x512xf32>
    %c3_44 = arith.constant 3 : index
    %c0_45 = arith.constant 0 : index
    %78 = vector.load %arg2[%c3_44, %c0_45] : memref<9x512xf32, #tpu.memory_space<vmem>>, vector<1x512xf32>
    %79 = vector.broadcast %78 : vector<1x512xf32> to vector<16x512xf32>
    %80 = arith.mulf %77, %79 : vector<16x512xf32>
    %81 = arith.truncf %80 : vector<16x512xf32> to vector<16x512xbf16>
    %c48 = arith.constant 48 : index
    %c0_46 = arith.constant 0 : index
    %82 = vector.load %arg17[%c48, %c0_46] : memref<144x512xbf16, #tpu.memory_space<vmem>>, vector<16x512xbf16>
    tpu.vector_store %arg17[%c48, %c0_46], %81 {strides = array<i32>} : memref<144x512xbf16, #tpu.memory_space<vmem>>, vector<16x512xbf16>,
    %83 = arith.truncf %58 : vector<16x512xf32> to vector<16x512xbf16>
    %c64 = arith.constant 64 : index
    %c0_47 = arith.constant 0 : index
    %84 = vector.load %arg17[%c64, %c0_47] : memref<144x512xbf16, #tpu.memory_space<vmem>>, vector<16x512xbf16>
    tpu.vector_store %arg17[%c64, %c0_47], %83 {strides = array<i32>} : memref<144x512xbf16, #tpu.memory_space<vmem>>, vector<16x512xbf16>,
    %c511_i32_48 = arith.constant 511 : i32
    %85 = tpu.dynamic_rotate %58 by %c511_i32_48 dim 1 : vector<16x512xf32>, i32 -> vector<16x512xf32>
    %c5_49 = arith.constant 5 : index
    %c0_50 = arith.constant 0 : index
    %86 = vector.load %arg2[%c5_49, %c0_50] : memref<9x512xf32, #tpu.memory_space<vmem>>, vector<1x512xf32>
    %87 = vector.broadcast %86 : vector<1x512xf32> to vector<16x512xf32>
    %88 = arith.mulf %85, %87 : vector<16x512xf32>
    %89 = arith.truncf %88 : vector<16x512xf32> to vector<16x512xbf16>
    %c80 = arith.constant 80 : index
    %c0_51 = arith.constant 0 : index
    %90 = vector.load %arg17[%c80, %c0_51] : memref<144x512xbf16, #tpu.memory_space<vmem>>, vector<16x512xbf16>
    tpu.vector_store %arg17[%c80, %c0_51], %89 {strides = array<i32>} : memref<144x512xbf16, #tpu.memory_space<vmem>>, vector<16x512xbf16>,
    %c497_i32_52 = arith.constant 497 : i32
    %91 = tpu.dynamic_rotate %58 by %c497_i32_52 dim 1 : vector<16x512xf32>, i32 -> vector<16x512xf32>
    %c6_53 = arith.constant 6 : index
    %c0_54 = arith.constant 0 : index
    %92 = vector.load %arg2[%c6_53, %c0_54] : memref<9x512xf32, #tpu.memory_space<vmem>>, vector<1x512xf32>
    %93 = vector.broadcast %92 : vector<1x512xf32> to vector<16x512xf32>
    %94 = arith.mulf %91, %93 : vector<16x512xf32>
    %95 = arith.truncf %94 : vector<16x512xf32> to vector<16x512xbf16>
    %c96 = arith.constant 96 : index
    %c0_55 = arith.constant 0 : index
    %96 = vector.load %arg17[%c96, %c0_55] : memref<144x512xbf16, #tpu.memory_space<vmem>>, vector<16x512xbf16>
    tpu.vector_store %arg17[%c96, %c0_55], %95 {strides = array<i32>} : memref<144x512xbf16, #tpu.memory_space<vmem>>, vector<16x512xbf16>,
    %c496_i32_56 = arith.constant 496 : i32
    %97 = tpu.dynamic_rotate %58 by %c496_i32_56 dim 1 : vector<16x512xf32>, i32 -> vector<16x512xf32>
    %c7_57 = arith.constant 7 : index
    %c0_58 = arith.constant 0 : index
    %98 = vector.load %arg2[%c7_57, %c0_58] : memref<9x512xf32, #tpu.memory_space<vmem>>, vector<1x512xf32>
    %99 = vector.broadcast %98 : vector<1x512xf32> to vector<16x512xf32>
    %100 = arith.mulf %97, %99 : vector<16x512xf32>
    %101 = arith.truncf %100 : vector<16x512xf32> to vector<16x512xbf16>
    %c112 = arith.constant 112 : index
    %c0_59 = arith.constant 0 : index
    %102 = vector.load %arg17[%c112, %c0_59] : memref<144x512xbf16, #tpu.memory_space<vmem>>, vector<16x512xbf16>
    tpu.vector_store %arg17[%c112, %c0_59], %101 {strides = array<i32>} : memref<144x512xbf16, #tpu.memory_space<vmem>>, vector<16x512xbf16>,
    %c495_i32_60 = arith.constant 495 : i32
    %103 = tpu.dynamic_rotate %58 by %c495_i32_60 dim 1 : vector<16x512xf32>, i32 -> vector<16x512xf32>
    %c8_61 = arith.constant 8 : index
    %c0_62 = arith.constant 0 : index
    %104 = vector.load %arg2[%c8_61, %c0_62] : memref<9x512xf32, #tpu.memory_space<vmem>>, vector<1x512xf32>
    %105 = vector.broadcast %104 : vector<1x512xf32> to vector<16x512xf32>
    %106 = arith.mulf %103, %105 : vector<16x512xf32>
    %107 = arith.truncf %106 : vector<16x512xf32> to vector<16x512xbf16>
    %c128 = arith.constant 128 : index
    %c0_63 = arith.constant 0 : index
    %108 = vector.load %arg17[%c128, %c0_63] : memref<144x512xbf16, #tpu.memory_space<vmem>>, vector<16x512xbf16>
    tpu.vector_store %arg17[%c128, %c0_63], %107 {strides = array<i32>} : memref<144x512xbf16, #tpu.memory_space<vmem>>, vector<16x512xbf16>,
    %c0_64 = arith.constant 0 : index
    %c0_65 = arith.constant 0 : index
    %109 = vector.load %arg5[%c0_64, %c0_65] : memref<24x144xbf16, #tpu.memory_space<vmem>>, vector<24x144xbf16>
    %c0_66 = arith.constant 0 : index
    %c0_67 = arith.constant 0 : index
    %110 = vector.load %arg17[%c0_66, %c0_67] : memref<144x512xbf16, #tpu.memory_space<vmem>>, vector<144x512xbf16>
    %cst_68 = arith.constant dense<0.000000e+00> : vector<24x512xf32>
    %111 = tpu.matmul %109, %110, %cst_68 {dimension_numbers = #tpu.dot_dimension_numbers<[1], [0], [0], [1], [0, 0, 1, 1], [], []>} : vector<24x144xbf16>, vector<144x512xbf16>, vector<24x512xf32> -> vector<24x512xf32>
    %c0_69 = arith.constant 0 : index
    %c0_70 = arith.constant 0 : index
    %112 = vector.load %arg6[%c0_69, %c0_70] : memref<24x1xf32, #tpu.memory_space<vmem>>, vector<24x1xf32>
    %113 = vector.broadcast %112 : vector<24x1xf32> to vector<24x512xf32>
    %114 = arith.addf %111, %113 : vector<24x512xf32>
    %115 = vector.extract_strided_slice %114 {offsets = [0, 0], sizes = [16, 512], strides = [1, 1]} : vector<24x512xf32> to vector<16x512xf32>
    %cst_71 = arith.constant 0.000000e+00 : f32
    %116 = vector.broadcast %cst_71 : f32 to vector<16x512xf32>
    %117 = arith.maximumf %115, %116 : vector<16x512xf32>
    %118 = vector.extract_strided_slice %114 {offsets = [16, 0], sizes = [8, 512], strides = [1, 1]} : vector<24x512xf32> to vector<8x512xf32>
    %c17_i32_72 = arith.constant 17 : i32
    %119 = tpu.dynamic_rotate %118 by %c17_i32_72 dim 1 : vector<8x512xf32>, i32 -> vector<8x512xf32>
    %c0_73 = arith.constant 0 : index
    %c0_74 = arith.constant 0 : index
    %120 = vector.load %arg2[%c0_73, %c0_74] : memref<9x512xf32, #tpu.memory_space<vmem>>, vector<1x512xf32>
    %121 = vector.broadcast %120 : vector<1x512xf32> to vector<8x512xf32>
    %122 = arith.mulf %119, %121 : vector<8x512xf32>
    %123 = arith.truncf %122 : vector<8x512xf32> to vector<8x512xbf16>
    %c0_75 = arith.constant 0 : index
    %c0_76 = arith.constant 0 : index
    %124 = vector.load %arg18[%c0_75, %c0_76] : memref<72x512xbf16, #tpu.memory_space<vmem>>, vector<8x512xbf16>
    tpu.vector_store %arg18[%c0_75, %c0_76], %123 {strides = array<i32>} : memref<72x512xbf16, #tpu.memory_space<vmem>>, vector<8x512xbf16>,
    %c16_i32_77 = arith.constant 16 : i32
    %125 = tpu.dynamic_rotate %118 by %c16_i32_77 dim 1 : vector<8x512xf32>, i32 -> vector<8x512xf32>
    %c1_78 = arith.constant 1 : index
    %c0_79 = arith.constant 0 : index
    %126 = vector.load %arg2[%c1_78, %c0_79] : memref<9x512xf32, #tpu.memory_space<vmem>>, vector<1x512xf32>
    %127 = vector.broadcast %126 : vector<1x512xf32> to vector<8x512xf32>
    %128 = arith.mulf %125, %127 : vector<8x512xf32>
    %129 = arith.truncf %128 : vector<8x512xf32> to vector<8x512xbf16>
    %c8_80 = arith.constant 8 : index
    %c0_81 = arith.constant 0 : index
    %130 = vector.load %arg18[%c8_80, %c0_81] : memref<72x512xbf16, #tpu.memory_space<vmem>>, vector<8x512xbf16>
    tpu.vector_store %arg18[%c8_80, %c0_81], %129 {strides = array<i32>} : memref<72x512xbf16, #tpu.memory_space<vmem>>, vector<8x512xbf16>,
    %c15_i32_82 = arith.constant 15 : i32
    %131 = tpu.dynamic_rotate %118 by %c15_i32_82 dim 1 : vector<8x512xf32>, i32 -> vector<8x512xf32>
    %c2_83 = arith.constant 2 : index
    %c0_84 = arith.constant 0 : index
    %132 = vector.load %arg2[%c2_83, %c0_84] : memref<9x512xf32, #tpu.memory_space<vmem>>, vector<1x512xf32>
    %133 = vector.broadcast %132 : vector<1x512xf32> to vector<8x512xf32>
    %134 = arith.mulf %131, %133 : vector<8x512xf32>
    %135 = arith.truncf %134 : vector<8x512xf32> to vector<8x512xbf16>
    %c16_85 = arith.constant 16 : index
    %c0_86 = arith.constant 0 : index
    %136 = vector.load %arg18[%c16_85, %c0_86] : memref<72x512xbf16, #tpu.memory_space<vmem>>, vector<8x512xbf16>
    tpu.vector_store %arg18[%c16_85, %c0_86], %135 {strides = array<i32>} : memref<72x512xbf16, #tpu.memory_space<vmem>>, vector<8x512xbf16>,
    %c1_i32_87 = arith.constant 1 : i32
    %137 = tpu.dynamic_rotate %118 by %c1_i32_87 dim 1 : vector<8x512xf32>, i32 -> vector<8x512xf32>
    %c3_88 = arith.constant 3 : index
    %c0_89 = arith.constant 0 : index
    %138 = vector.load %arg2[%c3_88, %c0_89] : memref<9x512xf32, #tpu.memory_space<vmem>>, vector<1x512xf32>
    %139 = vector.broadcast %138 : vector<1x512xf32> to vector<8x512xf32>
    %140 = arith.mulf %137, %139 : vector<8x512xf32>
    %141 = arith.truncf %140 : vector<8x512xf32> to vector<8x512xbf16>
    %c24_90 = arith.constant 24 : index
    %c0_91 = arith.constant 0 : index
    %142 = vector.load %arg18[%c24_90, %c0_91] : memref<72x512xbf16, #tpu.memory_space<vmem>>, vector<8x512xbf16>
    tpu.vector_store %arg18[%c24_90, %c0_91], %141 {strides = array<i32>} : memref<72x512xbf16, #tpu.memory_space<vmem>>, vector<8x512xbf16>,
    %143 = arith.truncf %118 : vector<8x512xf32> to vector<8x512xbf16>
    %c32_92 = arith.constant 32 : index
    %c0_93 = arith.constant 0 : index
    %144 = vector.load %arg18[%c32_92, %c0_93] : memref<72x512xbf16, #tpu.memory_space<vmem>>, vector<8x512xbf16>
    tpu.vector_store %arg18[%c32_92, %c0_93], %143 {strides = array<i32>} : memref<72x512xbf16, #tpu.memory_space<vmem>>, vector<8x512xbf16>,
    %c511_i32_94 = arith.constant 511 : i32
    %145 = tpu.dynamic_rotate %118 by %c511_i32_94 dim 1 : vector<8x512xf32>, i32 -> vector<8x512xf32>
    %c5_95 = arith.constant 5 : index
    %c0_96 = arith.constant 0 : index
    %146 = vector.load %arg2[%c5_95, %c0_96] : memref<9x512xf32, #tpu.memory_space<vmem>>, vector<1x512xf32>
    %147 = vector.broadcast %146 : vector<1x512xf32> to vector<8x512xf32>
    %148 = arith.mulf %145, %147 : vector<8x512xf32>
    %149 = arith.truncf %148 : vector<8x512xf32> to vector<8x512xbf16>
    %c40 = arith.constant 40 : index
    %c0_97 = arith.constant 0 : index
    %150 = vector.load %arg18[%c40, %c0_97] : memref<72x512xbf16, #tpu.memory_space<vmem>>, vector<8x512xbf16>
    tpu.vector_store %arg18[%c40, %c0_97], %149 {strides = array<i32>} : memref<72x512xbf16, #tpu.memory_space<vmem>>, vector<8x512xbf16>,
    %c497_i32_98 = arith.constant 497 : i32
    %151 = tpu.dynamic_rotate %118 by %c497_i32_98 dim 1 : vector<8x512xf32>, i32 -> vector<8x512xf32>
    %c6_99 = arith.constant 6 : index
    %c0_100 = arith.constant 0 : index
    %152 = vector.load %arg2[%c6_99, %c0_100] : memref<9x512xf32, #tpu.memory_space<vmem>>, vector<1x512xf32>
    %153 = vector.broadcast %152 : vector<1x512xf32> to vector<8x512xf32>
    %154 = arith.mulf %151, %153 : vector<8x512xf32>
    %155 = arith.truncf %154 : vector<8x512xf32> to vector<8x512xbf16>
    %c48_101 = arith.constant 48 : index
    %c0_102 = arith.constant 0 : index
    %156 = vector.load %arg18[%c48_101, %c0_102] : memref<72x512xbf16, #tpu.memory_space<vmem>>, vector<8x512xbf16>
    tpu.vector_store %arg18[%c48_101, %c0_102], %155 {strides = array<i32>} : memref<72x512xbf16, #tpu.memory_space<vmem>>, vector<8x512xbf16>,
    %c496_i32_103 = arith.constant 496 : i32
    %157 = tpu.dynamic_rotate %118 by %c496_i32_103 dim 1 : vector<8x512xf32>, i32 -> vector<8x512xf32>
    %c7_104 = arith.constant 7 : index
    %c0_105 = arith.constant 0 : index
    %158 = vector.load %arg2[%c7_104, %c0_105] : memref<9x512xf32, #tpu.memory_space<vmem>>, vector<1x512xf32>
    %159 = vector.broadcast %158 : vector<1x512xf32> to vector<8x512xf32>
    %160 = arith.mulf %157, %159 : vector<8x512xf32>
    %161 = arith.truncf %160 : vector<8x512xf32> to vector<8x512xbf16>
    %c56 = arith.constant 56 : index
    %c0_106 = arith.constant 0 : index
    %162 = vector.load %arg18[%c56, %c0_106] : memref<72x512xbf16, #tpu.memory_space<vmem>>, vector<8x512xbf16>
    tpu.vector_store %arg18[%c56, %c0_106], %161 {strides = array<i32>} : memref<72x512xbf16, #tpu.memory_space<vmem>>, vector<8x512xbf16>,
    %c495_i32_107 = arith.constant 495 : i32
    %163 = tpu.dynamic_rotate %118 by %c495_i32_107 dim 1 : vector<8x512xf32>, i32 -> vector<8x512xf32>
    %c8_108 = arith.constant 8 : index
    %c0_109 = arith.constant 0 : index
    %164 = vector.load %arg2[%c8_108, %c0_109] : memref<9x512xf32, #tpu.memory_space<vmem>>, vector<1x512xf32>
    %165 = vector.broadcast %164 : vector<1x512xf32> to vector<8x512xf32>
    %166 = arith.mulf %163, %165 : vector<8x512xf32>
    %167 = arith.truncf %166 : vector<8x512xf32> to vector<8x512xbf16>
    %c64_110 = arith.constant 64 : index
    %c0_111 = arith.constant 0 : index
    %168 = vector.load %arg18[%c64_110, %c0_111] : memref<72x512xbf16, #tpu.memory_space<vmem>>, vector<8x512xbf16>
    tpu.vector_store %arg18[%c64_110, %c0_111], %167 {strides = array<i32>} : memref<72x512xbf16, #tpu.memory_space<vmem>>, vector<8x512xbf16>,
    %c0_112 = arith.constant 0 : index
    %c0_113 = arith.constant 0 : index
    %169 = vector.load %arg9[%c0_112, %c0_113] : memref<8x72xbf16, #tpu.memory_space<vmem>>, vector<8x72xbf16>
    %c0_114 = arith.constant 0 : index
    %c0_115 = arith.constant 0 : index
    %170 = vector.load %arg18[%c0_114, %c0_115] : memref<72x512xbf16, #tpu.memory_space<vmem>>, vector<72x512xbf16>
    %cst_116 = arith.constant dense<0.000000e+00> : vector<8x512xf32>
    %171 = tpu.matmul %169, %170, %cst_116 {dimension_numbers = #tpu.dot_dimension_numbers<[1], [0], [0], [1], [0, 0, 1, 1], [], []>} : vector<8x72xbf16>, vector<72x512xbf16>, vector<8x512xf32> -> vector<8x512xf32>
    %c17_i32_117 = arith.constant 17 : i32
    %172 = tpu.dynamic_rotate %117 by %c17_i32_117 dim 1 : vector<16x512xf32>, i32 -> vector<16x512xf32>
    %c0_118 = arith.constant 0 : index
    %c0_119 = arith.constant 0 : index
    %173 = vector.load %arg2[%c0_118, %c0_119] : memref<9x512xf32, #tpu.memory_space<vmem>>, vector<1x512xf32>
    %174 = vector.broadcast %173 : vector<1x512xf32> to vector<16x512xf32>
    %175 = arith.mulf %172, %174 : vector<16x512xf32>
    %176 = arith.truncf %175 : vector<16x512xf32> to vector<16x512xbf16>
    %c0_120 = arith.constant 0 : index
    %c0_121 = arith.constant 0 : index
    %177 = vector.load %arg17[%c0_120, %c0_121] : memref<144x512xbf16, #tpu.memory_space<vmem>>, vector<16x512xbf16>
    tpu.vector_store %arg17[%c0_120, %c0_121], %176 {strides = array<i32>} : memref<144x512xbf16, #tpu.memory_space<vmem>>, vector<16x512xbf16>,
    %c16_i32_122 = arith.constant 16 : i32
    %178 = tpu.dynamic_rotate %117 by %c16_i32_122 dim 1 : vector<16x512xf32>, i32 -> vector<16x512xf32>
    %c1_123 = arith.constant 1 : index
    %c0_124 = arith.constant 0 : index
    %179 = vector.load %arg2[%c1_123, %c0_124] : memref<9x512xf32, #tpu.memory_space<vmem>>, vector<1x512xf32>
    %180 = vector.broadcast %179 : vector<1x512xf32> to vector<16x512xf32>
    %181 = arith.mulf %178, %180 : vector<16x512xf32>
    %182 = arith.truncf %181 : vector<16x512xf32> to vector<16x512xbf16>
    %c16_125 = arith.constant 16 : index
    %c0_126 = arith.constant 0 : index
    %183 = vector.load %arg17[%c16_125, %c0_126] : memref<144x512xbf16, #tpu.memory_space<vmem>>, vector<16x512xbf16>
    tpu.vector_store %arg17[%c16_125, %c0_126], %182 {strides = array<i32>} : memref<144x512xbf16, #tpu.memory_space<vmem>>, vector<16x512xbf16>,
    %c15_i32_127 = arith.constant 15 : i32
    %184 = tpu.dynamic_rotate %117 by %c15_i32_127 dim 1 : vector<16x512xf32>, i32 -> vector<16x512xf32>
    %c2_128 = arith.constant 2 : index
    %c0_129 = arith.constant 0 : index
    %185 = vector.load %arg2[%c2_128, %c0_129] : memref<9x512xf32, #tpu.memory_space<vmem>>, vector<1x512xf32>
    %186 = vector.broadcast %185 : vector<1x512xf32> to vector<16x512xf32>
    %187 = arith.mulf %184, %186 : vector<16x512xf32>
    %188 = arith.truncf %187 : vector<16x512xf32> to vector<16x512xbf16>
    %c32_130 = arith.constant 32 : index
    %c0_131 = arith.constant 0 : index
    %189 = vector.load %arg17[%c32_130, %c0_131] : memref<144x512xbf16, #tpu.memory_space<vmem>>, vector<16x512xbf16>
    tpu.vector_store %arg17[%c32_130, %c0_131], %188 {strides = array<i32>} : memref<144x512xbf16, #tpu.memory_space<vmem>>, vector<16x512xbf16>,
    %c1_i32_132 = arith.constant 1 : i32
    %190 = tpu.dynamic_rotate %117 by %c1_i32_132 dim 1 : vector<16x512xf32>, i32 -> vector<16x512xf32>
    %c3_133 = arith.constant 3 : index
    %c0_134 = arith.constant 0 : index
    %191 = vector.load %arg2[%c3_133, %c0_134] : memref<9x512xf32, #tpu.memory_space<vmem>>, vector<1x512xf32>
    %192 = vector.broadcast %191 : vector<1x512xf32> to vector<16x512xf32>
    %193 = arith.mulf %190, %192 : vector<16x512xf32>
    %194 = arith.truncf %193 : vector<16x512xf32> to vector<16x512xbf16>
    %c48_135 = arith.constant 48 : index
    %c0_136 = arith.constant 0 : index
    %195 = vector.load %arg17[%c48_135, %c0_136] : memref<144x512xbf16, #tpu.memory_space<vmem>>, vector<16x512xbf16>
    tpu.vector_store %arg17[%c48_135, %c0_136], %194 {strides = array<i32>} : memref<144x512xbf16, #tpu.memory_space<vmem>>, vector<16x512xbf16>,
    %196 = arith.truncf %117 : vector<16x512xf32> to vector<16x512xbf16>
    %c64_137 = arith.constant 64 : index
    %c0_138 = arith.constant 0 : index
    %197 = vector.load %arg17[%c64_137, %c0_138] : memref<144x512xbf16, #tpu.memory_space<vmem>>, vector<16x512xbf16>
    tpu.vector_store %arg17[%c64_137, %c0_138], %196 {strides = array<i32>} : memref<144x512xbf16, #tpu.memory_space<vmem>>, vector<16x512xbf16>,
    %c511_i32_139 = arith.constant 511 : i32
    %198 = tpu.dynamic_rotate %117 by %c511_i32_139 dim 1 : vector<16x512xf32>, i32 -> vector<16x512xf32>
    %c5_140 = arith.constant 5 : index
    %c0_141 = arith.constant 0 : index
    %199 = vector.load %arg2[%c5_140, %c0_141] : memref<9x512xf32, #tpu.memory_space<vmem>>, vector<1x512xf32>
    %200 = vector.broadcast %199 : vector<1x512xf32> to vector<16x512xf32>
    %201 = arith.mulf %198, %200 : vector<16x512xf32>
    %202 = arith.truncf %201 : vector<16x512xf32> to vector<16x512xbf16>
    %c80_142 = arith.constant 80 : index
    %c0_143 = arith.constant 0 : index
    %203 = vector.load %arg17[%c80_142, %c0_143] : memref<144x512xbf16, #tpu.memory_space<vmem>>, vector<16x512xbf16>
    tpu.vector_store %arg17[%c80_142, %c0_143], %202 {strides = array<i32>} : memref<144x512xbf16, #tpu.memory_space<vmem>>, vector<16x512xbf16>,
    %c497_i32_144 = arith.constant 497 : i32
    %204 = tpu.dynamic_rotate %117 by %c497_i32_144 dim 1 : vector<16x512xf32>, i32 -> vector<16x512xf32>
    %c6_145 = arith.constant 6 : index
    %c0_146 = arith.constant 0 : index
    %205 = vector.load %arg2[%c6_145, %c0_146] : memref<9x512xf32, #tpu.memory_space<vmem>>, vector<1x512xf32>
    %206 = vector.broadcast %205 : vector<1x512xf32> to vector<16x512xf32>
    %207 = arith.mulf %204, %206 : vector<16x512xf32>
    %208 = arith.truncf %207 : vector<16x512xf32> to vector<16x512xbf16>
    %c96_147 = arith.constant 96 : index
    %c0_148 = arith.constant 0 : index
    %209 = vector.load %arg17[%c96_147, %c0_148] : memref<144x512xbf16, #tpu.memory_space<vmem>>, vector<16x512xbf16>
    tpu.vector_store %arg17[%c96_147, %c0_148], %208 {strides = array<i32>} : memref<144x512xbf16, #tpu.memory_space<vmem>>, vector<16x512xbf16>,
    %c496_i32_149 = arith.constant 496 : i32
    %210 = tpu.dynamic_rotate %117 by %c496_i32_149 dim 1 : vector<16x512xf32>, i32 -> vector<16x512xf32>
    %c7_150 = arith.constant 7 : index
    %c0_151 = arith.constant 0 : index
    %211 = vector.load %arg2[%c7_150, %c0_151] : memref<9x512xf32, #tpu.memory_space<vmem>>, vector<1x512xf32>
    %212 = vector.broadcast %211 : vector<1x512xf32> to vector<16x512xf32>
    %213 = arith.mulf %210, %212 : vector<16x512xf32>
    %214 = arith.truncf %213 : vector<16x512xf32> to vector<16x512xbf16>
    %c112_152 = arith.constant 112 : index
    %c0_153 = arith.constant 0 : index
    %215 = vector.load %arg17[%c112_152, %c0_153] : memref<144x512xbf16, #tpu.memory_space<vmem>>, vector<16x512xbf16>
    tpu.vector_store %arg17[%c112_152, %c0_153], %214 {strides = array<i32>} : memref<144x512xbf16, #tpu.memory_space<vmem>>, vector<16x512xbf16>,
    %c495_i32_154 = arith.constant 495 : i32
    %216 = tpu.dynamic_rotate %117 by %c495_i32_154 dim 1 : vector<16x512xf32>, i32 -> vector<16x512xf32>
    %c8_155 = arith.constant 8 : index
    %c0_156 = arith.constant 0 : index
    %217 = vector.load %arg2[%c8_155, %c0_156] : memref<9x512xf32, #tpu.memory_space<vmem>>, vector<1x512xf32>
    %218 = vector.broadcast %217 : vector<1x512xf32> to vector<16x512xf32>
    %219 = arith.mulf %216, %218 : vector<16x512xf32>
    %220 = arith.truncf %219 : vector<16x512xf32> to vector<16x512xbf16>
    %c128_157 = arith.constant 128 : index
    %c0_158 = arith.constant 0 : index
    %221 = vector.load %arg17[%c128_157, %c0_158] : memref<144x512xbf16, #tpu.memory_space<vmem>>, vector<16x512xbf16>
    tpu.vector_store %arg17[%c128_157, %c0_158], %220 {strides = array<i32>} : memref<144x512xbf16, #tpu.memory_space<vmem>>, vector<16x512xbf16>,
    %c0_159 = arith.constant 0 : index
    %c0_160 = arith.constant 0 : index
    %222 = vector.load %arg7[%c0_159, %c0_160] : memref<24x144xbf16, #tpu.memory_space<vmem>>, vector<24x144xbf16>
    %c0_161 = arith.constant 0 : index
    %c0_162 = arith.constant 0 : index
    %223 = vector.load %arg17[%c0_161, %c0_162] : memref<144x512xbf16, #tpu.memory_space<vmem>>, vector<144x512xbf16>
    %cst_163 = arith.constant dense<0.000000e+00> : vector<24x512xf32>
    %224 = tpu.matmul %222, %223, %cst_163 {dimension_numbers = #tpu.dot_dimension_numbers<[1], [0], [0], [1], [0, 0, 1, 1], [], []>} : vector<24x144xbf16>, vector<144x512xbf16>, vector<24x512xf32> -> vector<24x512xf32>
    %c0_164 = arith.constant 0 : index
    %c0_165 = arith.constant 0 : index
    %225 = vector.load %arg8[%c0_164, %c0_165] : memref<24x1xf32, #tpu.memory_space<vmem>>, vector<24x1xf32>
    %226 = vector.broadcast %225 : vector<24x1xf32> to vector<24x512xf32>
    %227 = arith.addf %224, %226 : vector<24x512xf32>
    %228 = vector.extract_strided_slice %227 {offsets = [0, 0], sizes = [16, 512], strides = [1, 1]} : vector<24x512xf32> to vector<16x512xf32>
    %cst_166 = arith.constant 0.000000e+00 : f32
    %229 = vector.broadcast %cst_166 : f32 to vector<16x512xf32>
    %230 = arith.maximumf %228, %229 : vector<16x512xf32>
    %231 = vector.extract_strided_slice %227 {offsets = [16, 0], sizes = [8, 512], strides = [1, 1]} : vector<24x512xf32> to vector<8x512xf32>
    %232 = arith.addf %231, %171 : vector<8x512xf32>
    %c17_i32_167 = arith.constant 17 : i32
    %233 = tpu.dynamic_rotate %232 by %c17_i32_167 dim 1 : vector<8x512xf32>, i32 -> vector<8x512xf32>
    %c0_168 = arith.constant 0 : index
    %c0_169 = arith.constant 0 : index
    %234 = vector.load %arg2[%c0_168, %c0_169] : memref<9x512xf32, #tpu.memory_space<vmem>>, vector<1x512xf32>
    %235 = vector.broadcast %234 : vector<1x512xf32> to vector<8x512xf32>
    %236 = arith.mulf %233, %235 : vector<8x512xf32>
    %237 = arith.truncf %236 : vector<8x512xf32> to vector<8x512xbf16>
    %c0_170 = arith.constant 0 : index
    %c0_171 = arith.constant 0 : index
    %238 = vector.load %arg18[%c0_170, %c0_171] : memref<72x512xbf16, #tpu.memory_space<vmem>>, vector<8x512xbf16>
    tpu.vector_store %arg18[%c0_170, %c0_171], %237 {strides = array<i32>} : memref<72x512xbf16, #tpu.memory_space<vmem>>, vector<8x512xbf16>,
    %c16_i32_172 = arith.constant 16 : i32
    %239 = tpu.dynamic_rotate %232 by %c16_i32_172 dim 1 : vector<8x512xf32>, i32 -> vector<8x512xf32>
    %c1_173 = arith.constant 1 : index
    %c0_174 = arith.constant 0 : index
    %240 = vector.load %arg2[%c1_173, %c0_174] : memref<9x512xf32, #tpu.memory_space<vmem>>, vector<1x512xf32>
    %241 = vector.broadcast %240 : vector<1x512xf32> to vector<8x512xf32>
    %242 = arith.mulf %239, %241 : vector<8x512xf32>
    %243 = arith.truncf %242 : vector<8x512xf32> to vector<8x512xbf16>
    %c8_175 = arith.constant 8 : index
    %c0_176 = arith.constant 0 : index
    %244 = vector.load %arg18[%c8_175, %c0_176] : memref<72x512xbf16, #tpu.memory_space<vmem>>, vector<8x512xbf16>
    tpu.vector_store %arg18[%c8_175, %c0_176], %243 {strides = array<i32>} : memref<72x512xbf16, #tpu.memory_space<vmem>>, vector<8x512xbf16>,
    %c15_i32_177 = arith.constant 15 : i32
    %245 = tpu.dynamic_rotate %232 by %c15_i32_177 dim 1 : vector<8x512xf32>, i32 -> vector<8x512xf32>
    %c2_178 = arith.constant 2 : index
    %c0_179 = arith.constant 0 : index
    %246 = vector.load %arg2[%c2_178, %c0_179] : memref<9x512xf32, #tpu.memory_space<vmem>>, vector<1x512xf32>
    %247 = vector.broadcast %246 : vector<1x512xf32> to vector<8x512xf32>
    %248 = arith.mulf %245, %247 : vector<8x512xf32>
    %249 = arith.truncf %248 : vector<8x512xf32> to vector<8x512xbf16>
    %c16_180 = arith.constant 16 : index
    %c0_181 = arith.constant 0 : index
    %250 = vector.load %arg18[%c16_180, %c0_181] : memref<72x512xbf16, #tpu.memory_space<vmem>>, vector<8x512xbf16>
    tpu.vector_store %arg18[%c16_180, %c0_181], %249 {strides = array<i32>} : memref<72x512xbf16, #tpu.memory_space<vmem>>, vector<8x512xbf16>,
    %c1_i32_182 = arith.constant 1 : i32
    %251 = tpu.dynamic_rotate %232 by %c1_i32_182 dim 1 : vector<8x512xf32>, i32 -> vector<8x512xf32>
    %c3_183 = arith.constant 3 : index
    %c0_184 = arith.constant 0 : index
    %252 = vector.load %arg2[%c3_183, %c0_184] : memref<9x512xf32, #tpu.memory_space<vmem>>, vector<1x512xf32>
    %253 = vector.broadcast %252 : vector<1x512xf32> to vector<8x512xf32>
    %254 = arith.mulf %251, %253 : vector<8x512xf32>
    %255 = arith.truncf %254 : vector<8x512xf32> to vector<8x512xbf16>
    %c24_185 = arith.constant 24 : index
    %c0_186 = arith.constant 0 : index
    %256 = vector.load %arg18[%c24_185, %c0_186] : memref<72x512xbf16, #tpu.memory_space<vmem>>, vector<8x512xbf16>
    tpu.vector_store %arg18[%c24_185, %c0_186], %255 {strides = array<i32>} : memref<72x512xbf16, #tpu.memory_space<vmem>>, vector<8x512xbf16>,
    %257 = arith.truncf %232 : vector<8x512xf32> to vector<8x512xbf16>
    %c32_187 = arith.constant 32 : index
    %c0_188 = arith.constant 0 : index
    %258 = vector.load %arg18[%c32_187, %c0_188] : memref<72x512xbf16, #tpu.memory_space<vmem>>, vector<8x512xbf16>
    tpu.vector_store %arg18[%c32_187, %c0_188], %257 {strides = array<i32>} : memref<72x512xbf16, #tpu.memory_space<vmem>>, vector<8x512xbf16>,
    %c511_i32_189 = arith.constant 511 : i32
    %259 = tpu.dynamic_rotate %232 by %c511_i32_189 dim 1 : vector<8x512xf32>, i32 -> vector<8x512xf32>
    %c5_190 = arith.constant 5 : index
    %c0_191 = arith.constant 0 : index
    %260 = vector.load %arg2[%c5_190, %c0_191] : memref<9x512xf32, #tpu.memory_space<vmem>>, vector<1x512xf32>
    %261 = vector.broadcast %260 : vector<1x512xf32> to vector<8x512xf32>
    %262 = arith.mulf %259, %261 : vector<8x512xf32>
    %263 = arith.truncf %262 : vector<8x512xf32> to vector<8x512xbf16>
    %c40_192 = arith.constant 40 : index
    %c0_193 = arith.constant 0 : index
    %264 = vector.load %arg18[%c40_192, %c0_193] : memref<72x512xbf16, #tpu.memory_space<vmem>>, vector<8x512xbf16>
    tpu.vector_store %arg18[%c40_192, %c0_193], %263 {strides = array<i32>} : memref<72x512xbf16, #tpu.memory_space<vmem>>, vector<8x512xbf16>,
    %c497_i32_194 = arith.constant 497 : i32
    %265 = tpu.dynamic_rotate %232 by %c497_i32_194 dim 1 : vector<8x512xf32>, i32 -> vector<8x512xf32>
    %c6_195 = arith.constant 6 : index
    %c0_196 = arith.constant 0 : index
    %266 = vector.load %arg2[%c6_195, %c0_196] : memref<9x512xf32, #tpu.memory_space<vmem>>, vector<1x512xf32>
    %267 = vector.broadcast %266 : vector<1x512xf32> to vector<8x512xf32>
    %268 = arith.mulf %265, %267 : vector<8x512xf32>
    %269 = arith.truncf %268 : vector<8x512xf32> to vector<8x512xbf16>
    %c48_197 = arith.constant 48 : index
    %c0_198 = arith.constant 0 : index
    %270 = vector.load %arg18[%c48_197, %c0_198] : memref<72x512xbf16, #tpu.memory_space<vmem>>, vector<8x512xbf16>
    tpu.vector_store %arg18[%c48_197, %c0_198], %269 {strides = array<i32>} : memref<72x512xbf16, #tpu.memory_space<vmem>>, vector<8x512xbf16>,
    %c496_i32_199 = arith.constant 496 : i32
    %271 = tpu.dynamic_rotate %232 by %c496_i32_199 dim 1 : vector<8x512xf32>, i32 -> vector<8x512xf32>
    %c7_200 = arith.constant 7 : index
    %c0_201 = arith.constant 0 : index
    %272 = vector.load %arg2[%c7_200, %c0_201] : memref<9x512xf32, #tpu.memory_space<vmem>>, vector<1x512xf32>
    %273 = vector.broadcast %272 : vector<1x512xf32> to vector<8x512xf32>
    %274 = arith.mulf %271, %273 : vector<8x512xf32>
    %275 = arith.truncf %274 : vector<8x512xf32> to vector<8x512xbf16>
    %c56_202 = arith.constant 56 : index
    %c0_203 = arith.constant 0 : index
    %276 = vector.load %arg18[%c56_202, %c0_203] : memref<72x512xbf16, #tpu.memory_space<vmem>>, vector<8x512xbf16>
    tpu.vector_store %arg18[%c56_202, %c0_203], %275 {strides = array<i32>} : memref<72x512xbf16, #tpu.memory_space<vmem>>, vector<8x512xbf16>,
    %c495_i32_204 = arith.constant 495 : i32
    %277 = tpu.dynamic_rotate %232 by %c495_i32_204 dim 1 : vector<8x512xf32>, i32 -> vector<8x512xf32>
    %c8_205 = arith.constant 8 : index
    %c0_206 = arith.constant 0 : index
    %278 = vector.load %arg2[%c8_205, %c0_206] : memref<9x512xf32, #tpu.memory_space<vmem>>, vector<1x512xf32>
    %279 = vector.broadcast %278 : vector<1x512xf32> to vector<8x512xf32>
    %280 = arith.mulf %277, %279 : vector<8x512xf32>
    %281 = arith.truncf %280 : vector<8x512xf32> to vector<8x512xbf16>
    %c64_207 = arith.constant 64 : index
    %c0_208 = arith.constant 0 : index
    %282 = vector.load %arg18[%c64_207, %c0_208] : memref<72x512xbf16, #tpu.memory_space<vmem>>, vector<8x512xbf16>
    tpu.vector_store %arg18[%c64_207, %c0_208], %281 {strides = array<i32>} : memref<72x512xbf16, #tpu.memory_space<vmem>>, vector<8x512xbf16>,
    %c0_209 = arith.constant 0 : index
    %c0_210 = arith.constant 0 : index
    %283 = vector.load %arg11[%c0_209, %c0_210] : memref<8x72xbf16, #tpu.memory_space<vmem>>, vector<8x72xbf16>
    %c0_211 = arith.constant 0 : index
    %c0_212 = arith.constant 0 : index
    %284 = vector.load %arg18[%c0_211, %c0_212] : memref<72x512xbf16, #tpu.memory_space<vmem>>, vector<72x512xbf16>
    %cst_213 = arith.constant dense<0.000000e+00> : vector<8x512xf32>
    %285 = tpu.matmul %283, %284, %cst_213 {dimension_numbers = #tpu.dot_dimension_numbers<[1], [0], [0], [1], [0, 0, 1, 1], [], []>} : vector<8x72xbf16>, vector<72x512xbf16>, vector<8x512xf32> -> vector<8x512xf32>
    %c17_i32_214 = arith.constant 17 : i32
    %286 = tpu.dynamic_rotate %230 by %c17_i32_214 dim 1 : vector<16x512xf32>, i32 -> vector<16x512xf32>
    %c0_215 = arith.constant 0 : index
    %c0_216 = arith.constant 0 : index
    %287 = vector.load %arg2[%c0_215, %c0_216] : memref<9x512xf32, #tpu.memory_space<vmem>>, vector<1x512xf32>
    %288 = vector.broadcast %287 : vector<1x512xf32> to vector<16x512xf32>
    %289 = arith.mulf %286, %288 : vector<16x512xf32>
    %290 = arith.truncf %289 : vector<16x512xf32> to vector<16x512xbf16>
    %c0_217 = arith.constant 0 : index
    %c0_218 = arith.constant 0 : index
    %291 = vector.load %arg17[%c0_217, %c0_218] : memref<144x512xbf16, #tpu.memory_space<vmem>>, vector<16x512xbf16>
    tpu.vector_store %arg17[%c0_217, %c0_218], %290 {strides = array<i32>} : memref<144x512xbf16, #tpu.memory_space<vmem>>, vector<16x512xbf16>,
    %c16_i32_219 = arith.constant 16 : i32
    %292 = tpu.dynamic_rotate %230 by %c16_i32_219 dim 1 : vector<16x512xf32>, i32 -> vector<16x512xf32>
    %c1_220 = arith.constant 1 : index
    %c0_221 = arith.constant 0 : index
    %293 = vector.load %arg2[%c1_220, %c0_221] : memref<9x512xf32, #tpu.memory_space<vmem>>, vector<1x512xf32>
    %294 = vector.broadcast %293 : vector<1x512xf32> to vector<16x512xf32>
    %295 = arith.mulf %292, %294 : vector<16x512xf32>
    %296 = arith.truncf %295 : vector<16x512xf32> to vector<16x512xbf16>
    %c16_222 = arith.constant 16 : index
    %c0_223 = arith.constant 0 : index
    %297 = vector.load %arg17[%c16_222, %c0_223] : memref<144x512xbf16, #tpu.memory_space<vmem>>, vector<16x512xbf16>
    tpu.vector_store %arg17[%c16_222, %c0_223], %296 {strides = array<i32>} : memref<144x512xbf16, #tpu.memory_space<vmem>>, vector<16x512xbf16>,
    %c15_i32_224 = arith.constant 15 : i32
    %298 = tpu.dynamic_rotate %230 by %c15_i32_224 dim 1 : vector<16x512xf32>, i32 -> vector<16x512xf32>
    %c2_225 = arith.constant 2 : index
    %c0_226 = arith.constant 0 : index
    %299 = vector.load %arg2[%c2_225, %c0_226] : memref<9x512xf32, #tpu.memory_space<vmem>>, vector<1x512xf32>
    %300 = vector.broadcast %299 : vector<1x512xf32> to vector<16x512xf32>
    %301 = arith.mulf %298, %300 : vector<16x512xf32>
    %302 = arith.truncf %301 : vector<16x512xf32> to vector<16x512xbf16>
    %c32_227 = arith.constant 32 : index
    %c0_228 = arith.constant 0 : index
    %303 = vector.load %arg17[%c32_227, %c0_228] : memref<144x512xbf16, #tpu.memory_space<vmem>>, vector<16x512xbf16>
    tpu.vector_store %arg17[%c32_227, %c0_228], %302 {strides = array<i32>} : memref<144x512xbf16, #tpu.memory_space<vmem>>, vector<16x512xbf16>,
    %c1_i32_229 = arith.constant 1 : i32
    %304 = tpu.dynamic_rotate %230 by %c1_i32_229 dim 1 : vector<16x512xf32>, i32 -> vector<16x512xf32>
    %c3_230 = arith.constant 3 : index
    %c0_231 = arith.constant 0 : index
    %305 = vector.load %arg2[%c3_230, %c0_231] : memref<9x512xf32, #tpu.memory_space<vmem>>, vector<1x512xf32>
    %306 = vector.broadcast %305 : vector<1x512xf32> to vector<16x512xf32>
    %307 = arith.mulf %304, %306 : vector<16x512xf32>
    %308 = arith.truncf %307 : vector<16x512xf32> to vector<16x512xbf16>
    %c48_232 = arith.constant 48 : index
    %c0_233 = arith.constant 0 : index
    %309 = vector.load %arg17[%c48_232, %c0_233] : memref<144x512xbf16, #tpu.memory_space<vmem>>, vector<16x512xbf16>
    tpu.vector_store %arg17[%c48_232, %c0_233], %308 {strides = array<i32>} : memref<144x512xbf16, #tpu.memory_space<vmem>>, vector<16x512xbf16>,
    %310 = arith.truncf %230 : vector<16x512xf32> to vector<16x512xbf16>
    %c64_234 = arith.constant 64 : index
    %c0_235 = arith.constant 0 : index
    %311 = vector.load %arg17[%c64_234, %c0_235] : memref<144x512xbf16, #tpu.memory_space<vmem>>, vector<16x512xbf16>
    tpu.vector_store %arg17[%c64_234, %c0_235], %310 {strides = array<i32>} : memref<144x512xbf16, #tpu.memory_space<vmem>>, vector<16x512xbf16>,
    %c511_i32_236 = arith.constant 511 : i32
    %312 = tpu.dynamic_rotate %230 by %c511_i32_236 dim 1 : vector<16x512xf32>, i32 -> vector<16x512xf32>
    %c5_237 = arith.constant 5 : index
    %c0_238 = arith.constant 0 : index
    %313 = vector.load %arg2[%c5_237, %c0_238] : memref<9x512xf32, #tpu.memory_space<vmem>>, vector<1x512xf32>
    %314 = vector.broadcast %313 : vector<1x512xf32> to vector<16x512xf32>
    %315 = arith.mulf %312, %314 : vector<16x512xf32>
    %316 = arith.truncf %315 : vector<16x512xf32> to vector<16x512xbf16>
    %c80_239 = arith.constant 80 : index
    %c0_240 = arith.constant 0 : index
    %317 = vector.load %arg17[%c80_239, %c0_240] : memref<144x512xbf16, #tpu.memory_space<vmem>>, vector<16x512xbf16>
    tpu.vector_store %arg17[%c80_239, %c0_240], %316 {strides = array<i32>} : memref<144x512xbf16, #tpu.memory_space<vmem>>, vector<16x512xbf16>,
    %c497_i32_241 = arith.constant 497 : i32
    %318 = tpu.dynamic_rotate %230 by %c497_i32_241 dim 1 : vector<16x512xf32>, i32 -> vector<16x512xf32>
    %c6_242 = arith.constant 6 : index
    %c0_243 = arith.constant 0 : index
    %319 = vector.load %arg2[%c6_242, %c0_243] : memref<9x512xf32, #tpu.memory_space<vmem>>, vector<1x512xf32>
    %320 = vector.broadcast %319 : vector<1x512xf32> to vector<16x512xf32>
    %321 = arith.mulf %318, %320 : vector<16x512xf32>
    %322 = arith.truncf %321 : vector<16x512xf32> to vector<16x512xbf16>
    %c96_244 = arith.constant 96 : index
    %c0_245 = arith.constant 0 : index
    %323 = vector.load %arg17[%c96_244, %c0_245] : memref<144x512xbf16, #tpu.memory_space<vmem>>, vector<16x512xbf16>
    tpu.vector_store %arg17[%c96_244, %c0_245], %322 {strides = array<i32>} : memref<144x512xbf16, #tpu.memory_space<vmem>>, vector<16x512xbf16>,
    %c496_i32_246 = arith.constant 496 : i32
    %324 = tpu.dynamic_rotate %230 by %c496_i32_246 dim 1 : vector<16x512xf32>, i32 -> vector<16x512xf32>
    %c7_247 = arith.constant 7 : index
    %c0_248 = arith.constant 0 : index
    %325 = vector.load %arg2[%c7_247, %c0_248] : memref<9x512xf32, #tpu.memory_space<vmem>>, vector<1x512xf32>
    %326 = vector.broadcast %325 : vector<1x512xf32> to vector<16x512xf32>
    %327 = arith.mulf %324, %326 : vector<16x512xf32>
    %328 = arith.truncf %327 : vector<16x512xf32> to vector<16x512xbf16>
    %c112_249 = arith.constant 112 : index
    %c0_250 = arith.constant 0 : index
    %329 = vector.load %arg17[%c112_249, %c0_250] : memref<144x512xbf16, #tpu.memory_space<vmem>>, vector<16x512xbf16>
    tpu.vector_store %arg17[%c112_249, %c0_250], %328 {strides = array<i32>} : memref<144x512xbf16, #tpu.memory_space<vmem>>, vector<16x512xbf16>,
    %c495_i32_251 = arith.constant 495 : i32
    %330 = tpu.dynamic_rotate %230 by %c495_i32_251 dim 1 : vector<16x512xf32>, i32 -> vector<16x512xf32>
    %c8_252 = arith.constant 8 : index
    %c0_253 = arith.constant 0 : index
    %331 = vector.load %arg2[%c8_252, %c0_253] : memref<9x512xf32, #tpu.memory_space<vmem>>, vector<1x512xf32>
    %332 = vector.broadcast %331 : vector<1x512xf32> to vector<16x512xf32>
    %333 = arith.mulf %330, %332 : vector<16x512xf32>
    %334 = arith.truncf %333 : vector<16x512xf32> to vector<16x512xbf16>
    %c128_254 = arith.constant 128 : index
    %c0_255 = arith.constant 0 : index
    %335 = vector.load %arg17[%c128_254, %c0_255] : memref<144x512xbf16, #tpu.memory_space<vmem>>, vector<16x512xbf16>
    tpu.vector_store %arg17[%c128_254, %c0_255], %334 {strides = array<i32>} : memref<144x512xbf16, #tpu.memory_space<vmem>>, vector<16x512xbf16>,
    %c0_256 = arith.constant 0 : index
    %c0_257 = arith.constant 0 : index
    %336 = vector.load %arg10[%c0_256, %c0_257] : memref<8x144xbf16, #tpu.memory_space<vmem>>, vector<8x144xbf16>
    %c0_258 = arith.constant 0 : index
    %c0_259 = arith.constant 0 : index
    %337 = vector.load %arg17[%c0_258, %c0_259] : memref<144x512xbf16, #tpu.memory_space<vmem>>, vector<144x512xbf16>
    %cst_260 = arith.constant dense<0.000000e+00> : vector<8x512xf32>
    %338 = tpu.matmul %336, %337, %cst_260 {dimension_numbers = #tpu.dot_dimension_numbers<[1], [0], [0], [1], [0, 0, 1, 1], [], []>} : vector<8x144xbf16>, vector<144x512xbf16>, vector<8x512xf32> -> vector<8x512xf32>
    %339 = arith.addf %338, %285 : vector<8x512xf32>
    %c0_261 = arith.constant 0 : index
    %c0_262 = arith.constant 0 : index
    %340 = vector.load %arg12[%c0_261, %c0_262] : memref<8x1xf32, #tpu.memory_space<vmem>>, vector<8x1xf32>
    %341 = vector.broadcast %340 : vector<8x1xf32> to vector<8x512xf32>
    %342 = arith.addf %339, %341 : vector<8x512xf32>
    %c0_263 = arith.constant 0 : index
    %c0_264 = arith.constant 0 : index
    %343 = vector.load %arg13[%c0_263, %c0_264] : memref<8x512xf32, #tpu.memory_space<vmem>>, vector<8x512xf32>
    tpu.vector_store %arg13[%c0_263, %c0_264], %118 {strides = array<i32>} : memref<8x512xf32, #tpu.memory_space<vmem>>, vector<8x512xf32>,
    %c0_265 = arith.constant 0 : index
    %c0_266 = arith.constant 0 : index
    %344 = vector.load %arg14[%c0_265, %c0_266] : memref<8x512xf32, #tpu.memory_space<vmem>>, vector<8x512xf32>
    tpu.vector_store %arg14[%c0_265, %c0_266], %232 {strides = array<i32>} : memref<8x512xf32, #tpu.memory_space<vmem>>, vector<8x512xf32>,
    %c0_267 = arith.constant 0 : index
    %c0_268 = arith.constant 0 : index
    %345 = vector.load %arg15[%c0_267, %c0_268] : memref<8x512xf32, #tpu.memory_space<vmem>>, vector<8x512xf32>
    tpu.vector_store %arg15[%c0_267, %c0_268], %342 {strides = array<i32>} : memref<8x512xf32, #tpu.memory_space<vmem>>, vector<8x512xf32>,
    return
  }
  func.func @transform_0(%arg0: i32) -> (i32, i32) {
    %c0_i32 = arith.constant 0 : i32
    %c0_i32_0 = arith.constant 0 : i32
    return %c0_i32, %arg0 : i32, i32
  }
  func.func @transform_1(%arg0: i32) -> (i32, i32) {
    %c0_i32 = arith.constant 0 : i32
    %c0_i32_0 = arith.constant 0 : i32
    %c0_i32_1 = arith.constant 0 : i32
    return %c0_i32, %c0_i32_0 : i32, i32
  }
  func.func @transform_2(%arg0: i32) -> (i32, i32) {
    %c0_i32 = arith.constant 0 : i32
    %c0_i32_0 = arith.constant 0 : i32
    %c0_i32_1 = arith.constant 0 : i32
    return %c0_i32, %c0_i32_0 : i32, i32
  }
  func.func @transform_3(%arg0: i32) -> (i32, i32) {
    %c0_i32 = arith.constant 0 : i32
    %c0_i32_0 = arith.constant 0 : i32
    %c0_i32_1 = arith.constant 0 : i32
    return %c0_i32, %c0_i32_0 : i32, i32
  }
  func.func @transform_4(%arg0: i32) -> (i32, i32) {
    %c0_i32 = arith.constant 0 : i32
    %c0_i32_0 = arith.constant 0 : i32
    %c0_i32_1 = arith.constant 0 : i32
    return %c0_i32, %c0_i32_0 : i32, i32
  }
  func.func @transform_5(%arg0: i32) -> (i32, i32) {
    %c0_i32 = arith.constant 0 : i32
    %c0_i32_0 = arith.constant 0 : i32
    %c0_i32_1 = arith.constant 0 : i32
    return %c0_i32, %c0_i32_0 : i32, i32
  }
  func.func @transform_6(%arg0: i32) -> (i32, i32) {
    %c0_i32 = arith.constant 0 : i32
    %c0_i32_0 = arith.constant 0 : i32
    %c0_i32_1 = arith.constant 0 : i32
    return %c0_i32, %c0_i32_0 : i32, i32
  }
  func.func @transform_7(%arg0: i32) -> (i32, i32) {
    %c0_i32 = arith.constant 0 : i32
    %c0_i32_0 = arith.constant 0 : i32
    %c0_i32_1 = arith.constant 0 : i32
    return %c0_i32, %c0_i32_0 : i32, i32
  }
  func.func @transform_8(%arg0: i32) -> (i32, i32) {
    %c0_i32 = arith.constant 0 : i32
    %c0_i32_0 = arith.constant 0 : i32
    %c0_i32_1 = arith.constant 0 : i32
    return %c0_i32, %c0_i32_0 : i32, i32
  }
  func.func @transform_9(%arg0: i32) -> (i32, i32) {
    %c0_i32 = arith.constant 0 : i32
    %c0_i32_0 = arith.constant 0 : i32
    %c0_i32_1 = arith.constant 0 : i32
    return %c0_i32, %c0_i32_0 : i32, i32
  }
  func.func @transform_10(%arg0: i32) -> (i32, i32) {
    %c0_i32 = arith.constant 0 : i32
    %c0_i32_0 = arith.constant 0 : i32
    %c0_i32_1 = arith.constant 0 : i32
    return %c0_i32, %c0_i32_0 : i32, i32
  }
  func.func @transform_11(%arg0: i32) -> (i32, i32) {
    %c0_i32 = arith.constant 0 : i32
    %c0_i32_0 = arith.constant 0 : i32
    %c0_i32_1 = arith.constant 0 : i32
    return %c0_i32, %c0_i32_0 : i32, i32
  }
  func.func @transform_12(%arg0: i32) -> (i32, i32) {
    %c0_i32 = arith.constant 0 : i32
    %c0_i32_0 = arith.constant 0 : i32
    return %c0_i32, %arg0 : i32, i32
  }
  func.func @transform_13(%arg0: i32) -> (i32, i32) {
    %c0_i32 = arith.constant 0 : i32
    %c0_i32_0 = arith.constant 0 : i32
    return %c0_i32, %arg0 : i32, i32
  }
  func.func @transform_14(%arg0: i32) -> (i32, i32) {
    %c0_i32 = arith.constant 0 : i32
    %c0_i32_0 = arith.constant 0 : i32
    return %c0_i32, %arg0 : i32, i32
  }
}

</mosaic_0001>

<llo_original>
// kernel: msrnet_forward.1
$region0: #{msrnet_forward.1}
  #allocation0 [shape = 'u32[]', space=smem, size = 0x4, offset = 0x4, fixed_abs, tag = 'smem constant byte address 0x4 - core index']
  #allocation1 [shape = 'u32[144,128]{1,0:T(1,128)}', space=vmem, size = 0x12000, scoped, tag = 'internal scratch']
  #allocation2 [shape = 'bf16[36,512]{1,0:T(8,128)(2,1)}', space=vmem, size = 0xa000, scoped, tag = 'scratch operand']
  #allocation3 [shape = 'bf16[144,512]{1,0:T(16,128)(2,1)}', space=vmem, size = 0x24000, scoped, tag = 'scratch operand']
  #allocation4 [shape = 'bf16[72,512]{1,0:T(8,128)(2,1)}', space=vmem, size = 0x12000, scoped, tag = 'scratch operand']
  %s0 = inlined_call_operand.vmem [shape: f32[4,512], index: 0, kind: input, shape index: {}]
  %s1 = inlined_call_operand.vmem [shape: f32[9,512], index: 1, kind: input, shape index: {}]
  %s2 = inlined_call_operand.vmem [shape: bf16[16,36], index: 2, kind: input, shape index: {}]
  %s3 = inlined_call_operand.vmem [shape: f32[16,1], index: 3, kind: input, shape index: {}]
  %s4 = inlined_call_operand.vmem [shape: bf16[24,144], index: 4, kind: input, shape index: {}]
  %s5 = inlined_call_operand.vmem [shape: f32[24,1], index: 5, kind: input, shape index: {}]
  %s6 = inlined_call_operand.vmem [shape: bf16[24,144], index: 6, kind: input, shape index: {}]
  %s7 = inlined_call_operand.vmem [shape: f32[24,1], index: 7, kind: input, shape index: {}]
  %s8 = inlined_call_operand.vmem [shape: bf16[8,72], index: 8, kind: input, shape index: {}]
  %s9 = inlined_call_operand.vmem [shape: bf16[8,144], index: 9, kind: input, shape index: {}]
  %s10 = inlined_call_operand.vmem [shape: bf16[8,72], index: 10, kind: input, shape index: {}]
  %s11 = inlined_call_operand.vmem [shape: f32[8,1], index: 11, kind: input, shape index: {}]
  %s12 = inlined_call_operand.vmem [shape: f32[8,512], index: 12, kind: output, shape index: {0}]
  %s13 = inlined_call_operand.vmem [shape: f32[8,512], index: 13, kind: output, shape index: {1}]
  %s14 = inlined_call_operand.vmem [shape: f32[8,512], index: 14, kind: output, shape index: {2}]
  %15 = xla_tuple %s12, %s13, %s14
  %s16 = sld [smem:[#allocation0]]
  $region74: #{msrnet_forward.1} parent=0
    _
  %s18 = ssub.s32 1, %s16
  %s19 = scalar_select 0, %s18, %s16
  // Predicated region
  $region2: #{msrnet_forward.1} parent=0 // pred_check
    _
  $region3: #{msrnet_forward.1} parent=0 // pred_check_branch
    %21 = sbr.rel (0) target = $region5
  $region4: #{msrnet_forward.1} parent=0 // pred_region
    _
  $region5: #{msrnet_forward.1} parent=0 // pred_fallthru
    _
  // Predicated region
  $region6: #{msrnet_forward.1} parent=0 // pred_check
    _
  $region7: #{msrnet_forward.1} parent=0 // pred_check_branch
    %23 = sbr.rel (0) target = $region9
  $region8: #{msrnet_forward.1} parent=0 // pred_region
    _
  $region9: #{msrnet_forward.1} parent=0 // pred_fallthru
    _
  // Predicated region
  $region10: #{msrnet_forward.1} parent=0 // pred_check
    _
  $region11: #{msrnet_forward.1} parent=0 // pred_check_branch
    %25 = sbr.rel (0) target = $region13
  $region12: #{msrnet_forward.1} parent=0 // pred_region
    _
  $region13: #{msrnet_forward.1} parent=0 // pred_fallthru
    _
  // Predicated region
  $region14: #{msrnet_forward.1} parent=0 // pred_check
    _
  $region15: #{msrnet_forward.1} parent=0 // pred_check_branch
    %27 = sbr.rel (0) target = $region17
  $region16: #{msrnet_forward.1} parent=0 // pred_region
    _
  $region17: #{msrnet_forward.1} parent=0 // pred_fallthru
    _
  // Predicated region
  $region18: #{msrnet_forward.1} parent=0 // pred_check
    _
  $region19: #{msrnet_forward.1} parent=0 // pred_check_branch
    %29 = sbr.rel (0) target = $region21
  $region20: #{msrnet_forward.1} parent=0 // pred_region
    _
  $region21: #{msrnet_forward.1} parent=0 // pred_fallthru
    _
  // Predicated region
  $region22: #{msrnet_forward.1} parent=0 // pred_check
    _
  $region23: #{msrnet_forward.1} parent=0 // pred_check_branch
    %31 = sbr.rel (0) target = $region25
  $region24: #{msrnet_forward.1} parent=0 // pred_region
    _
  $region25: #{msrnet_forward.1} parent=0 // pred_fallthru
    _
  // Predicated region
  $region26: #{msrnet_forward.1} parent=0 // pred_check
    _
  $region27: #{msrnet_forward.1} parent=0 // pred_check_branch
    %33 = sbr.rel (0) target = $region29
  $region28: #{msrnet_forward.1} parent=0 // pred_region
    _
  $region29: #{msrnet_forward.1} parent=0 // pred_fallthru
    _
  // Predicated region
  $region30: #{msrnet_forward.1} parent=0 // pred_check
    _
  $region31: #{msrnet_forward.1} parent=0 // pred_check_branch
    %35 = sbr.rel (0) target = $region33
  $region32: #{msrnet_forward.1} parent=0 // pred_region
    _
  $region33: #{msrnet_forward.1} parent=0 // pred_fallthru
    _
  // Predicated region
  $region34: #{msrnet_forward.1} parent=0 // pred_check
    _
  $region35: #{msrnet_forward.1} parent=0 // pred_check_branch
    %37 = sbr.rel (0) target = $region37
  $region36: #{msrnet_forward.1} parent=0 // pred_region
    _
  $region37: #{msrnet_forward.1} parent=0 // pred_fallthru
    _
  // Predicated region
  $region38: #{msrnet_forward.1} parent=0 // pred_check
    _
  $region39: #{msrnet_forward.1} parent=0 // pred_check_branch
    %39 = sbr.rel (0) target = $region41
  $region40: #{msrnet_forward.1} parent=0 // pred_region
    _
  $region41: #{msrnet_forward.1} parent=0 // pred_fallthru
    _
  // Predicated region
  $region42: #{msrnet_forward.1} parent=0 // pred_check
    _
  $region43: #{msrnet_forward.1} parent=0 // pred_check_branch
    %41 = sbr.rel (0) target = $region45
  $region44: #{msrnet_forward.1} parent=0 // pred_region
    _
  $region45: #{msrnet_forward.1} parent=0 // pred_fallthru
    _
  // Predicated region
  $region46: #{msrnet_forward.1} parent=0 // pred_check
    _
  $region47: #{msrnet_forward.1} parent=0 // pred_check_branch
    %43 = sbr.rel (0) target = $region49
  $region48: #{msrnet_forward.1} parent=0 // pred_region
    _
  $region49: #{msrnet_forward.1} parent=0 // pred_fallthru
    _
  %v45 = vld [vmem:[%s0] sm:$0xff]
  %v46 = vld [vmem:[%s0 + $0x8] sm:$0xff]
  %v49 = vcombine.high %v45, %v45
  %v50 = vcombine.high %v46, %v46
  %53 = vrot.lane.b32.xlu0 %v45, 17
  %v54 = vpop.permute.xlu0 %53
  %55 = vrot.lane.b32.xlu0 %v49, 17
  %v56 = vpop.permute.xlu0 %55
  %57 = vrot.lane.b32.xlu0 %v46, 17
  %v58 = vpop.permute.xlu0 %57
  %59 = vrot.lane.b32.xlu0 %v50, 17
  %v60 = vpop.permute.xlu0 %59
  %v61 = vlaneseq
  %v62 = vand.u32 %v61, 127
  %vm63 = vcmp.lt.s32.totalorder %v62, 17
  %v64 = vsel %vm63, %v58, %v60
  %v65 = vsel %vm63, %v56, %v58
  %v66 = vsel %vm63, %v54, %v56
  %v67 = vsel %vm63, %v60, %v54
  %v68 = vld [vmem:[%s1] ss:$8 sm:$0xf]
  %v70 = vlaneseq
  %v71 = vshrl.u32 %v70, 7
  %v72 = vsub.s32 0, %v71
  %v73 = vrot.slane %v68, %v72
  %v74 = vlaneseq
  %v75 = vshrl.u32 %v74, 7
  %v76 = vsub.s32 1, %v75
  %v77 = vrot.slane %v68, %v76
  %v78 = vlaneseq
  %v79 = vshrl.u32 %v78, 7
  %v80 = vsub.s32 2, %v79
  %v81 = vrot.slane %v68, %v80
  %v82 = vlaneseq
  %v83 = vshrl.u32 %v82, 7
  %v84 = vsub.s32 3, %v83
  %v85 = vrot.slane %v68, %v84
  %v90 = vmul.f32 %v67, %v73
  %v91 = vmul.f32 %v66, %v77
  %v92 = vmul.f32 %v65, %v81
  %v93 = vmul.f32 %v64, %v85
  %v94 = vpack.c.bf16 %v90, %v90
  %v95 = vpack.c.bf16 %v91, %v91
  %v96 = vpack.c.bf16 %v92, %v92
  %v97 = vpack.c.bf16 %v93, %v93
  %v102 = vunpack.c.l.b16 %v94
  %v103 = vunpack.c.l.b16 %v95
  %v104 = vunpack.c.l.b16 %v96
  %v105 = vunpack.c.l.b16 %v97
  %v106 = vpack.c.b16 %v103, %v102
  %v107 = vpack.c.b16 %v105, %v104
  %110 = vst [vmem:[#allocation2] sm:$0x33] %v106
  %111 = vst [vmem:[#allocation2 + $0x8] sm:$0x33] %v107
  %112 = vrot.lane.b32.xlu0 %v45, 16
  %v113 = vpop.permute.xlu0 %112
  %114 = vrot.lane.b32.xlu0 %v49, 16
  %v115 = vpop.permute.xlu0 %114
  %116 = vrot.lane.b32.xlu0 %v46, 16
  %v117 = vpop.permute.xlu0 %116
  %118 = vrot.lane.b32.xlu0 %v50, 16
  %v119 = vpop.permute.xlu0 %118
  %vm120 = vcmp.lt.s32.totalorder %v62, 16
  %v121 = vsel %vm120, %v117, %v119
  %v122 = vsel %vm120, %v115, %v117
  %v123 = vsel %vm120, %v113, %v115
  %v124 = vsel %vm120, %v119, %v113
  %s125 = scalar_lea.vmem %s1, 1
  %v126 = vld [vmem:[%s125] ss:$8 sm:$0xf]
  %v128 = vlaneseq
  %v129 = vshrl.u32 %v128, 7
  %v130 = vsub.s32 0, %v129
  %v131 = vrot.slane %v126, %v130
  %v132 = vlaneseq
  %v133 = vshrl.u32 %v132, 7
  %v134 = vsub.s32 1, %v133
  %v135 = vrot.slane %v126, %v134
  %v136 = vlaneseq
  %v137 = vshrl.u32 %v136, 7
  %v138 = vsub.s32 2, %v137
  %v139 = vrot.slane %v126, %v138
  %v140 = vlaneseq
  %v141 = vshrl.u32 %v140, 7
  %v142 = vsub.s32 3, %v141
  %v143 = vrot.slane %v126, %v142
  %v148 = vmul.f32 %v124, %v131
  %v149 = vmul.f32 %v123, %v135
  %v150 = vmul.f32 %v122, %v139
  %v151 = vmul.f32 %v121, %v143
  %v152 = vpack.c.bf16 %v148, %v148
  %v153 = vpack.c.bf16 %v149, %v149
  %v154 = vpack.c.bf16 %v150, %v150
  %v155 = vpack.c.bf16 %v151, %v151
  %v160 = vunpack.c.l.b16 %v152
  %v161 = vunpack.c.l.b16 %v153
  %v162 = vunpack.c.l.b16 %v154
  %v163 = vunpack.c.l.b16 %v155
  %v164 = vpack.c.b16 %v161, %v160
  %v165 = vpack.c.b16 %v163, %v162
  %v166 = vrot.slane %v164, 6
  %v167 = vrot.slane %v165, 6
  %170 = vst [vmem:[#allocation2] sm:$0xcc] %v166
  %171 = vst [vmem:[#allocation2 + $0x8] sm:$0xcc] %v167
  %172 = vrot.lane.b32.xlu0 %v45, 15
  %v173 = vpop.permute.xlu0 %172
  %174 = vrot.lane.b32.xlu0 %v49, 15
  %v175 = vpop.permute.xlu0 %174
  %176 = vrot.lane.b32.xlu0 %v46, 15
  %v177 = vpop.permute.xlu0 %176
  %178 = vrot.lane.b32.xlu0 %v50, 15
  %v179 = vpop.permute.xlu0 %178
  %vm180 = vcmp.lt.s32.totalorder %v62, 15
  %v181 = vsel %vm180, %v177, %v179
  %v182 = vsel %vm180, %v175, %v177
  %v183 = vsel %vm180, %v173, %v175
  %v184 = vsel %vm180, %v179, %v173
  %s185 = scalar_lea.vmem %s1, 2
  %v186 = vld [vmem:[%s185] ss:$8 sm:$0xf]
  %v188 = vlaneseq
  %v189 = vshrl.u32 %v188, 7
  %v190 = vsub.s32 0, %v189
  %v191 = vrot.slane %v186, %v190
  %v192 = vlaneseq
  %v193 = vshrl.u32 %v192, 7
  %v194 = vsub.s32 1, %v193
  %v195 = vrot.slane %v186, %v194
  %v196 = vlaneseq
  %v197 = vshrl.u32 %v196, 7
  %v198 = vsub.s32 2, %v197
  %v199 = vrot.slane %v186, %v198
  %v200 = vlaneseq
  %v201 = vshrl.u32 %v200, 7
  %v202 = vsub.s32 3, %v201
  %v203 = vrot.slane %v186, %v202
  %v208 = vmul.f32 %v184, %v191
  %v209 = vmul.f32 %v183, %v195
  %v210 = vmul.f32 %v182, %v199
  %v211 = vmul.f32 %v181, %v203
  %v212 = vpack.c.bf16 %v208, %v208
  %v213 = vpack.c.bf16 %v209, %v209
  %v214 = vpack.c.bf16 %v210, %v210
  %v215 = vpack.c.bf16 %v211, %v211
  %v220 = vunpack.c.l.b16 %v212
  %v221 = vunpack.c.l.b16 %v213
  %v222 = vunpack.c.l.b16 %v214
  %v223 = vunpack.c.l.b16 %v215
  %v224 = vpack.c.b16 %v221, %v220
  %v225 = vpack.c.b16 %v223, %v222
  %228 = vst [vmem:[#allocation2 + $0x10] sm:$0x33] %v224
  %229 = vst [vmem:[#allocation2 + $0x18] sm:$0x33] %v225
  %230 = vrot.lane.b32.xlu0 %v45, 1
  %v231 = vpop.permute.xlu0 %230
  %232 = vrot.lane.b32.xlu0 %v49, 1
  %v233 = vpop.permute.xlu0 %232
  %234 = vrot.lane.b32.xlu0 %v46, 1
  %v235 = vpop.permute.xlu0 %234
  %236 = vrot.lane.b32.xlu0 %v50, 1
  %v237 = vpop.permute.xlu0 %236
  %vm238 = vcmp.lt.s32.totalorder %v62, 1
  %v239 = vsel %vm238, %v235, %v237
  %v240 = vsel %vm238, %v233, %v235
  %v241 = vsel %vm238, %v231, %v233
  %v242 = vsel %vm238, %v237, %v231
  %s243 = scalar_lea.vmem %s1, 3
  %v244 = vld [vmem:[%s243] ss:$8 sm:$0xf]
  %v246 = vlaneseq
  %v247 = vshrl.u32 %v246, 7
  %v248 = vsub.s32 0, %v247
  %v249 = vrot.slane %v244, %v248
  %v250 = vlaneseq
  %v251 = vshrl.u32 %v250, 7
  %v252 = vsub.s32 1, %v251
  %v253 = vrot.slane %v244, %v252
  %v254 = vlaneseq
  %v255 = vshrl.u32 %v254, 7
  %v256 = vsub.s32 2, %v255
  %v257 = vrot.slane %v244, %v256
  %v258 = vlaneseq
  %v259 = vshrl.u32 %v258, 7
  %v260 = vsub.s32 3, %v259
  %v261 = vrot.slane %v244, %v260
  %v266 = vmul.f32 %v242, %v249
  %v267 = vmul.f32 %v241, %v253
  %v268 = vmul.f32 %v240, %v257
  %v269 = vmul.f32 %v239, %v261
  %v270 = vpack.c.bf16 %v266, %v266
  %v271 = vpack.c.bf16 %v267, %v267
  %v272 = vpack.c.bf16 %v268, %v268
  %v273 = vpack.c.bf16 %v269, %v269
  %v278 = vunpack.c.l.b16 %v270
  %v279 = vunpack.c.l.b16 %v271
  %v280 = vunpack.c.l.b16 %v272
  %v281 = vunpack.c.l.b16 %v273
  %v282 = vpack.c.b16 %v279, %v278
  %v283 = vpack.c.b16 %v281, %v280
  %v284 = vrot.slane %v282, 6
  %v285 = vrot.slane %v283, 6
  %288 = vst [vmem:[#allocation2 + $0x10] sm:$0xcc] %v284
  %289 = vst [vmem:[#allocation2 + $0x18] sm:$0xcc] %v285
  %v290 = vpack.c.bf16 %v45, %v45
  %v291 = vpack.c.bf16 %v49, %v49
  %v292 = vpack.c.bf16 %v46, %v46
  %v293 = vpack.c.bf16 %v50, %v50
  %v298 = vunpack.c.l.b16 %v290
  %v299 = vunpack.c.l.b16 %v291
  %v300 = vunpack.c.l.b16 %v292
  %v301 = vunpack.c.l.b16 %v293
  %v302 = vpack.c.b16 %v299, %v298
  %v303 = vpack.c.b16 %v301, %v300
  %306 = vst [vmem:[#allocation2 + $0x20] sm:$0x33] %v302
  %307 = vst [vmem:[#allocation2 + $0x28] sm:$0x33] %v303
  %308 = vrot.lane.b32.xlu0 %v45, 127
  %v309 = vpop.permute.xlu0 %308
  %310 = vrot.lane.b32.xlu0 %v49, 127
  %v311 = vpop.permute.xlu0 %310
  %312 = vrot.lane.b32.xlu0 %v46, 127
  %v313 = vpop.permute.xlu0 %312
  %314 = vrot.lane.b32.xlu0 %v50, 127
  %v315 = vpop.permute.xlu0 %314
  %vm316 = vcmp.lt.s32.totalorder %v62, 127
  %v317 = vsel %vm316, %v313, %v315
  %v318 = vsel %vm316, %v311, %v313
  %v319 = vsel %vm316, %v309, %v311
  %v320 = vsel %vm316, %v315, %v309
  %s321 = scalar_lea.vmem %s1, 5
  %v322 = vld [vmem:[%s321] ss:$8 sm:$0xf]
  %v324 = vlaneseq
  %v325 = vshrl.u32 %v324, 7
  %v326 = vsub.s32 0, %v325
  %v327 = vrot.slane %v322, %v326
  %v328 = vlaneseq
  %v329 = vshrl.u32 %v328, 7
  %v330 = vsub.s32 1, %v329
  %v331 = vrot.slane %v322, %v330
  %v332 = vlaneseq
  %v333 = vshrl.u32 %v332, 7
  %v334 = vsub.s32 2, %v333
  %v335 = vrot.slane %v322, %v334
  %v336 = vlaneseq
  %v337 = vshrl.u32 %v336, 7
  %v338 = vsub.s32 3, %v337
  %v339 = vrot.slane %v322, %v338
  %v344 = vmul.f32 %v319, %v327
  %v345 = vmul.f32 %v318, %v331
  %v346 = vmul.f32 %v317, %v335
  %v347 = vmul.f32 %v320, %v339
  %v348 = vpack.c.bf16 %v344, %v344
  %v349 = vpack.c.bf16 %v345, %v345
  %v350 = vpack.c.bf16 %v346, %v346
  %v351 = vpack.c.bf16 %v347, %v347
  %v356 = vunpack.c.l.b16 %v348
  %v357 = vunpack.c.l.b16 %v349
  %v358 = vunpack.c.l.b16 %v350
  %v359 = vunpack.c.l.b16 %v351
  %v360 = vpack.c.b16 %v357, %v356
  %v361 = vpack.c.b16 %v359, %v358
  %v362 = vrot.slane %v360, 6
  %v363 = vrot.slane %v361, 6
  %366 = vst [vmem:[#allocation2 + $0x20] sm:$0xcc] %v362
  %367 = vst [vmem:[#allocation2 + $0x28] sm:$0xcc] %v363
  %368 = vrot.lane.b32.xlu0 %v45, 113
  %v369 = vpop.permute.xlu0 %368
  %370 = vrot.lane.b32.xlu0 %v49, 113
  %v371 = vpop.permute.xlu0 %370
  %372 = vrot.lane.b32.xlu0 %v46, 113
  %v373 = vpop.permute.xlu0 %372
  %374 = vrot.lane.b32.xlu0 %v50, 113
  %v375 = vpop.permute.xlu0 %374
  %vm376 = vcmp.lt.s32.totalorder %v62, 113
  %v377 = vsel %vm376, %v373, %v375
  %v378 = vsel %vm376, %v371, %v373
  %v379 = vsel %vm376, %v369, %v371
  %v380 = vsel %vm376, %v375, %v369
  %s381 = scalar_lea.vmem %s1, 6
  %v382 = vld [vmem:[%s381] ss:$8 sm:$0xf]
  %v384 = vlaneseq
  %v385 = vshrl.u32 %v384, 7
  %v386 = vsub.s32 0, %v385
  %v387 = vrot.slane %v382, %v386
  %v388 = vlaneseq
  %v389 = vshrl.u32 %v388, 7
  %v390 = vsub.s32 1, %v389
  %v391 = vrot.slane %v382, %v390
  %v392 = vlaneseq
  %v393 = vshrl.u32 %v392, 7
  %v394 = vsub.s32 2, %v393
  %v395 = vrot.slane %v382, %v394
  %v396 = vlaneseq
  %v397 = vshrl.u32 %v396, 7
  %v398 = vsub.s32 3, %v397
  %v399 = vrot.slane %v382, %v398
  %v404 = vmul.f32 %v379, %v387
  %v405 = vmul.f32 %v378, %v391
  %v406 = vmul.f32 %v377, %v395
  %v407 = vmul.f32 %v380, %v399
  %v408 = vpack.c.bf16 %v404, %v404
  %v409 = vpack.c.bf16 %v405, %v405
  %v410 = vpack.c.bf16 %v406, %v406
  %v411 = vpack.c.bf16 %v407, %v407
  %v416 = vunpack.c.l.b16 %v408
  %v417 = vunpack.c.l.b16 %v409
  %v418 = vunpack.c.l.b16 %v410
  %v419 = vunpack.c.l.b16 %v411
  %v420 = vpack.c.b16 %v417, %v416
  %v421 = vpack.c.b16 %v419, %v418
  %424 = vst [vmem:[#allocation2 + $0x30] sm:$0x33] %v420
  %425 = vst [vmem:[#allocation2 + $0x38] sm:$0x33] %v421
  %426 = vrot.lane.b32.xlu0 %v45, 112
  %v427 = vpop.permute.xlu0 %426
  %428 = vrot.lane.b32.xlu0 %v49, 112
  %v429 = vpop.permute.xlu0 %428
  %430 = vrot.lane.b32.xlu0 %v46, 112
  %v431 = vpop.permute.xlu0 %430
  %432 = vrot.lane.b32.xlu0 %v50, 112
  %v433 = vpop.permute.xlu0 %432
  %vm434 = vcmp.lt.s32.totalorder %v62, 112
  %v435 = vsel %vm434, %v431, %v433
  %v436 = vsel %vm434, %v429, %v431
  %v437 = vsel %vm434, %v427, %v429
  %v438 = vsel %vm434, %v433, %v427
  %s439 = scalar_lea.vmem %s1, 7
  %v440 = vld [vmem:[%s439] ss:$8 sm:$0xf]
  %v442 = vlaneseq
  %v443 = vshrl.u32 %v442, 7
  %v444 = vsub.s32 0, %v443
  %v445 = vrot.slane %v440, %v444
  %v446 = vlaneseq
  %v447 = vshrl.u32 %v446, 7
  %v448 = vsub.s32 1, %v447
  %v449 = vrot.slane %v440, %v448
  %v450 = vlaneseq
  %v451 = vshrl.u32 %v450, 7
  %v452 = vsub.s32 2, %v451
  %v453 = vrot.slane %v440, %v452
  %v454 = vlaneseq
  %v455 = vshrl.u32 %v454, 7
  %v456 = vsub.s32 3, %v455
  %v457 = vrot.slane %v440, %v456
  %v462 = vmul.f32 %v437, %v445
  %v463 = vmul.f32 %v436, %v449
  %v464 = vmul.f32 %v435, %v453
  %v465 = vmul.f32 %v438, %v457
  %v466 = vpack.c.bf16 %v462, %v462
  %v467 = vpack.c.bf16 %v463, %v463
  %v468 = vpack.c.bf16 %v464, %v464
  %v469 = vpack.c.bf16 %v465, %v465
  %v474 = vunpack.c.l.b16 %v466
  %v475 = vunpack.c.l.b16 %v467
  %v476 = vunpack.c.l.b16 %v468
  %v477 = vunpack.c.l.b16 %v469
  %v478 = vpack.c.b16 %v475, %v474
  %v479 = vpack.c.b16 %v477, %v476
  %v480 = vrot.slane %v478, 6
  %v481 = vrot.slane %v479, 6
  %484 = vst [vmem:[#allocation2 + $0x30] sm:$0xcc] %v480
  %485 = vst [vmem:[#allocation2 + $0x38] sm:$0xcc] %v481
  %486 = vrot.lane.b32.xlu0 %v45, 111
  %v487 = vpop.permute.xlu0 %486
  %488 = vrot.lane.b32.xlu0 %v49, 111
  %v489 = vpop.permute.xlu0 %488
  %490 = vrot.lane.b32.xlu0 %v46, 111
  %v491 = vpop.permute.xlu0 %490
  %492 = vrot.lane.b32.xlu0 %v50, 111
  %v493 = vpop.permute.xlu0 %492
  %vm494 = vcmp.lt.s32.totalorder %v62, 111
  %v495 = vsel %vm494, %v491, %v493
  %v496 = vsel %vm494, %v489, %v491
  %v497 = vsel %vm494, %v487, %v489
  %v498 = vsel %vm494, %v493, %v487
  %s499 = scalar_lea.vmem %s1, 32
  %v500 = vld [vmem:[%s499] ss:$8 sm:$0xf]
  %v502 = vlaneseq
  %v503 = vshrl.u32 %v502, 7
  %v504 = vsub.s32 0, %v503
  %v505 = vrot.slane %v500, %v504
  %v506 = vlaneseq
  %v507 = vshrl.u32 %v506, 7
  %v508 = vsub.s32 1, %v507
  %v509 = vrot.slane %v500, %v508
  %v510 = vlaneseq
  %v511 = vshrl.u32 %v510, 7
  %v512 = vsub.s32 2, %v511
  %v513 = vrot.slane %v500, %v512
  %v514 = vlaneseq
  %v515 = vshrl.u32 %v514, 7
  %v516 = vsub.s32 3, %v515
  %v517 = vrot.slane %v500, %v516
  %v522 = vmul.f32 %v497, %v505
  %v523 = vmul.f32 %v496, %v509
  %v524 = vmul.f32 %v495, %v513
  %v525 = vmul.f32 %v498, %v517
  %v526 = vpack.c.bf16 %v522, %v522
  %v527 = vpack.c.bf16 %v523, %v523
  %v528 = vpack.c.bf16 %v524, %v524
  %v529 = vpack.c.bf16 %v525, %v525
  %v534 = vunpack.c.l.b16 %v526
  %v535 = vunpack.c.l.b16 %v527
  %v536 = vunpack.c.l.b16 %v528
  %v537 = vunpack.c.l.b16 %v529
  %v538 = vpack.c.b16 %v535, %v534
  %v539 = vpack.c.b16 %v537, %v536
  %542 = vst [vmem:[#allocation2 + $0x40] sm:$0x33] %v538
  %543 = vst [vmem:[#allocation2 + $0x48] sm:$0x33] %v539
  %v544 = vld [vmem:[%s2] sm:$0xf]
  %v545 = vld [vmem:[%s2 + $0x4] sm:$0xf]
  %v546 = vld [vmem:[#allocation2] sm:$0xff]
  %v547 = vld [vmem:[#allocation2 + $0x8] sm:$0xff]
  %v548 = vld [vmem:[#allocation2 + $0x10] sm:$0xff]
  %v549 = vld [vmem:[#allocation2 + $0x18] sm:$0xff]
  %v550 = vld [vmem:[#allocation2 + $0x20] sm:$0xff]
  %v551 = vld [vmem:[#allocation2 + $0x28] sm:$0xff]
  %v552 = vld [vmem:[#allocation2 + $0x30] sm:$0xff]
  %v553 = vld [vmem:[#allocation2 + $0x38] sm:$0xff]
  %v554 = vld [vmem:[#allocation2 + $0x40] sm:$0x33]
  %v555 = vld [vmem:[#allocation2 + $0x48] sm:$0x33]
  %v556 = vld [vmem:[%s3] sm:$0xff]
  %v557 = vld [vmem:[%s3 + $0x8] sm:$0xff]
  %559 = vset.pattern.permute.xlu0 0
  %560 = vperm.xlu0 %559, %v556
  %v561 = vpop.permute.xlu0 %560
  %564 = vset.pattern.permute.xlu0 0
  %565 = vperm.xlu0 %564, %v557
  %v566 = vpop.permute.xlu0 %565
  %v570 = vunpack.c.l.b16 %v544
  %v571 = vunpack.c.l.b16 %v545
  %v572 = vpack.c.b16 %v571, %v570
  %v583 = vunpack.c.l.b16 %v546
  %v584 = vunpack.c.h.b16 %v546
  %v585 = vunpack.c.l.b16 %v547
  %v586 = vunpack.c.h.b16 %v547
  %v587 = vunpack.c.l.b16 %v548
  %v588 = vunpack.c.h.b16 %v548
  %v589 = vunpack.c.l.b16 %v549
  %v590 = vunpack.c.h.b16 %v549
  %v591 = vunpack.c.l.b16 %v550
  %v592 = vunpack.c.h.b16 %v550
  %v593 = vunpack.c.l.b16 %v551
  %v594 = vunpack.c.h.b16 %v551
  %v595 = vunpack.c.l.b16 %v552
  %v596 = vunpack.c.h.b16 %v552
  %v597 = vunpack.c.l.b16 %v553
  %v598 = vunpack.c.h.b16 %v553
  %v599 = vunpack.c.l.b16 %v554
  %v600 = vunpack.c.h.b16 %v554
  %v601 = vunpack.c.l.b16 %v555
  %v602 = vunpack.c.h.b16 %v555
  %v603 = vpack.c.b16 %v587, %v583
  %v604 = vpack.c.b16 %v588, %v584
  %v605 = vpack.c.b16 %v589, %v585
  %v606 = vpack.c.b16 %v590, %v586
  %v607 = vpack.c.b16 %v595, %v591
  %v608 = vpack.c.b16 %v596, %v592
  %v609 = vpack.c.b16 %v597, %v593
  %v610 = vpack.c.b16 %v598, %v594
  %v611 = vpack.c.b16 %v599, %v599
  %v612 = vpack.c.b16 %v600, %v600
  %v613 = vpack.c.b16 %v601, %v601
  %v614 = vpack.c.b16 %v602, %v602
  %vm623 = vcmask 293888
  %v625 = vsel %vm623, %v572, 0
  %vm627 = vcmask 1041408
  %v629 = vsel %vm627, %v611, 0
  %v632 = vsel %vm627, %v612, 0
  %v635 = vsel %vm627, %v613, 0
  %v638 = vsel %vm627, %v614, 0
  %640 = vmatprep.subr.bf16.mxu0 %v604
  %641 = vmatpush1.bf16.msra.mxu0 %v603
  %642 = vmatprep.subr.bf16.mxu0 %v608
  %643 = vmatpush1.bf16.msra.mxu0 %v607
  %644 = vmatprep.subr.bf16.mxu0 %v632
  %645 = vmatpush1.bf16.msra.mxu0 %v629
  %646 = vmatprep.subr.bf16.mxu0 0
  %647 = vmatpush1.bf16.msra.mxu0 0
  %648 = vmatprep.subr.bf16.mxu0 0
  %649 = vmatpush1.bf16.msra.mxu0 0
  %650 = vmatprep.subr.bf16.mxu0 0
  %651 = vmatpush1.bf16.msra.mxu0 0
  %652 = vmatprep.subr.bf16.mxu0 0
  %653 = vmatpush1.bf16.msra.mxu0 0
  %654 = vmatprep.subr.bf16.mxu0 0
  %655 = vmatpush1.bf16.msra.mxu0 0
  %656 = vmatprep.subr.bf16.mxu0 0
  %657 = vmatpush1.bf16.msra.mxu0 0
  %658 = vmatprep.subr.bf16.mxu0 0
  %659 = vmatpush1.bf16.msra.mxu0 0
  %660 = vmatprep.subr.bf16.mxu0 0
  %661 = vmatpush1.bf16.msra.mxu0 0
  %662 = vmatprep.subr.bf16.mxu0 0
  %663 = vmatpush1.bf16.msra.mxu0 0
  %664 = vmatprep.subr.bf16.mxu0 0
  %665 = vmatpush1.bf16.msra.mxu0 0
  %666 = vmatprep.subr.bf16.mxu0 0
  %667 = vmatpush1.bf16.msra.mxu0 0
  %668 = vmatprep.subr.bf16.mxu0 0
  %669 = vmatpush1.bf16.msra.mxu0 0
  %670 = vmatprep.subr.bf16.mxu0 0
  %671 = vmatpush1.bf16.msra.mxu0 0
  %672 = vmatprep.mubr.bf16.mxu0 0
  %673 = vmatmul.mubr.bf16.gmra.mrb[0].mxu0 %v625
  %v674 = vpop.f32.mrb[0].mxu0
  %v675 = vadd.f32 %v561, %v674
  %v676 = vpop.f32.mrb[0].mxu0
  %v677 = vadd.f32 %v561, %v676
  %v678 = vpop.f32.mrb[0].mxu0
  %v679 = vadd.f32 %v566, %v678
  %v680 = vpop.f32.mrb[0].mxu0
  %v681 = vadd.f32 %v566, %v680
  %682 = vdwg.mxu0
  %683 = vmatprep.subr.bf16.mxu0 %v606
  %684 = vmatpush1.bf16.msra.mxu0 %v605
  %685 = vmatprep.subr.bf16.mxu0 %v610
  %686 = vmatpush1.bf16.msra.mxu0 %v609
  %687 = vmatprep.subr.bf16.mxu0 %v638
  %688 = vmatpush1.bf16.msra.mxu0 %v635
  %689 = vmatprep.subr.bf16.mxu0 0
  %690 = vmatpush1.bf16.msra.mxu0 0
  %691 = vmatprep.subr.bf16.mxu0 0
  %692 = vmatpush1.bf16.msra.mxu0 0
  %693 = vmatprep.subr.bf16.mxu0 0
  %694 = vmatpush1.bf16.msra.mxu0 0
  %695 = vmatprep.subr.bf16.mxu0 0
  %696 = vmatpush1.bf16.msra.mxu0 0
  %697 = vmatprep.subr.bf16.mxu0 0
  %698 = vmatpush1.bf16.msra.mxu0 0
  %699 = vmatprep.subr.bf16.mxu0 0
  %700 = vmatpush1.bf16.msra.mxu0 0
  %701 = vmatprep.subr.bf16.mxu0 0
  %702 = vmatpush1.bf16.msra.mxu0 0
  %703 = vmatprep.subr.bf16.mxu0 0
  %704 = vmatpush1.bf16.msra.mxu0 0
  %705 = vmatprep.subr.bf16.mxu0 0
  %706 = vmatpush1.bf16.msra.mxu0 0
  %707 = vmatprep.subr.bf16.mxu0 0
  %708 = vmatpush1.bf16.msra.mxu0 0
  %709 = vmatprep.subr.bf16.mxu0 0
  %710 = vmatpush1.bf16.msra.mxu0 0
  %711 = vmatprep.subr.bf16.mxu0 0
  %712 = vmatpush1.bf16.msra.mxu0 0
  %713 = vmatprep.subr.bf16.mxu0 0
  %714 = vmatpush1.bf16.msra.mxu0 0
  %715 = vmatprep.mubr.bf16.mxu0 0
  %716 = vmatmul.mubr.bf16.gmra.mrb[0].mxu0 %v625
  %v717 = vpop.f32.mrb[0].mxu0
  %v718 = vadd.f32 %v561, %v717
  %v719 = vpop.f32.mrb[0].mxu0
  %v720 = vadd.f32 %v561, %v719
  %v721 = vpop.f32.mrb[0].mxu0
  %v722 = vadd.f32 %v566, %v721
  %v723 = vpop.f32.mrb[0].mxu0
  %v724 = vadd.f32 %v566, %v723
  %725 = vdwg.mxu0
  %v726 = vmax.f32 %v675, 0.0
  %v727 = vmax.f32 %v677, 0.0
  %v728 = vmax.f32 %v718, 0.0
  %v729 = vmax.f32 %v720, 0.0
  %v730 = vmax.f32 %v679, 0.0
  %v731 = vmax.f32 %v681, 0.0
  %v732 = vmax.f32 %v722, 0.0
  %v733 = vmax.f32 %v724, 0.0
  %734 = vrot.lane.b32.xlu0 %v726, 17
  %v735 = vpop.permute.xlu0 %734
  %736 = vrot.lane.b32.xlu0 %v730, 17
  %v737 = vpop.permute.xlu0 %736
  %738 = vrot.lane.b32.xlu0 %v727, 17
  %v739 = vpop.permute.xlu0 %738
  %740 = vrot.lane.b32.xlu0 %v731, 17
  %v741 = vpop.permute.xlu0 %740
  %742 = vrot.lane.b32.xlu0 %v728, 17
  %v743 = vpop.permute.xlu0 %742
  %744 = vrot.lane.b32.xlu0 %v732, 17
  %v745 = vpop.permute.xlu0 %744
  %746 = vrot.lane.b32.xlu0 %v729, 17
  %v747 = vpop.permute.xlu0 %746
  %748 = vrot.lane.b32.xlu0 %v733, 17
  %v749 = vpop.permute.xlu0 %748
  %v750 = vsel %vm63, %v743, %v747
  %v751 = vsel %vm63, %v745, %v749
  %v752 = vsel %vm63, %v739, %v743
  %v753 = vsel %vm63, %v741, %v745
  %v754 = vsel %vm63, %v735, %v739
  %v755 = vsel %vm63, %v737, %v741
  %v756 = vsel %vm63, %v747, %v735
  %v757 = vsel %vm63, %v749, %v737
  %v758 = vld [vmem:[%s1] ss:$8 sm:$0xf]
  %v760 = vlaneseq
  %v761 = vshrl.u32 %v760, 7
  %v762 = vsub.s32 0, %v761
  %v763 = vrot.slane %v758, %v762
  %v764 = vlaneseq
  %v765 = vshrl.u32 %v764, 7
  %v766 = vsub.s32 1, %v765
  %v767 = vrot.slane %v758, %v766
  %v768 = vlaneseq
  %v769 = vshrl.u32 %v768, 7
  %v770 = vsub.s32 2, %v769
  %v771 = vrot.slane %v758, %v770
  %v772 = vlaneseq
  %v773 = vshrl.u32 %v772, 7
  %v774 = vsub.s32 3, %v773
  %v775 = vrot.slane %v758, %v774
  %v780 = vmul.f32 %v756, %v763
  %v781 = vmul.f32 %v754, %v767
  %v782 = vmul.f32 %v752, %v771
  %v783 = vmul.f32 %v750, %v775
  %v784 = vmul.f32 %v757, %v763
  %v785 = vmul.f32 %v755, %v767
  %v786 = vmul.f32 %v753, %v771
  %v787 = vmul.f32 %v751, %v775
  %v788 = vpack.c.bf16 %v784, %v780
  %v789 = vpack.c.bf16 %v785, %v781
  %v790 = vpack.c.bf16 %v786, %v782
  %v791 = vpack.c.bf16 %v787, %v783
  %792 = vst [vmem:[#allocation3] sm:$0xff] %v788
  %793 = vst [vmem:[#allocation3 + $0x8] sm:$0xff] %v789
  %794 = vst [vmem:[#allocation3 + $0x10] sm:$0xff] %v790
  %795 = vst [vmem:[#allocation3 + $0x18] sm:$0xff] %v791
  %796 = vrot.lane.b32.xlu0 %v726, 16
  %v797 = vpop.permute.xlu0 %796
  %798 = vrot.lane.b32.xlu0 %v730, 16
  %v799 = vpop.permute.xlu0 %798
  %800 = vrot.lane.b32.xlu0 %v727, 16
  %v801 = vpop.permute.xlu0 %800
  %802 = vrot.lane.b32.xlu0 %v731, 16
  %v803 = vpop.permute.xlu0 %802
  %804 = vrot.lane.b32.xlu0 %v728, 16
  %v805 = vpop.permute.xlu0 %804
  %806 = vrot.lane.b32.xlu0 %v732, 16
  %v807 = vpop.permute.xlu0 %806
  %808 = vrot.lane.b32.xlu0 %v729, 16
  %v809 = vpop.permute.xlu0 %808
  %810 = vrot.lane.b32.xlu0 %v733, 16
  %v811 = vpop.permute.xlu0 %810
  %v812 = vsel %vm120, %v805, %v809
  %v813 = vsel %vm120, %v807, %v811
  %v814 = vsel %vm120, %v801, %v805
  %v815 = vsel %vm120, %v803, %v807
  %v816 = vsel %vm120, %v797, %v801
  %v817 = vsel %vm120, %v799, %v803
  %v818 = vsel %vm120, %v809, %v797
  %v819 = vsel %vm120, %v811, %v799
  %v820 = vld [vmem:[%s125] ss:$8 sm:$0xf]
  %v822 = vlaneseq
  %v823 = vshrl.u32 %v822, 7
  %v824 = vsub.s32 0, %v823
  %v825 = vrot.slane %v820, %v824
  %v826 = vlaneseq
  %v827 = vshrl.u32 %v826, 7
  %v828 = vsub.s32 1, %v827
  %v829 = vrot.slane %v820, %v828
  %v830 = vlaneseq
  %v831 = vshrl.u32 %v830, 7
  %v832 = vsub.s32 2, %v831
  %v833 = vrot.slane %v820, %v832
  %v834 = vlaneseq
  %v835 = vshrl.u32 %v834, 7
  %v836 = vsub.s32 3, %v835
  %v837 = vrot.slane %v820, %v836
  %v842 = vmul.f32 %v818, %v825
  %v843 = vmul.f32 %v816, %v829
  %v844 = vmul.f32 %v814, %v833
  %v845 = vmul.f32 %v812, %v837
  %v846 = vmul.f32 %v819, %v825
  %v847 = vmul.f32 %v817, %v829
  %v848 = vmul.f32 %v815, %v833
  %v849 = vmul.f32 %v813, %v837
  %v850 = vpack.c.bf16 %v846, %v842
  %v851 = vpack.c.bf16 %v847, %v843
  %v852 = vpack.c.bf16 %v848, %v844
  %v853 = vpack.c.bf16 %v849, %v845
  %854 = vst [vmem:[#allocation3 + $0x20] sm:$0xff] %v850
  %855 = vst [vmem:[#allocation3 + $0x28] sm:$0xff] %v851
  %856 = vst [vmem:[#allocation3 + $0x30] sm:$0xff] %v852
  %857 = vst [vmem:[#allocation3 + $0x38] sm:$0xff] %v853
  %858 = vrot.lane.b32.xlu0 %v726, 15
  %v859 = vpop.permute.xlu0 %858
  %860 = vrot.lane.b32.xlu0 %v730, 15
  %v861 = vpop.permute.xlu0 %860
  %862 = vrot.lane.b32.xlu0 %v727, 15
  %v863 = vpop.permute.xlu0 %862
  %864 = vrot.lane.b32.xlu0 %v731, 15
  %v865 = vpop.permute.xlu0 %864
  %866 = vrot.lane.b32.xlu0 %v728, 15
  %v867 = vpop.permute.xlu0 %866
  %868 = vrot.lane.b32.xlu0 %v732, 15
  %v869 = vpop.permute.xlu0 %868
  %870 = vrot.lane.b32.xlu0 %v729, 15
  %v871 = vpop.permute.xlu0 %870
  %872 = vrot.lane.b32.xlu0 %v733, 15
  %v873 = vpop.permute.xlu0 %872
  %v874 = vsel %vm180, %v867, %v871
  %v875 = vsel %vm180, %v869, %v873
  %v876 = vsel %vm180, %v863, %v867
  %v877 = vsel %vm180, %v865, %v869
  %v878 = vsel %vm180, %v859, %v863
  %v879 = vsel %vm180, %v861, %v865
  %v880 = vsel %vm180, %v871, %v859
  %v881 = vsel %vm180, %v873, %v861
  %v882 = vld [vmem:[%s185] ss:$8 sm:$0xf]
  %v884 = vlaneseq
  %v885 = vshrl.u32 %v884, 7
  %v886 = vsub.s32 0, %v885
  %v887 = vrot.slane %v882, %v886
  %v888 = vlaneseq
  %v889 = vshrl.u32 %v888, 7
  %v890 = vsub.s32 1, %v889
  %v891 = vrot.slane %v882, %v890
  %v892 = vlaneseq
  %v893 = vshrl.u32 %v892, 7
  %v894 = vsub.s32 2, %v893
  %v895 = vrot.slane %v882, %v894
  %v896 = vlaneseq
  %v897 = vshrl.u32 %v896, 7
  %v898 = vsub.s32 3, %v897
  %v899 = vrot.slane %v882, %v898
  %v904 = vmul.f32 %v880, %v887
  %v905 = vmul.f32 %v878, %v891
  %v906 = vmul.f32 %v876, %v895
  %v907 = vmul.f32 %v874, %v899
  %v908 = vmul.f32 %v881, %v887
  %v909 = vmul.f32 %v879, %v891
  %v910 = vmul.f32 %v877, %v895
  %v911 = vmul.f32 %v875, %v899
  %v912 = vpack.c.bf16 %v908, %v904
  %v913 = vpack.c.bf16 %v909, %v905
  %v914 = vpack.c.bf16 %v910, %v906
  %v915 = vpack.c.bf16 %v911, %v907
  %916 = vst [vmem:[#allocation3 + $0x40] sm:$0xff] %v912
  %917 = vst [vmem:[#allocation3 + $0x48] sm:$0xff] %v913
  %918 = vst [vmem:[#allocation3 + $0x50] sm:$0xff] %v914
  %919 = vst [vmem:[#allocation3 + $0x58] sm:$0xff] %v915
  %920 = vrot.lane.b32.xlu0 %v726, 1
  %v921 = vpop.permute.xlu0 %920
  %922 = vrot.lane.b32.xlu0 %v730, 1
  %v923 = vpop.permute.xlu0 %922
  %924 = vrot.lane.b32.xlu0 %v727, 1
  %v925 = vpop.permute.xlu0 %924
  %926 = vrot.lane.b32.xlu0 %v731, 1
  %v927 = vpop.permute.xlu0 %926
  %928 = vrot.lane.b32.xlu0 %v728, 1
  %v929 = vpop.permute.xlu0 %928
  %930 = vrot.lane.b32.xlu0 %v732, 1
  %v931 = vpop.permute.xlu0 %930
  %932 = vrot.lane.b32.xlu0 %v729, 1
  %v933 = vpop.permute.xlu0 %932
  %934 = vrot.lane.b32.xlu0 %v733, 1
  %v935 = vpop.permute.xlu0 %934
  %v936 = vsel %vm238, %v929, %v933
  %v937 = vsel %vm238, %v931, %v935
  %v938 = vsel %vm238, %v925, %v929
  %v939 = vsel %vm238, %v927, %v931
  %v940 = vsel %vm238, %v921, %v925
  %v941 = vsel %vm238, %v923, %v927
  %v942 = vsel %vm238, %v933, %v921
  %v943 = vsel %vm238, %v935, %v923
  %v944 = vld [vmem:[%s243] ss:$8 sm:$0xf]
  %v946 = vlaneseq
  %v947 = vshrl.u32 %v946, 7
  %v948 = vsub.s32 0, %v947
  %v949 = vrot.slane %v944, %v948
  %v950 = vlaneseq
  %v951 = vshrl.u32 %v950, 7
  %v952 = vsub.s32 1, %v951
  %v953 = vrot.slane %v944, %v952
  %v954 = vlaneseq
  %v955 = vshrl.u32 %v954, 7
  %v956 = vsub.s32 2, %v955
  %v957 = vrot.slane %v944, %v956
  %v958 = vlaneseq
  %v959 = vshrl.u32 %v958, 7
  %v960 = vsub.s32 3, %v959
  %v961 = vrot.slane %v944, %v960
  %v966 = vmul.f32 %v942, %v949
  %v967 = vmul.f32 %v940, %v953
  %v968 = vmul.f32 %v938, %v957
  %v969 = vmul.f32 %v936, %v961
  %v970 = vmul.f32 %v943, %v949
  %v971 = vmul.f32 %v941, %v953
  %v972 = vmul.f32 %v939, %v957
  %v973 = vmul.f32 %v937, %v961
  %v974 = vpack.c.bf16 %v970, %v966
  %v975 = vpack.c.bf16 %v971, %v967
  %v976 = vpack.c.bf16 %v972, %v968
  %v977 = vpack.c.bf16 %v973, %v969
  %978 = vst [vmem:[#allocation3 + $0x60] sm:$0xff] %v974
  %979 = vst [vmem:[#allocation3 + $0x68] sm:$0xff] %v975
  %980 = vst [vmem:[#allocation3 + $0x70] sm:$0xff] %v976
  %981 = vst [vmem:[#allocation3 + $0x78] sm:$0xff] %v977
  %v982 = vpack.c.bf16 %v730, %v726
  %v983 = vpack.c.bf16 %v731, %v727
  %v984 = vpack.c.bf16 %v732, %v728
  %v985 = vpack.c.bf16 %v733, %v729
  %986 = vst [vmem:[#allocation3 + $0x80] sm:$0xff] %v982
  %987 = vst [vmem:[#allocation3 + $0x88] sm:$0xff] %v983
  %988 = vst [vmem:[#allocation3 + $0x90] sm:$0xff] %v984
  %989 = vst [vmem:[#allocation3 + $0x98] sm:$0xff] %v985
  %990 = vrot.lane.b32.xlu0 %v726, 127
  %v991 = vpop.permute.xlu0 %990
  %992 = vrot.lane.b32.xlu0 %v730, 127
  %v993 = vpop.permute.xlu0 %992
  %994 = vrot.lane.b32.xlu0 %v727, 127
  %v995 = vpop.permute.xlu0 %994
  %996 = vrot.lane.b32.xlu0 %v731, 127
  %v997 = vpop.permute.xlu0 %996
  %998 = vrot.lane.b32.xlu0 %v728, 127
  %v999 = vpop.permute.xlu0 %998
  %1000 = vrot.lane.b32.xlu0 %v732, 127
  %v1001 = vpop.permute.xlu0 %1000
  %1002 = vrot.lane.b32.xlu0 %v729, 127
  %v1003 = vpop.permute.xlu0 %1002
  %1004 = vrot.lane.b32.xlu0 %v733, 127
  %v1005 = vpop.permute.xlu0 %1004
  %v1006 = vsel %vm316, %v999, %v1003
  %v1007 = vsel %vm316, %v1001, %v1005
  %v1008 = vsel %vm316, %v995, %v999
  %v1009 = vsel %vm316, %v997, %v1001
  %v1010 = vsel %vm316, %v991, %v995
  %v1011 = vsel %vm316, %v993, %v997
  %v1012 = vsel %vm316, %v1003, %v991
  %v1013 = vsel %vm316, %v1005, %v993
  %v1014 = vld [vmem:[%s321] ss:$8 sm:$0xf]
  %v1016 = vlaneseq
  %v1017 = vshrl.u32 %v1016, 7
  %v1018 = vsub.s32 0, %v1017
  %v1019 = vrot.slane %v1014, %v1018
  %v1020 = vlaneseq
  %v1021 = vshrl.u32 %v1020, 7
  %v1022 = vsub.s32 1, %v1021
  %v1023 = vrot.slane %v1014, %v1022
  %v1024 = vlaneseq
  %v1025 = vshrl.u32 %v1024, 7
  %v1026 = vsub.s32 2, %v1025
  %v1027 = vrot.slane %v1014, %v1026
  %v1028 = vlaneseq
  %v1029 = vshrl.u32 %v1028, 7
  %v1030 = vsub.s32 3, %v1029
  %v1031 = vrot.slane %v1014, %v1030
  %v1036 = vmul.f32 %v1010, %v1019
  %v1037 = vmul.f32 %v1008, %v1023
  %v1038 = vmul.f32 %v1006, %v1027
  %v1039 = vmul.f32 %v1012, %v1031
  %v1040 = vmul.f32 %v1011, %v1019
  %v1041 = vmul.f32 %v1009, %v1023
  %v1042 = vmul.f32 %v1007, %v1027
  %v1043 = vmul.f32 %v1013, %v1031
  %v1044 = vpack.c.bf16 %v1040, %v1036
  %v1045 = vpack.c.bf16 %v1041, %v1037
  %v1046 = vpack.c.bf16 %v1042, %v1038
  %v1047 = vpack.c.bf16 %v1043, %v1039
  %1048 = vst [vmem:[#allocation3 + $0xa0] sm:$0xff] %v1044
  %1049 = vst [vmem:[#allocation3 + $0xa8] sm:$0xff] %v1045
  %1050 = vst [vmem:[#allocation3 + $0xb0] sm:$0xff] %v1046
  %1051 = vst [vmem:[#allocation3 + $0xb8] sm:$0xff] %v1047
  %1052 = vrot.lane.b32.xlu0 %v726, 113
  %v1053 = vpop.permute.xlu0 %1052
  %1054 = vrot.lane.b32.xlu0 %v730, 113
  %v1055 = vpop.permute.xlu0 %1054
  %1056 = vrot.lane.b32.xlu0 %v727, 113
  %v1057 = vpop.permute.xlu0 %1056
  %1058 = vrot.lane.b32.xlu0 %v731, 113
  %v1059 = vpop.permute.xlu0 %1058
  %1060 = vrot.lane.b32.xlu0 %v728, 113
  %v1061 = vpop.permute.xlu0 %1060
  %1062 = vrot.lane.b32.xlu0 %v732, 113
  %v1063 = vpop.permute.xlu0 %1062
  %1064 = vrot.lane.b32.xlu0 %v729, 113
  %v1065 = vpop.permute.xlu0 %1064
  %1066 = vrot.lane.b32.xlu0 %v733, 113
  %v1067 = vpop.permute.xlu0 %1066
  %v1068 = vsel %vm376, %v1061, %v1065
  %v1069 = vsel %vm376, %v1063, %v1067
  %v1070 = vsel %vm376, %v1057, %v1061
  %v1071 = vsel %vm376, %v1059, %v1063
  %v1072 = vsel %vm376, %v1053, %v1057
  %v1073 = vsel %vm376, %v1055, %v1059
  %v1074 = vsel %vm376, %v1065, %v1053
  %v1075 = vsel %vm376, %v1067, %v1055
  %v1076 = vld [vmem:[%s381] ss:$8 sm:$0xf]
  %v1078 = vlaneseq
  %v1079 = vshrl.u32 %v1078, 7
  %v1080 = vsub.s32 0, %v1079
  %v1081 = vrot.slane %v1076, %v1080
  %v1082 = vlaneseq
  %v1083 = vshrl.u32 %v1082, 7
  %v1084 = vsub.s32 1, %v1083
  %v1085 = vrot.slane %v1076, %v1084
  %v1086 = vlaneseq
  %v1087 = vshrl.u32 %v1086, 7
  %v1088 = vsub.s32 2, %v1087
  %v1089 = vrot.slane %v1076, %v1088
  %v1090 = vlaneseq
  %v1091 = vshrl.u32 %v1090, 7
  %v1092 = vsub.s32 3, %v1091
  %v1093 = vrot.slane %v1076, %v1092
  %v1098 = vmul.f32 %v1072, %v1081
  %v1099 = vmul.f32 %v1070, %v1085
  %v1100 = vmul.f32 %v1068, %v1089
  %v1101 = vmul.f32 %v1074, %v1093
  %v1102 = vmul.f32 %v1073, %v1081
  %v1103 = vmul.f32 %v1071, %v1085
  %v1104 = vmul.f32 %v1069, %v1089
  %v1105 = vmul.f32 %v1075, %v1093
  %v1106 = vpack.c.bf16 %v1102, %v1098
  %v1107 = vpack.c.bf16 %v1103, %v1099
  %v1108 = vpack.c.bf16 %v1104, %v1100
  %v1109 = vpack.c.bf16 %v1105, %v1101
  %1110 = vst [vmem:[#allocation3 + $0xc0] sm:$0xff] %v1106
  %1111 = vst [vmem:[#allocation3 + $0xc8] sm:$0xff] %v1107
  %1112 = vst [vmem:[#allocation3 + $0xd0] sm:$0xff] %v1108
  %1113 = vst [vmem:[#allocation3 + $0xd8] sm:$0xff] %v1109
  %1114 = vrot.lane.b32.xlu0 %v726, 112
  %v1115 = vpop.permute.xlu0 %1114
  %1116 = vrot.lane.b32.xlu0 %v730, 112
  %v1117 = vpop.permute.xlu0 %1116
  %1118 = vrot.lane.b32.xlu0 %v727, 112
  %v1119 = vpop.permute.xlu0 %1118
  %1120 = vrot.lane.b32.xlu0 %v731, 112
  %v1121 = vpop.permute.xlu0 %1120
  %1122 = vrot.lane.b32.xlu0 %v728, 112
  %v1123 = vpop.permute.xlu0 %1122
  %1124 = vrot.lane.b32.xlu0 %v732, 112
  %v1125 = vpop.permute.xlu0 %1124
  %1126 = vrot.lane.b32.xlu0 %v729, 112
  %v1127 = vpop.permute.xlu0 %1126
  %1128 = vrot.lane.b32.xlu0 %v733, 112
  %v1129 = vpop.permute.xlu0 %1128
  %v1130 = vsel %vm434, %v1123, %v1127
  %v1131 = vsel %vm434, %v1125, %v1129
  %v1132 = vsel %vm434, %v1119, %v1123
  %v1133 = vsel %vm434, %v1121, %v1125
  %v1134 = vsel %vm434, %v1115, %v1119
  %v1135 = vsel %vm434, %v1117, %v1121
  %v1136 = vsel %vm434, %v1127, %v1115
  %v1137 = vsel %vm434, %v1129, %v1117
  %v1138 = vld [vmem:[%s439] ss:$8 sm:$0xf]
  %v1140 = vlaneseq
  %v1141 = vshrl.u32 %v1140, 7
  %v1142 = vsub.s32 0, %v1141
  %v1143 = vrot.slane %v1138, %v1142
  %v1144 = vlaneseq
  %v1145 = vshrl.u32 %v1144, 7
  %v1146 = vsub.s32 1, %v1145
  %v1147 = vrot.slane %v1138, %v1146
  %v1148 = vlaneseq
  %v1149 = vshrl.u32 %v1148, 7
  %v1150 = vsub.s32 2, %v1149
  %v1151 = vrot.slane %v1138, %v1150
  %v1152 = vlaneseq
  %v1153 = vshrl.u32 %v1152, 7
  %v1154 = vsub.s32 3, %v1153
  %v1155 = vrot.slane %v1138, %v1154
  %v1160 = vmul.f32 %v1134, %v1143
  %v1161 = vmul.f32 %v1132, %v1147
  %v1162 = vmul.f32 %v1130, %v1151
  %v1163 = vmul.f32 %v1136, %v1155
  %v1164 = vmul.f32 %v1135, %v1143
  %v1165 = vmul.f32 %v1133, %v1147
  %v1166 = vmul.f32 %v1131, %v1151
  %v1167 = vmul.f32 %v1137, %v1155
  %v1168 = vpack.c.bf16 %v1164, %v1160
  %v1169 = vpack.c.bf16 %v1165, %v1161
  %v1170 = vpack.c.bf16 %v1166, %v1162
  %v1171 = vpack.c.bf16 %v1167, %v1163
  %1172 = vst [vmem:[#allocation3 + $0xe0] sm:$0xff] %v1168
  %1173 = vst [vmem:[#allocation3 + $0xe8] sm:$0xff] %v1169
  %1174 = vst [vmem:[#allocation3 + $0xf0] sm:$0xff] %v1170
  %1175 = vst [vmem:[#allocation3 + $0xf8] sm:$0xff] %v1171
  %1176 = vrot.lane.b32.xlu0 %v726, 111
  %v1177 = vpop.permute.xlu0 %1176
  %1178 = vrot.lane.b32.xlu0 %v730, 111
  %v1179 = vpop.permute.xlu0 %1178
  %1180 = vrot.lane.b32.xlu0 %v727, 111
  %v1181 = vpop.permute.xlu0 %1180
  %1182 = vrot.lane.b32.xlu0 %v731, 111
  %v1183 = vpop.permute.xlu0 %1182
  %1184 = vrot.lane.b32.xlu0 %v728, 111
  %v1185 = vpop.permute.xlu0 %1184
  %1186 = vrot.lane.b32.xlu0 %v732, 111
  %v1187 = vpop.permute.xlu0 %1186
  %1188 = vrot.lane.b32.xlu0 %v729, 111
  %v1189 = vpop.permute.xlu0 %1188
  %1190 = vrot.lane.b32.xlu0 %v733, 111
  %v1191 = vpop.permute.xlu0 %1190
  %v1192 = vsel %vm494, %v1185, %v1189
  %v1193 = vsel %vm494, %v1187, %v1191
  %v1194 = vsel %vm494, %v1181, %v1185
  %v1195 = vsel %vm494, %v1183, %v1187
  %v1196 = vsel %vm494, %v1177, %v1181
  %v1197 = vsel %vm494, %v1179, %v1183
  %v1198 = vsel %vm494, %v1189, %v1177
  %v1199 = vsel %vm494, %v1191, %v1179
  %v1200 = vld [vmem:[%s499] ss:$8 sm:$0xf]
  %v1202 = vlaneseq
  %v1203 = vshrl.u32 %v1202, 7
  %v1204 = vsub.s32 0, %v1203
  %v1205 = vrot.slane %v1200, %v1204
  %v1206 = vlaneseq
  %v1207 = vshrl.u32 %v1206, 7
  %v1208 = vsub.s32 1, %v1207
  %v1209 = vrot.slane %v1200, %v1208
  %v1210 = vlaneseq
  %v1211 = vshrl.u32 %v1210, 7
  %v1212 = vsub.s32 2, %v1211
  %v1213 = vrot.slane %v1200, %v1212
  %v1214 = vlaneseq
  %v1215 = vshrl.u32 %v1214, 7
  %v1216 = vsub.s32 3, %v1215
  %v1217 = vrot.slane %v1200, %v1216
  %v1222 = vmul.f32 %v1196, %v1205
  %v1223 = vmul.f32 %v1194, %v1209
  %v1224 = vmul.f32 %v1192, %v1213
  %v1225 = vmul.f32 %v1198, %v1217
  %v1226 = vmul.f32 %v1197, %v1205
  %v1227 = vmul.f32 %v1195, %v1209
  %v1228 = vmul.f32 %v1193, %v1213
  %v1229 = vmul.f32 %v1199, %v1217
  %v1230 = vpack.c.bf16 %v1226, %v1222
  %v1231 = vpack.c.bf16 %v1227, %v1223
  %v1232 = vpack.c.bf16 %v1228, %v1224
  %v1233 = vpack.c.bf16 %v1229, %v1225
  %1234 = vst [vmem:[#allocation3 + $0x100] sm:$0xff] %v1230
  %1235 = vst [vmem:[#allocation3 + $0x108] sm:$0xff] %v1231
  %1236 = vst [vmem:[#allocation3 + $0x110] sm:$0xff] %v1232
  %1237 = vst [vmem:[#allocation3 + $0x118] sm:$0xff] %v1233
  %v1238 = vld [vmem:[%s4] sm:$0xff]
  %v1239 = vld [vmem:[%s4 + $0x8] sm:$0xff]
  %v1240 = vld [vmem:[%s4 + $0x10] sm:$0xff]
  %v1241 = vld [vmem:[#allocation3] sm:$0xff]
  %v1242 = vld [vmem:[#allocation3 + $0x8] sm:$0xff]
  %v1243 = vld [vmem:[#allocation3 + $0x10] sm:$0xff]
  %v1244 = vld [vmem:[#allocation3 + $0x18] sm:$0xff]
  %v1245 = vld [vmem:[#allocation3 + $0x20] sm:$0xff]
  %v1246 = vld [vmem:[#allocation3 + $0x28] sm:$0xff]
  %v1247 = vld [vmem:[#allocation3 + $0x30] sm:$0xff]
  %v1248 = vld [vmem:[#allocation3 + $0x38] sm:$0xff]
  %v1249 = vld [vmem:[#allocation3 + $0x40] sm:$0xff]
  %v1250 = vld [vmem:[#allocation3 + $0x48] sm:$0xff]
  %v1251 = vld [vmem:[#allocation3 + $0x50] sm:$0xff]
  %v1252 = vld [vmem:[#allocation3 + $0x58] sm:$0xff]
  %v1253 = vld [vmem:[#allocation3 + $0x60] sm:$0xff]
  %v1254 = vld [vmem:[#allocation3 + $0x68] sm:$0xff]
  %v1255 = vld [vmem:[#allocation3 + $0x70] sm:$0xff]
  %v1256 = vld [vmem:[#allocation3 + $0x78] sm:$0xff]
  %v1257 = vld [vmem:[#allocation3 + $0x80] sm:$0xff]
  %v1258 = vld [vmem:[#allocation3 + $0x88] sm:$0xff]
  %v1259 = vld [vmem:[#allocation3 + $0x90] sm:$0xff]
  %v1260 = vld [vmem:[#allocation3 + $0x98] sm:$0xff]
  %v1261 = vld [vmem:[#allocation3 + $0xa0] sm:$0xff]
  %v1262 = vld [vmem:[#allocation3 + $0xa8] sm:$0xff]
  %v1263 = vld [vmem:[#allocation3 + $0xb0] sm:$0xff]
  %v1264 = vld [vmem:[#allocation3 + $0xb8] sm:$0xff]
  %v1265 = vld [vmem:[#allocation3 + $0xc0] sm:$0xff]
  %v1266 = vld [vmem:[#allocation3 + $0xc8] sm:$0xff]
  %v1267 = vld [vmem:[#allocation3 + $0xd0] sm:$0xff]
  %v1268 = vld [vmem:[#allocation3 + $0xd8] sm:$0xff]
  %v1269 = vld [vmem:[#allocation3 + $0xe0] sm:$0xff]
  %v1270 = vld [vmem:[#allocation3 + $0xe8] sm:$0xff]
  %v1271 = vld [vmem:[#allocation3 + $0xf0] sm:$0xff]
  %v1272 = vld [vmem:[#allocation3 + $0xf8] sm:$0xff]
  %v1273 = vld [vmem:[#allocation3 + $0x100] sm:$0xff]
  %v1274 = vld [vmem:[#allocation3 + $0x108] sm:$0xff]
  %v1275 = vld [vmem:[#allocation3 + $0x110] sm:$0xff]
  %v1276 = vld [vmem:[#allocation3 + $0x118] sm:$0xff]
  %v1277 = vld [vmem:[%s5] sm:$0xff]
  %v1278 = vld [vmem:[%s5 + $0x8] sm:$0xff]
  %v1279 = vld [vmem:[%s5 + $0x10] sm:$0xff]
  %1281 = vset.pattern.permute.xlu0 0
  %1282 = vperm.xlu0 %1281, %v1277
  %v1283 = vpop.permute.xlu0 %1282
  %1286 = vset.pattern.permute.xlu0 0
  %1287 = vperm.xlu0 %1286, %v1278
  %v1288 = vpop.permute.xlu0 %1287
  %1291 = vset.pattern.permute.xlu0 0
  %1292 = vperm.xlu0 %1291, %v1279
  %v1293 = vpop.permute.xlu0 %1292
  %v1298 = vunpack.c.l.b16 %v1238
  %v1299 = vunpack.c.h.b16 %v1238
  %v1300 = vunpack.c.l.b16 %v1239
  %v1301 = vunpack.c.h.b16 %v1239
  %v1302 = vunpack.c.l.b16 %v1240
  %v1303 = vunpack.c.h.b16 %v1240
  %v1304 = vpack.c.b16 %v1300, %v1298
  %v1305 = vpack.c.b16 %v1301, %v1299
  %v1306 = vpack.c.b16 %v1302, %v1302
  %v1307 = vpack.c.b16 %v1303, %v1303
  %vm1310 = vcmask 130048
  %v1312 = vsel %vm1310, %v1305, 0
  %v1315 = vsel %vm1310, %v1307, 0
  %1317 = vmatprep.subr.bf16.mxu0 %v1242
  %1318 = vmatpush1.bf16.msra.mxu0 %v1241
  %1319 = vmatprep.subr.bf16.mxu0 %v1246
  %1320 = vmatpush1.bf16.msra.mxu0 %v1245
  %1321 = vmatprep.subr.bf16.mxu0 %v1250
  %1322 = vmatpush1.bf16.msra.mxu0 %v1249
  %1323 = vmatprep.subr.bf16.mxu0 %v1254
  %1324 = vmatpush1.bf16.msra.mxu0 %v1253
  %1325 = vmatprep.subr.bf16.mxu0 %v1258
  %1326 = vmatpush1.bf16.msra.mxu0 %v1257
  %1327 = vmatprep.subr.bf16.mxu0 %v1262
  %1328 = vmatpush1.bf16.msra.mxu0 %v1261
  %1329 = vmatprep.subr.bf16.mxu0 %v1266
  %1330 = vmatpush1.bf16.msra.mxu0 %v1265
  %1331 = vmatprep.subr.bf16.mxu0 %v1270
  %1332 = vmatpush1.bf16.msra.mxu0 %v1269
  %1333 = vmatprep.subr.bf16.mxu0 %v1274
  %1334 = vmatpush1.bf16.msra.mxu0 %v1273
  %1335 = vmatprep.subr.bf16.mxu0 0
  %1336 = vmatpush1.bf16.msra.mxu0 0
  %1337 = vmatprep.subr.bf16.mxu0 0
  %1338 = vmatpush1.bf16.msra.mxu0 0
  %1339 = vmatprep.subr.bf16.mxu0 0
  %1340 = vmatpush1.bf16.msra.mxu0 0
  %1341 = vmatprep.subr.bf16.mxu0 0
  %1342 = vmatpush1.bf16.msra.mxu0 0
  %1343 = vmatprep.subr.bf16.mxu0 0
  %1344 = vmatpush1.bf16.msra.mxu0 0
  %1345 = vmatprep.subr.bf16.mxu0 0
  %1346 = vmatpush1.bf16.msra.mxu0 0
  %1347 = vmatprep.subr.bf16.mxu0 0
  %1348 = vmatpush1.bf16.msra.mxu0 0
  %1349 = vmatprep.mubr.bf16.mxu0 %v1312
  %1350 = vmatmul.mubr.bf16.gmra.mrb[0].mxu0 %v1304
  %v1351 = vpop.f32.mrb[0].mxu0
  %v1352 = vadd.f32 %v1283, %v1351
  %v1353 = vpop.f32.mrb[0].mxu0
  %v1354 = vadd.f32 %v1283, %v1353
  %v1355 = vpop.f32.mrb[0].mxu0
  %v1356 = vadd.f32 %v1288, %v1355
  %v1357 = vpop.f32.mrb[0].mxu0
  %v1358 = vadd.f32 %v1288, %v1357
  %1359 = vmatprep.mubr.bf16.mxu0 %v1315
  %1360 = vmatmul.mubr.bf16.gmra.mrb[0].mxu0 %v1306
  %v1361 = vpop.f32.mrb[0].mxu0
  %v1362 = vadd.f32 %v1293, %v1361
  %v1363 = vpop.f32.mrb[0].mxu0
  %v1364 = vadd.f32 %v1293, %v1363
  %v1365 = vpop.f32.mrb[0].mxu0
  %v1366 = vpop.f32.mrb[0].mxu0
  %1367 = vdwg.mxu0
  %1368 = vmatprep.subr.bf16.mxu0 %v1244
  %1369 = vmatpush1.bf16.msra.mxu0 %v1243
  %1370 = vmatprep.subr.bf16.mxu0 %v1248
  %1371 = vmatpush1.bf16.msra.mxu0 %v1247
  %1372 = vmatprep.subr.bf16.mxu0 %v1252
  %1373 = vmatpush1.bf16.msra.mxu0 %v1251
  %1374 = vmatprep.subr.bf16.mxu0 %v1256
  %1375 = vmatpush1.bf16.msra.mxu0 %v1255
  %1376 = vmatprep.subr.bf16.mxu0 %v1260
  %1377 = vmatpush1.bf16.msra.mxu0 %v1259
  %1378 = vmatprep.subr.bf16.mxu0 %v1264
  %1379 = vmatpush1.bf16.msra.mxu0 %v1263
  %1380 = vmatprep.subr.bf16.mxu0 %v1268
  %1381 = vmatpush1.bf16.msra.mxu0 %v1267
  %1382 = vmatprep.subr.bf16.mxu0 %v1272
  %1383 = vmatpush1.bf16.msra.mxu0 %v1271
  %1384 = vmatprep.subr.bf16.mxu0 %v1276
  %1385 = vmatpush1.bf16.msra.mxu0 %v1275
  %1386 = vmatprep.subr.bf16.mxu0 0
  %1387 = vmatpush1.bf16.msra.mxu0 0
  %1388 = vmatprep.subr.bf16.mxu0 0
  %1389 = vmatpush1.bf16.msra.mxu0 0
  %1390 = vmatprep.subr.bf16.mxu0 0
  %1391 = vmatpush1.bf16.msra.mxu0 0
  %1392 = vmatprep.subr.bf16.mxu0 0
  %1393 = vmatpush1.bf16.msra.mxu0 0
  %1394 = vmatprep.subr.bf16.mxu0 0
  %1395 = vmatpush1.bf16.msra.mxu0 0
  %1396 = vmatprep.subr.bf16.mxu0 0
  %1397 = vmatpush1.bf16.msra.mxu0 0
  %1398 = vmatprep.subr.bf16.mxu0 0
  %1399 = vmatpush1.bf16.msra.mxu0 0
  %1400 = vmatprep.mubr.bf16.mxu0 %v1312
  %1401 = vmatmul.mubr.bf16.gmra.mrb[0].mxu0 %v1304
  %v1402 = vpop.f32.mrb[0].mxu0
  %v1403 = vadd.f32 %v1283, %v1402
  %v1404 = vpop.f32.mrb[0].mxu0
  %v1405 = vadd.f32 %v1283, %v1404
  %v1406 = vpop.f32.mrb[0].mxu0
  %v1407 = vadd.f32 %v1288, %v1406
  %v1408 = vpop.f32.mrb[0].mxu0
  %v1409 = vadd.f32 %v1288, %v1408
  %1410 = vmatprep.mubr.bf16.mxu0 %v1315
  %1411 = vmatmul.mubr.bf16.gmra.mrb[0].mxu0 %v1306
  %v1412 = vpop.f32.mrb[0].mxu0
  %v1413 = vadd.f32 %v1293, %v1412
  %v1414 = vpop.f32.mrb[0].mxu0
  %v1415 = vadd.f32 %v1293, %v1414
  %v1416 = vpop.f32.mrb[0].mxu0
  %v1417 = vpop.f32.mrb[0].mxu0
  %1418 = vdwg.mxu0
  %v1419 = vmax.f32 %v1352, 0.0
  %v1420 = vmax.f32 %v1354, 0.0
  %v1421 = vmax.f32 %v1403, 0.0
  %v1422 = vmax.f32 %v1405, 0.0
  %v1423 = vmax.f32 %v1356, 0.0
  %v1424 = vmax.f32 %v1358, 0.0
  %v1425 = vmax.f32 %v1407, 0.0
  %v1426 = vmax.f32 %v1409, 0.0
  %1427 = vrot.lane.b32.xlu0 %v1362, 17
  %v1428 = vpop.permute.xlu0 %1427
  %1429 = vrot.lane.b32.xlu0 %v1364, 17
  %v1430 = vpop.permute.xlu0 %1429
  %1431 = vrot.lane.b32.xlu0 %v1413, 17
  %v1432 = vpop.permute.xlu0 %1431
  %1433 = vrot.lane.b32.xlu0 %v1415, 17
  %v1434 = vpop.permute.xlu0 %1433
  %v1435 = vsel %vm63, %v1432, %v1434
  %v1436 = vsel %vm63, %v1430, %v1432
  %v1437 = vsel %vm63, %v1428, %v1430
  %v1438 = vsel %vm63, %v1434, %v1428
  %v1439 = vld [vmem:[%s1] ss:$8 sm:$0xf]
  %v1441 = vlaneseq
  %v1442 = vshrl.u32 %v1441, 7
  %v1443 = vsub.s32 0, %v1442
  %v1444 = vrot.slane %v1439, %v1443
  %v1445 = vlaneseq
  %v1446 = vshrl.u32 %v1445, 7
  %v1447 = vsub.s32 1, %v1446
  %v1448 = vrot.slane %v1439, %v1447
  %v1449 = vlaneseq
  %v1450 = vshrl.u32 %v1449, 7
  %v1451 = vsub.s32 2, %v1450
  %v1452 = vrot.slane %v1439, %v1451
  %v1453 = vlaneseq
  %v1454 = vshrl.u32 %v1453, 7
  %v1455 = vsub.s32 3, %v1454
  %v1456 = vrot.slane %v1439, %v1455
  %v1461 = vmul.f32 %v1438, %v1444
  %v1462 = vmul.f32 %v1437, %v1448
  %v1463 = vmul.f32 %v1436, %v1452
  %v1464 = vmul.f32 %v1435, %v1456
  %v1465 = vpack.c.bf16 %v1461, %v1461
  %v1466 = vpack.c.bf16 %v1462, %v1462
  %v1467 = vpack.c.bf16 %v1463, %v1463
  %v1468 = vpack.c.bf16 %v1464, %v1464
  %v1473 = vunpack.c.l.b16 %v1465
  %v1474 = vunpack.c.l.b16 %v1466
  %v1475 = vunpack.c.l.b16 %v1467
  %v1476 = vunpack.c.l.b16 %v1468
  %v1477 = vpack.c.b16 %v1474, %v1473
  %v1478 = vpack.c.b16 %v1476, %v1475
  %1481 = vst [vmem:[#allocation4] sm:$0xff] %v1477
  %1482 = vst [vmem:[#allocation4 + $0x8] sm:$0xff] %v1478
  %1483 = vrot.lane.b32.xlu0 %v1362, 16
  %v1484 = vpop.permute.xlu0 %1483
  %1485 = vrot.lane.b32.xlu0 %v1364, 16
  %v1486 = vpop.permute.xlu0 %1485
  %1487 = vrot.lane.b32.xlu0 %v1413, 16
  %v1488 = vpop.permute.xlu0 %1487
  %1489 = vrot.lane.b32.xlu0 %v1415, 16
  %v1490 = vpop.permute.xlu0 %1489
  %v1491 = vsel %vm120, %v1488, %v1490
  %v1492 = vsel %vm120, %v1486, %v1488
  %v1493 = vsel %vm120, %v1484, %v1486
  %v1494 = vsel %vm120, %v1490, %v1484
  %v1495 = vld [vmem:[%s125] ss:$8 sm:$0xf]
  %v1497 = vlaneseq
  %v1498 = vshrl.u32 %v1497, 7
  %v1499 = vsub.s32 0, %v1498
  %v1500 = vrot.slane %v1495, %v1499
  %v1501 = vlaneseq
  %v1502 = vshrl.u32 %v1501, 7
  %v1503 = vsub.s32 1, %v1502
  %v1504 = vrot.slane %v1495, %v1503
  %v1505 = vlaneseq
  %v1506 = vshrl.u32 %v1505, 7
  %v1507 = vsub.s32 2, %v1506
  %v1508 = vrot.slane %v1495, %v1507
  %v1509 = vlaneseq
  %v1510 = vshrl.u32 %v1509, 7
  %v1511 = vsub.s32 3, %v1510
  %v1512 = vrot.slane %v1495, %v1511
  %v1517 = vmul.f32 %v1494, %v1500
  %v1518 = vmul.f32 %v1493, %v1504
  %v1519 = vmul.f32 %v1492, %v1508
  %v1520 = vmul.f32 %v1491, %v1512
  %v1521 = vpack.c.bf16 %v1517, %v1517
  %v1522 = vpack.c.bf16 %v1518, %v1518
  %v1523 = vpack.c.bf16 %v1519, %v1519
  %v1524 = vpack.c.bf16 %v1520, %v1520
  %v1529 = vunpack.c.l.b16 %v1521
  %v1530 = vunpack.c.l.b16 %v1522
  %v1531 = vunpack.c.l.b16 %v1523
  %v1532 = vunpack.c.l.b16 %v1524
  %v1533 = vpack.c.b16 %v1530, %v1529
  %v1534 = vpack.c.b16 %v1532, %v1531
  %1537 = vst [vmem:[#allocation4 + $0x10] sm:$0xff] %v1533
  %1538 = vst [vmem:[#allocation4 + $0x18] sm:$0xff] %v1534
  %1539 = vrot.lane.b32.xlu0 %v1362, 15
  %v1540 = vpop.permute.xlu0 %1539
  %1541 = vrot.lane.b32.xlu0 %v1364, 15
  %v1542 = vpop.permute.xlu0 %1541
  %1543 = vrot.lane.b32.xlu0 %v1413, 15
  %v1544 = vpop.permute.xlu0 %1543
  %1545 = vrot.lane.b32.xlu0 %v1415, 15
  %v1546 = vpop.permute.xlu0 %1545
  %v1547 = vsel %vm180, %v1544, %v1546
  %v1548 = vsel %vm180, %v1542, %v1544
  %v1549 = vsel %vm180, %v1540, %v1542
  %v1550 = vsel %vm180, %v1546, %v1540
  %v1551 = vld [vmem:[%s185] ss:$8 sm:$0xf]
  %v1553 = vlaneseq
  %v1554 = vshrl.u32 %v1553, 7
  %v1555 = vsub.s32 0, %v1554
  %v1556 = vrot.slane %v1551, %v1555
  %v1557 = vlaneseq
  %v1558 = vshrl.u32 %v1557, 7
  %v1559 = vsub.s32 1, %v1558
  %v1560 = vrot.slane %v1551, %v1559
  %v1561 = vlaneseq
  %v1562 = vshrl.u32 %v1561, 7
  %v1563 = vsub.s32 2, %v1562
  %v1564 = vrot.slane %v1551, %v1563
  %v1565 = vlaneseq
  %v1566 = vshrl.u32 %v1565, 7
  %v1567 = vsub.s32 3, %v1566
  %v1568 = vrot.slane %v1551, %v1567
  %v1573 = vmul.f32 %v1550, %v1556
  %v1574 = vmul.f32 %v1549, %v1560
  %v1575 = vmul.f32 %v1548, %v1564
  %v1576 = vmul.f32 %v1547, %v1568
  %v1577 = vpack.c.bf16 %v1573, %v1573
  %v1578 = vpack.c.bf16 %v1574, %v1574
  %v1579 = vpack.c.bf16 %v1575, %v1575
  %v1580 = vpack.c.bf16 %v1576, %v1576
  %v1585 = vunpack.c.l.b16 %v1577
  %v1586 = vunpack.c.l.b16 %v1578
  %v1587 = vunpack.c.l.b16 %v1579
  %v1588 = vunpack.c.l.b16 %v1580
  %v1589 = vpack.c.b16 %v1586, %v1585
  %v1590 = vpack.c.b16 %v1588, %v1587
  %1593 = vst [vmem:[#allocation4 + $0x20] sm:$0xff] %v1589
  %1594 = vst [vmem:[#allocation4 + $0x28] sm:$0xff] %v1590
  %1595 = vrot.lane.b32.xlu0 %v1362, 1
  %v1596 = vpop.permute.xlu0 %1595
  %1597 = vrot.lane.b32.xlu0 %v1364, 1
  %v1598 = vpop.permute.xlu0 %1597
  %1599 = vrot.lane.b32.xlu0 %v1413, 1
  %v1600 = vpop.permute.xlu0 %1599
  %1601 = vrot.lane.b32.xlu0 %v1415, 1
  %v1602 = vpop.permute.xlu0 %1601
  %v1603 = vsel %vm238, %v1600, %v1602
  %v1604 = vsel %vm238, %v1598, %v1600
  %v1605 = vsel %vm238, %v1596, %v1598
  %v1606 = vsel %vm238, %v1602, %v1596
  %v1607 = vld [vmem:[%s243] ss:$8 sm:$0xf]
  %v1609 = vlaneseq
  %v1610 = vshrl.u32 %v1609, 7
  %v1611 = vsub.s32 0, %v1610
  %v1612 = vrot.slane %v1607, %v1611
  %v1613 = vlaneseq
  %v1614 = vshrl.u32 %v1613, 7
  %v1615 = vsub.s32 1, %v1614
  %v1616 = vrot.slane %v1607, %v1615
  %v1617 = vlaneseq
  %v1618 = vshrl.u32 %v1617, 7
  %v1619 = vsub.s32 2, %v1618
  %v1620 = vrot.slane %v1607, %v1619
  %v1621 = vlaneseq
  %v1622 = vshrl.u32 %v1621, 7
  %v1623 = vsub.s32 3, %v1622
  %v1624 = vrot.slane %v1607, %v1623
  %v1629 = vmul.f32 %v1606, %v1612
  %v1630 = vmul.f32 %v1605, %v1616
  %v1631 = vmul.f32 %v1604, %v1620
  %v1632 = vmul.f32 %v1603, %v1624
  %v1633 = vpack.c.bf16 %v1629, %v1629
  %v1634 = vpack.c.bf16 %v1630, %v1630
  %v1635 = vpack.c.bf16 %v1631, %v1631
  %v1636 = vpack.c.bf16 %v1632, %v1632
  %v1641 = vunpack.c.l.b16 %v1633
  %v1642 = vunpack.c.l.b16 %v1634
  %v1643 = vunpack.c.l.b16 %v1635
  %v1644 = vunpack.c.l.b16 %v1636
  %v1645 = vpack.c.b16 %v1642, %v1641
  %v1646 = vpack.c.b16 %v1644, %v1643
  %1649 = vst [vmem:[#allocation4 + $0x30] sm:$0xff] %v1645
  %1650 = vst [vmem:[#allocation4 + $0x38] sm:$0xff] %v1646
  %v1651 = vpack.c.bf16 %v1362, %v1362
  %v1652 = vpack.c.bf16 %v1364, %v1364
  %v1653 = vpack.c.bf16 %v1413, %v1413
  %v1654 = vpack.c.bf16 %v1415, %v1415
  %v1659 = vunpack.c.l.b16 %v1651
  %v1660 = vunpack.c.l.b16 %v1652
  %v1661 = vunpack.c.l.b16 %v1653
  %v1662 = vunpack.c.l.b16 %v1654
  %v1663 = vpack.c.b16 %v1660, %v1659
  %v1664 = vpack.c.b16 %v1662, %v1661
  %1667 = vst [vmem:[#allocation4 + $0x40] sm:$0xff] %v1663
  %1668 = vst [vmem:[#allocation4 + $0x48] sm:$0xff] %v1664
  %1669 = vrot.lane.b32.xlu0 %v1362, 127
  %v1670 = vpop.permute.xlu0 %1669
  %1671 = vrot.lane.b32.xlu0 %v1364, 127
  %v1672 = vpop.permute.xlu0 %1671
  %1673 = vrot.lane.b32.xlu0 %v1413, 127
  %v1674 = vpop.permute.xlu0 %1673
  %1675 = vrot.lane.b32.xlu0 %v1415, 127
  %v1676 = vpop.permute.xlu0 %1675
  %v1677 = vsel %vm316, %v1674, %v1676
  %v1678 = vsel %vm316, %v1672, %v1674
  %v1679 = vsel %vm316, %v1670, %v1672
  %v1680 = vsel %vm316, %v1676, %v1670
  %v1681 = vld [vmem:[%s321] ss:$8 sm:$0xf]
  %v1683 = vlaneseq
  %v1684 = vshrl.u32 %v1683, 7
  %v1685 = vsub.s32 0, %v1684
  %v1686 = vrot.slane %v1681, %v1685
  %v1687 = vlaneseq
  %v1688 = vshrl.u32 %v1687, 7
  %v1689 = vsub.s32 1, %v1688
  %v1690 = vrot.slane %v1681, %v1689
  %v1691 = vlaneseq
  %v1692 = vshrl.u32 %v1691, 7
  %v1693 = vsub.s32 2, %v1692
  %v1694 = vrot.slane %v1681, %v1693
  %v1695 = vlaneseq
  %v1696 = vshrl.u32 %v1695, 7
  %v1697 = vsub.s32 3, %v1696
  %v1698 = vrot.slane %v1681, %v1697
  %v1703 = vmul.f32 %v1679, %v1686
  %v1704 = vmul.f32 %v1678, %v1690
  %v1705 = vmul.f32 %v1677, %v1694
  %v1706 = vmul.f32 %v1680, %v1698
  %v1707 = vpack.c.bf16 %v1703, %v1703
  %v1708 = vpack.c.bf16 %v1704, %v1704
  %v1709 = vpack.c.bf16 %v1705, %v1705
  %v1710 = vpack.c.bf16 %v1706, %v1706
  %v1715 = vunpack.c.l.b16 %v1707
  %v1716 = vunpack.c.l.b16 %v1708
  %v1717 = vunpack.c.l.b16 %v1709
  %v1718 = vunpack.c.l.b16 %v1710
  %v1719 = vpack.c.b16 %v1716, %v1715
  %v1720 = vpack.c.b16 %v1718, %v1717
  %1723 = vst [vmem:[#allocation4 + $0x50] sm:$0xff] %v1719
  %1724 = vst [vmem:[#allocation4 + $0x58] sm:$0xff] %v1720
  %1725 = vrot.lane.b32.xlu0 %v1362, 113
  %v1726 = vpop.permute.xlu0 %1725
  %1727 = vrot.lane.b32.xlu0 %v1364, 113
  %v1728 = vpop.permute.xlu0 %1727
  %1729 = vrot.lane.b32.xlu0 %v1413, 113
  %v1730 = vpop.permute.xlu0 %1729
  %1731 = vrot.lane.b32.xlu0 %v1415, 113
  %v1732 = vpop.permute.xlu0 %1731
  %v1733 = vsel %vm376, %v1730, %v1732
  %v1734 = vsel %vm376, %v1728, %v1730
  %v1735 = vsel %vm376, %v1726, %v1728
  %v1736 = vsel %vm376, %v1732, %v1726
  %v1737 = vld [vmem:[%s381] ss:$8 sm:$0xf]
  %v1739 = vlaneseq
  %v1740 = vshrl.u32 %v1739, 7
  %v1741 = vsub.s32 0, %v1740
  %v1742 = vrot.slane %v1737, %v1741
  %v1743 = vlaneseq
  %v1744 = vshrl.u32 %v1743, 7
  %v1745 = vsub.s32 1, %v1744
  %v1746 = vrot.slane %v1737, %v1745
  %v1747 = vlaneseq
  %v1748 = vshrl.u32 %v1747, 7
  %v1749 = vsub.s32 2, %v1748
  %v1750 = vrot.slane %v1737, %v1749
  %v1751 = vlaneseq
  %v1752 = vshrl.u32 %v1751, 7
  %v1753 = vsub.s32 3, %v1752
  %v1754 = vrot.slane %v1737, %v1753
  %v1759 = vmul.f32 %v1735, %v1742
  %v1760 = vmul.f32 %v1734, %v1746
  %v1761 = vmul.f32 %v1733, %v1750
  %v1762 = vmul.f32 %v1736, %v1754
  %v1763 = vpack.c.bf16 %v1759, %v1759
  %v1764 = vpack.c.bf16 %v1760, %v1760
  %v1765 = vpack.c.bf16 %v1761, %v1761
  %v1766 = vpack.c.bf16 %v1762, %v1762
  %v1771 = vunpack.c.l.b16 %v1763
  %v1772 = vunpack.c.l.b16 %v1764
  %v1773 = vunpack.c.l.b16 %v1765
  %v1774 = vunpack.c.l.b16 %v1766
  %v1775 = vpack.c.b16 %v1772, %v1771
  %v1776 = vpack.c.b16 %v1774, %v1773
  %1779 = vst [vmem:[#allocation4 + $0x60] sm:$0xff] %v1775
  %1780 = vst [vmem:[#allocation4 + $0x68] sm:$0xff] %v1776
  %1781 = vrot.lane.b32.xlu0 %v1362, 112
  %v1782 = vpop.permute.xlu0 %1781
  %1783 = vrot.lane.b32.xlu0 %v1364, 112
  %v1784 = vpop.permute.xlu0 %1783
  %1785 = vrot.lane.b32.xlu0 %v1413, 112
  %v1786 = vpop.permute.xlu0 %1785
  %1787 = vrot.lane.b32.xlu0 %v1415, 112
  %v1788 = vpop.permute.xlu0 %1787
  %v1789 = vsel %vm434, %v1786, %v1788
  %v1790 = vsel %vm434, %v1784, %v1786
  %v1791 = vsel %vm434, %v1782, %v1784
  %v1792 = vsel %vm434, %v1788, %v1782
  %v1793 = vld [vmem:[%s439] ss:$8 sm:$0xf]
  %v1795 = vlaneseq
  %v1796 = vshrl.u32 %v1795, 7
  %v1797 = vsub.s32 0, %v1796
  %v1798 = vrot.slane %v1793, %v1797
  %v1799 = vlaneseq
  %v1800 = vshrl.u32 %v1799, 7
  %v1801 = vsub.s32 1, %v1800
  %v1802 = vrot.slane %v1793, %v1801
  %v1803 = vlaneseq
  %v1804 = vshrl.u32 %v1803, 7
  %v1805 = vsub.s32 2, %v1804
  %v1806 = vrot.slane %v1793, %v1805
  %v1807 = vlaneseq
  %v1808 = vshrl.u32 %v1807, 7
  %v1809 = vsub.s32 3, %v1808
  %v1810 = vrot.slane %v1793, %v1809
  %v1815 = vmul.f32 %v1791, %v1798
  %v1816 = vmul.f32 %v1790, %v1802
  %v1817 = vmul.f32 %v1789, %v1806
  %v1818 = vmul.f32 %v1792, %v1810
  %v1819 = vpack.c.bf16 %v1815, %v1815
  %v1820 = vpack.c.bf16 %v1816, %v1816
  %v1821 = vpack.c.bf16 %v1817, %v1817
  %v1822 = vpack.c.bf16 %v1818, %v1818
  %v1827 = vunpack.c.l.b16 %v1819
  %v1828 = vunpack.c.l.b16 %v1820
  %v1829 = vunpack.c.l.b16 %v1821
  %v1830 = vunpack.c.l.b16 %v1822
  %v1831 = vpack.c.b16 %v1828, %v1827
  %v1832 = vpack.c.b16 %v1830, %v1829
  %1835 = vst [vmem:[#allocation4 + $0x70] sm:$0xff] %v1831
  %1836 = vst [vmem:[#allocation4 + $0x78] sm:$0xff] %v1832
  %1837 = vrot.lane.b32.xlu0 %v1362, 111
  %v1838 = vpop.permute.xlu0 %1837
  %1839 = vrot.lane.b32.xlu0 %v1364, 111
  %v1840 = vpop.permute.xlu0 %1839
  %1841 = vrot.lane.b32.xlu0 %v1413, 111
  %v1842 = vpop.permute.xlu0 %1841
  %1843 = vrot.lane.b32.xlu0 %v1415, 111
  %v1844 = vpop.permute.xlu0 %1843
  %v1845 = vsel %vm494, %v1842, %v1844
  %v1846 = vsel %vm494, %v1840, %v1842
  %v1847 = vsel %vm494, %v1838, %v1840
  %v1848 = vsel %vm494, %v1844, %v1838
  %v1849 = vld [vmem:[%s499] ss:$8 sm:$0xf]
  %v1851 = vlaneseq
  %v1852 = vshrl.u32 %v1851, 7
  %v1853 = vsub.s32 0, %v1852
  %v1854 = vrot.slane %v1849, %v1853
  %v1855 = vlaneseq
  %v1856 = vshrl.u32 %v1855, 7
  %v1857 = vsub.s32 1, %v1856
  %v1858 = vrot.slane %v1849, %v1857
  %v1859 = vlaneseq
  %v1860 = vshrl.u32 %v1859, 7
  %v1861 = vsub.s32 2, %v1860
  %v1862 = vrot.slane %v1849, %v1861
  %v1863 = vlaneseq
  %v1864 = vshrl.u32 %v1863, 7
  %v1865 = vsub.s32 3, %v1864
  %v1866 = vrot.slane %v1849, %v1865
  %v1871 = vmul.f32 %v1847, %v1854
  %v1872 = vmul.f32 %v1846, %v1858
  %v1873 = vmul.f32 %v1845, %v1862
  %v1874 = vmul.f32 %v1848, %v1866
  %v1875 = vpack.c.bf16 %v1871, %v1871
  %v1876 = vpack.c.bf16 %v1872, %v1872
  %v1877 = vpack.c.bf16 %v1873, %v1873
  %v1878 = vpack.c.bf16 %v1874, %v1874
  %v1883 = vunpack.c.l.b16 %v1875
  %v1884 = vunpack.c.l.b16 %v1876
  %v1885 = vunpack.c.l.b16 %v1877
  %v1886 = vunpack.c.l.b16 %v1878
  %v1887 = vpack.c.b16 %v1884, %v1883
  %v1888 = vpack.c.b16 %v1886, %v1885
  %1891 = vst [vmem:[#allocation4 + $0x80] sm:$0xff] %v1887
  %1892 = vst [vmem:[#allocation4 + $0x88] sm:$0xff] %v1888
  %v1893 = vld [vmem:[%s8] sm:$0xf]
  %v1894 = vld [vmem:[#allocation4] sm:$0xff]
  %v1895 = vld [vmem:[#allocation4 + $0x8] sm:$0xff]
  %v1896 = vld [vmem:[#allocation4 + $0x10] sm:$0xff]
  %v1897 = vld [vmem:[#allocation4 + $0x18] sm:$0xff]
  %v1898 = vld [vmem:[#allocation4 + $0x20] sm:$0xff]
  %v1899 = vld [vmem:[#allocation4 + $0x28] sm:$0xff]
  %v1900 = vld [vmem:[#allocation4 + $0x30] sm:$0xff]
  %v1901 = vld [vmem:[#allocation4 + $0x38] sm:$0xff]
  %v1902 = vld [vmem:[#allocation4 + $0x40] sm:$0xff]
  %v1903 = vld [vmem:[#allocation4 + $0x48] sm:$0xff]
  %v1904 = vld [vmem:[#allocation4 + $0x50] sm:$0xff]
  %v1905 = vld [vmem:[#allocation4 + $0x58] sm:$0xff]
  %v1906 = vld [vmem:[#allocation4 + $0x60] sm:$0xff]
  %v1907 = vld [vmem:[#allocation4 + $0x68] sm:$0xff]
  %v1908 = vld [vmem:[#allocation4 + $0x70] sm:$0xff]
  %v1909 = vld [vmem:[#allocation4 + $0x78] sm:$0xff]
  %v1910 = vld [vmem:[#allocation4 + $0x80] sm:$0xff]
  %v1911 = vld [vmem:[#allocation4 + $0x88] sm:$0xff]
  %v1930 = vunpack.c.l.b16 %v1894
  %v1931 = vunpack.c.h.b16 %v1894
  %v1932 = vunpack.c.l.b16 %v1895
  %v1933 = vunpack.c.h.b16 %v1895
  %v1934 = vunpack.c.l.b16 %v1896
  %v1935 = vunpack.c.h.b16 %v1896
  %v1936 = vunpack.c.l.b16 %v1897
  %v1937 = vunpack.c.h.b16 %v1897
  %v1938 = vunpack.c.l.b16 %v1898
  %v1939 = vunpack.c.h.b16 %v1898
  %v1940 = vunpack.c.l.b16 %v1899
  %v1941 = vunpack.c.h.b16 %v1899
  %v1942 = vunpack.c.l.b16 %v1900
  %v1943 = vunpack.c.h.b16 %v1900
  %v1944 = vunpack.c.l.b16 %v1901
  %v1945 = vunpack.c.h.b16 %v1901
  %v1946 = vunpack.c.l.b16 %v1902
  %v1947 = vunpack.c.h.b16 %v1902
  %v1948 = vunpack.c.l.b16 %v1903
  %v1949 = vunpack.c.h.b16 %v1903
  %v1950 = vunpack.c.l.b16 %v1904
  %v1951 = vunpack.c.h.b16 %v1904
  %v1952 = vunpack.c.l.b16 %v1905
  %v1953 = vunpack.c.h.b16 %v1905
  %v1954 = vunpack.c.l.b16 %v1906
  %v1955 = vunpack.c.h.b16 %v1906
  %v1956 = vunpack.c.l.b16 %v1907
  %v1957 = vunpack.c.h.b16 %v1907
  %v1958 = vunpack.c.l.b16 %v1908
  %v1959 = vunpack.c.h.b16 %v1908
  %v1960 = vunpack.c.l.b16 %v1909
  %v1961 = vunpack.c.h.b16 %v1909
  %v1962 = vunpack.c.l.b16 %v1910
  %v1963 = vunpack.c.h.b16 %v1910
  %v1964 = vunpack.c.l.b16 %v1911
  %v1965 = vunpack.c.h.b16 %v1911
  %v1966 = vpack.c.b16 %v1934, %v1930
  %v1967 = vpack.c.b16 %v1935, %v1931
  %v1968 = vpack.c.b16 %v1936, %v1932
  %v1969 = vpack.c.b16 %v1937, %v1933
  %v1970 = vpack.c.b16 %v1942, %v1938
  %v1971 = vpack.c.b16 %v1943, %v1939
  %v1972 = vpack.c.b16 %v1944, %v1940
  %v1973 = vpack.c.b16 %v1945, %v1941
  %v1974 = vpack.c.b16 %v1950, %v1946
  %v1975 = vpack.c.b16 %v1951, %v1947
  %v1976 = vpack.c.b16 %v1952, %v1948
  %v1977 = vpack.c.b16 %v1953, %v1949
  %v1978 = vpack.c.b16 %v1958, %v1954
  %v1979 = vpack.c.b16 %v1959, %v1955
  %v1980 = vpack.c.b16 %v1960, %v1956
  %v1981 = vpack.c.b16 %v1961, %v1957
  %v1982 = vpack.c.b16 %v1962, %v1962
  %v1983 = vpack.c.b16 %v1963, %v1963
  %v1984 = vpack.c.b16 %v1964, %v1964
  %v1985 = vpack.c.b16 %v1965, %v1965
  %vm2002 = vcmask 588800
  %v2004 = vsel %vm2002, %v1893, 0
  %vm2006 = vcmask 1043456
  %v2008 = vsel %vm2006, %v1982, 0
  %v2011 = vsel %vm2006, %v1983, 0
  %v2014 = vsel %vm2006, %v1984, 0
  %v2017 = vsel %vm2006, %v1985, 0
  %2019 = vmatprep.subr.bf16.mxu0 %v1967
  %2020 = vmatpush1.bf16.msra.mxu0 %v1966
  %2021 = vmatprep.subr.bf16.mxu0 %v1971
  %2022 = vmatpush1.bf16.msra.mxu0 %v1970
  %2023 = vmatprep.subr.bf16.mxu0 %v1975
  %2024 = vmatpush1.bf16.msra.mxu0 %v1974
  %2025 = vmatprep.subr.bf16.mxu0 %v1979
  %2026 = vmatpush1.bf16.msra.mxu0 %v1978
  %2027 = vmatprep.subr.bf16.mxu0 %v2011
  %2028 = vmatpush1.bf16.msra.mxu0 %v2008
  %2029 = vmatprep.subr.bf16.mxu0 0
  %2030 = vmatpush1.bf16.msra.mxu0 0
  %2031 = vmatprep.subr.bf16.mxu0 0
  %2032 = vmatpush1.bf16.msra.mxu0 0
  %2033 = vmatprep.subr.bf16.mxu0 0
  %2034 = vmatpush1.bf16.msra.mxu0 0
  %2035 = vmatprep.subr.bf16.mxu0 0
  %2036 = vmatpush1.bf16.msra.mxu0 0
  %2037 = vmatprep.subr.bf16.mxu0 0
  %2038 = vmatpush1.bf16.msra.mxu0 0
  %2039 = vmatprep.subr.bf16.mxu0 0
  %2040 = vmatpush1.bf16.msra.mxu0 0
  %2041 = vmatprep.subr.bf16.mxu0 0
  %2042 = vmatpush1.bf16.msra.mxu0 0
  %2043 = vmatprep.subr.bf16.mxu0 0
  %2044 = vmatpush1.bf16.msra.mxu0 0
  %2045 = vmatprep.subr.bf16.mxu0 0
  %2046 = vmatpush1.bf16.msra.mxu0 0
  %2047 = vmatprep.subr.bf16.mxu0 0
  %2048 = vmatpush1.bf16.msra.mxu0 0
  %2049 = vmatprep.subr.bf16.mxu0 0
  %2050 = vmatpush1.bf16.msra.mxu0 0
  %2051 = vmatprep.mubr.bf16.mxu0 0
  %2052 = vmatmul.mubr.bf16.gmra.mrb[0].mxu0 %v2004
  %v2053 = vpop.f32.mrb[0].mxu0
  %v2054 = vadd.f32 0.0, %v2053
  %v2055 = vpop.f32.mrb[0].mxu0
  %v2056 = vadd.f32 0.0, %v2055
  %v2057 = vpop.f32.mrb[0].mxu0
  %v2058 = vpop.f32.mrb[0].mxu0
  %2059 = vdwg.mxu0
  %2060 = vmatprep.subr.bf16.mxu0 %v1969
  %2061 = vmatpush1.bf16.msra.mxu0 %v1968
  %2062 = vmatprep.subr.bf16.mxu0 %v1973
  %2063 = vmatpush1.bf16.msra.mxu0 %v1972
  %2064 = vmatprep.subr.bf16.mxu0 %v1977
  %2065 = vmatpush1.bf16.msra.mxu0 %v1976
  %2066 = vmatprep.subr.bf16.mxu0 %v1981
  %2067 = vmatpush1.bf16.msra.mxu0 %v1980
  %2068 = vmatprep.subr.bf16.mxu0 %v2017
  %2069 = vmatpush1.bf16.msra.mxu0 %v2014
  %2070 = vmatprep.subr.bf16.mxu0 0
  %2071 = vmatpush1.bf16.msra.mxu0 0
  %2072 = vmatprep.subr.bf16.mxu0 0
  %2073 = vmatpush1.bf16.msra.mxu0 0
  %2074 = vmatprep.subr.bf16.mxu0 0
  %2075 = vmatpush1.bf16.msra.mxu0 0
  %2076 = vmatprep.subr.bf16.mxu0 0
  %2077 = vmatpush1.bf16.msra.mxu0 0
  %2078 = vmatprep.subr.bf16.mxu0 0
  %2079 = vmatpush1.bf16.msra.mxu0 0
  %2080 = vmatprep.subr.bf16.mxu0 0
  %2081 = vmatpush1.bf16.msra.mxu0 0
  %2082 = vmatprep.subr.bf16.mxu0 0
  %2083 = vmatpush1.bf16.msra.mxu0 0
  %2084 = vmatprep.subr.bf16.mxu0 0
  %2085 = vmatpush1.bf16.msra.mxu0 0
  %2086 = vmatprep.subr.bf16.mxu0 0
  %2087 = vmatpush1.bf16.msra.mxu0 0
  %2088 = vmatprep.subr.bf16.mxu0 0
  %2089 = vmatpush1.bf16.msra.mxu0 0
  %2090 = vmatprep.subr.bf16.mxu0 0
  %2091 = vmatpush1.bf16.msra.mxu0 0
  %2092 = vmatprep.mubr.bf16.mxu0 0
  %2093 = vmatmul.mubr.bf16.gmra.mrb[0].mxu0 %v2004
  %v2094 = vpop.f32.mrb[0].mxu0
  %v2095 = vadd.f32 0.0, %v2094
  %v2096 = vpop.f32.mrb[0].mxu0
  %v2097 = vadd.f32 0.0, %v2096
  %v2098 = vpop.f32.mrb[0].mxu0
  %v2099 = vpop.f32.mrb[0].mxu0
  %2100 = vdwg.mxu0
  %2101 = vrot.lane.b32.xlu0 %v1419, 17
  %v2102 = vpop.permute.xlu0 %2101
  %2103 = vrot.lane.b32.xlu0 %v1423, 17
  %v2104 = vpop.permute.xlu0 %2103
  %2105 = vrot.lane.b32.xlu0 %v1420, 17
  %v2106 = vpop.permute.xlu0 %2105
  %2107 = vrot.lane.b32.xlu0 %v1424, 17
  %v2108 = vpop.permute.xlu0 %2107
  %2109 = vrot.lane.b32.xlu0 %v1421, 17
  %v2110 = vpop.permute.xlu0 %2109
  %2111 = vrot.lane.b32.xlu0 %v1425, 17
  %v2112 = vpop.permute.xlu0 %2111
  %2113 = vrot.lane.b32.xlu0 %v1422, 17
  %v2114 = vpop.permute.xlu0 %2113
  %2115 = vrot.lane.b32.xlu0 %v1426, 17
  %v2116 = vpop.permute.xlu0 %2115
  %v2117 = vsel %vm63, %v2110, %v2114
  %v2118 = vsel %vm63, %v2112, %v2116
  %v2119 = vsel %vm63, %v2106, %v2110
  %v2120 = vsel %vm63, %v2108, %v2112
  %v2121 = vsel %vm63, %v2102, %v2106
  %v2122 = vsel %vm63, %v2104, %v2108
  %v2123 = vsel %vm63, %v2114, %v2102
  %v2124 = vsel %vm63, %v2116, %v2104
  %v2125 = vld [vmem:[%s1] ss:$8 sm:$0xf]
  %v2127 = vlaneseq
  %v2128 = vshrl.u32 %v2127, 7
  %v2129 = vsub.s32 0, %v2128
  %v2130 = vrot.slane %v2125, %v2129
  %v2131 = vlaneseq
  %v2132 = vshrl.u32 %v2131, 7
  %v2133 = vsub.s32 1, %v2132
  %v2134 = vrot.slane %v2125, %v2133
  %v2135 = vlaneseq
  %v2136 = vshrl.u32 %v2135, 7
  %v2137 = vsub.s32 2, %v2136
  %v2138 = vrot.slane %v2125, %v2137
  %v2139 = vlaneseq
  %v2140 = vshrl.u32 %v2139, 7
  %v2141 = vsub.s32 3, %v2140
  %v2142 = vrot.slane %v2125, %v2141
  %v2147 = vmul.f32 %v2123, %v2130
  %v2148 = vmul.f32 %v2121, %v2134
  %v2149 = vmul.f32 %v2119, %v2138
  %v2150 = vmul.f32 %v2117, %v2142
  %v2151 = vmul.f32 %v2124, %v2130
  %v2152 = vmul.f32 %v2122, %v2134
  %v2153 = vmul.f32 %v2120, %v2138
  %v2154 = vmul.f32 %v2118, %v2142
  %v2155 = vpack.c.bf16 %v2151, %v2147
  %v2156 = vpack.c.bf16 %v2152, %v2148
  %v2157 = vpack.c.bf16 %v2153, %v2149
  %v2158 = vpack.c.bf16 %v2154, %v2150
  %2159 = vst [vmem:[#allocation3] sm:$0xff] %v2155
  %2160 = vst [vmem:[#allocation3 + $0x8] sm:$0xff] %v2156
  %2161 = vst [vmem:[#allocation3 + $0x10] sm:$0xff] %v2157
  %2162 = vst [vmem:[#allocation3 + $0x18] sm:$0xff] %v2158
  %2163 = vrot.lane.b32.xlu0 %v1419, 16
  %v2164 = vpop.permute.xlu0 %2163
  %2165 = vrot.lane.b32.xlu0 %v1423, 16
  %v2166 = vpop.permute.xlu0 %2165
  %2167 = vrot.lane.b32.xlu0 %v1420, 16
  %v2168 = vpop.permute.xlu0 %2167
  %2169 = vrot.lane.b32.xlu0 %v1424, 16
  %v2170 = vpop.permute.xlu0 %2169
  %2171 = vrot.lane.b32.xlu0 %v1421, 16
  %v2172 = vpop.permute.xlu0 %2171
  %2173 = vrot.lane.b32.xlu0 %v1425, 16
  %v2174 = vpop.permute.xlu0 %2173
  %2175 = vrot.lane.b32.xlu0 %v1422, 16
  %v2176 = vpop.permute.xlu0 %2175
  %2177 = vrot.lane.b32.xlu0 %v1426, 16
  %v2178 = vpop.permute.xlu0 %2177
  %v2179 = vsel %vm120, %v2172, %v2176
  %v2180 = vsel %vm120, %v2174, %v2178
  %v2181 = vsel %vm120, %v2168, %v2172
  %v2182 = vsel %vm120, %v2170, %v2174
  %v2183 = vsel %vm120, %v2164, %v2168
  %v2184 = vsel %vm120, %v2166, %v2170
  %v2185 = vsel %vm120, %v2176, %v2164
  %v2186 = vsel %vm120, %v2178, %v2166
  %v2187 = vld [vmem:[%s125] ss:$8 sm:$0xf]
  %v2189 = vlaneseq
  %v2190 = vshrl.u32 %v2189, 7
  %v2191 = vsub.s32 0, %v2190
  %v2192 = vrot.slane %v2187, %v2191
  %v2193 = vlaneseq
  %v2194 = vshrl.u32 %v2193, 7
  %v2195 = vsub.s32 1, %v2194
  %v2196 = vrot.slane %v2187, %v2195
  %v2197 = vlaneseq
  %v2198 = vshrl.u32 %v2197, 7
  %v2199 = vsub.s32 2, %v2198
  %v2200 = vrot.slane %v2187, %v2199
  %v2201 = vlaneseq
  %v2202 = vshrl.u32 %v2201, 7
  %v2203 = vsub.s32 3, %v2202
  %v2204 = vrot.slane %v2187, %v2203
  %v2209 = vmul.f32 %v2185, %v2192
  %v2210 = vmul.f32 %v2183, %v2196
  %v2211 = vmul.f32 %v2181, %v2200
  %v2212 = vmul.f32 %v2179, %v2204
  %v2213 = vmul.f32 %v2186, %v2192
  %v2214 = vmul.f32 %v2184, %v2196
  %v2215 = vmul.f32 %v2182, %v2200
  %v2216 = vmul.f32 %v2180, %v2204
  %v2217 = vpack.c.bf16 %v2213, %v2209
  %v2218 = vpack.c.bf16 %v2214, %v2210
  %v2219 = vpack.c.bf16 %v2215, %v2211
  %v2220 = vpack.c.bf16 %v2216, %v2212
  %2221 = vst [vmem:[#allocation3 + $0x20] sm:$0xff] %v2217
  %2222 = vst [vmem:[#allocation3 + $0x28] sm:$0xff] %v2218
  %2223 = vst [vmem:[#allocation3 + $0x30] sm:$0xff] %v2219
  %2224 = vst [vmem:[#allocation3 + $0x38] sm:$0xff] %v2220
  %2225 = vrot.lane.b32.xlu0 %v1419, 15
  %v2226 = vpop.permute.xlu0 %2225
  %2227 = vrot.lane.b32.xlu0 %v1423, 15
  %v2228 = vpop.permute.xlu0 %2227
  %2229 = vrot.lane.b32.xlu0 %v1420, 15
  %v2230 = vpop.permute.xlu0 %2229
  %2231 = vrot.lane.b32.xlu0 %v1424, 15
  %v2232 = vpop.permute.xlu0 %2231
  %2233 = vrot.lane.b32.xlu0 %v1421, 15
  %v2234 = vpop.permute.xlu0 %2233
  %2235 = vrot.lane.b32.xlu0 %v1425, 15
  %v2236 = vpop.permute.xlu0 %2235
  %2237 = vrot.lane.b32.xlu0 %v1422, 15
  %v2238 = vpop.permute.xlu0 %2237
  %2239 = vrot.lane.b32.xlu0 %v1426, 15
  %v2240 = vpop.permute.xlu0 %2239
  %v2241 = vsel %vm180, %v2234, %v2238
  %v2242 = vsel %vm180, %v2236, %v2240
  %v2243 = vsel %vm180, %v2230, %v2234
  %v2244 = vsel %vm180, %v2232, %v2236
  %v2245 = vsel %vm180, %v2226, %v2230
  %v2246 = vsel %vm180, %v2228, %v2232
  %v2247 = vsel %vm180, %v2238, %v2226
  %v2248 = vsel %vm180, %v2240, %v2228
  %v2249 = vld [vmem:[%s185] ss:$8 sm:$0xf]
  %v2251 = vlaneseq
  %v2252 = vshrl.u32 %v2251, 7
  %v2253 = vsub.s32 0, %v2252
  %v2254 = vrot.slane %v2249, %v2253
  %v2255 = vlaneseq
  %v2256 = vshrl.u32 %v2255, 7
  %v2257 = vsub.s32 1, %v2256
  %v2258 = vrot.slane %v2249, %v2257
  %v2259 = vlaneseq
  %v2260 = vshrl.u32 %v2259, 7
  %v2261 = vsub.s32 2, %v2260
  %v2262 = vrot.slane %v2249, %v2261
  %v2263 = vlaneseq
  %v2264 = vshrl.u32 %v2263, 7
  %v2265 = vsub.s32 3, %v2264
  %v2266 = vrot.slane %v2249, %v2265
  %v2271 = vmul.f32 %v2247, %v2254
  %v2272 = vmul.f32 %v2245, %v2258
  %v2273 = vmul.f32 %v2243, %v2262
  %v2274 = vmul.f32 %v2241, %v2266
  %v2275 = vmul.f32 %v2248, %v2254
  %v2276 = vmul.f32 %v2246, %v2258
  %v2277 = vmul.f32 %v2244, %v2262
  %v2278 = vmul.f32 %v2242, %v2266
  %v2279 = vpack.c.bf16 %v2275, %v2271
  %v2280 = vpack.c.bf16 %v2276, %v2272
  %v2281 = vpack.c.bf16 %v2277, %v2273
  %v2282 = vpack.c.bf16 %v2278, %v2274
  %2283 = vst [vmem:[#allocation3 + $0x40] sm:$0xff] %v2279
  %2284 = vst [vmem:[#allocation3 + $0x48] sm:$0xff] %v2280
  %2285 = vst [vmem:[#allocation3 + $0x50] sm:$0xff] %v2281
  %2286 = vst [vmem:[#allocation3 + $0x58] sm:$0xff] %v2282
  %2287 = vrot.lane.b32.xlu0 %v1419, 1
  %v2288 = vpop.permute.xlu0 %2287
  %2289 = vrot.lane.b32.xlu0 %v1423, 1
  %v2290 = vpop.permute.xlu0 %2289
  %2291 = vrot.lane.b32.xlu0 %v1420, 1
  %v2292 = vpop.permute.xlu0 %2291
  %2293 = vrot.lane.b32.xlu0 %v1424, 1
  %v2294 = vpop.permute.xlu0 %2293
  %2295 = vrot.lane.b32.xlu0 %v1421, 1
  %v2296 = vpop.permute.xlu0 %2295
  %2297 = vrot.lane.b32.xlu0 %v1425, 1
  %v2298 = vpop.permute.xlu0 %2297
  %2299 = vrot.lane.b32.xlu0 %v1422, 1
  %v2300 = vpop.permute.xlu0 %2299
  %2301 = vrot.lane.b32.xlu0 %v1426, 1
  %v2302 = vpop.permute.xlu0 %2301
  %v2303 = vsel %vm238, %v2296, %v2300
  %v2304 = vsel %vm238, %v2298, %v2302
  %v2305 = vsel %vm238, %v2292, %v2296
  %v2306 = vsel %vm238, %v2294, %v2298
  %v2307 = vsel %vm238, %v2288, %v2292
  %v2308 = vsel %vm238, %v2290, %v2294
  %v2309 = vsel %vm238, %v2300, %v2288
  %v2310 = vsel %vm238, %v2302, %v2290
  %v2311 = vld [vmem:[%s243] ss:$8 sm:$0xf]
  %v2313 = vlaneseq
  %v2314 = vshrl.u32 %v2313, 7
  %v2315 = vsub.s32 0, %v2314
  %v2316 = vrot.slane %v2311, %v2315
  %v2317 = vlaneseq
  %v2318 = vshrl.u32 %v2317, 7
  %v2319 = vsub.s32 1, %v2318
  %v2320 = vrot.slane %v2311, %v2319
  %v2321 = vlaneseq
  %v2322 = vshrl.u32 %v2321, 7
  %v2323 = vsub.s32 2, %v2322
  %v2324 = vrot.slane %v2311, %v2323
  %v2325 = vlaneseq
  %v2326 = vshrl.u32 %v2325, 7
  %v2327 = vsub.s32 3, %v2326
  %v2328 = vrot.slane %v2311, %v2327
  %v2333 = vmul.f32 %v2309, %v2316
  %v2334 = vmul.f32 %v2307, %v2320
  %v2335 = vmul.f32 %v2305, %v2324
  %v2336 = vmul.f32 %v2303, %v2328
  %v2337 = vmul.f32 %v2310, %v2316
  %v2338 = vmul.f32 %v2308, %v2320
  %v2339 = vmul.f32 %v2306, %v2324
  %v2340 = vmul.f32 %v2304, %v2328
  %v2341 = vpack.c.bf16 %v2337, %v2333
  %v2342 = vpack.c.bf16 %v2338, %v2334
  %v2343 = vpack.c.bf16 %v2339, %v2335
  %v2344 = vpack.c.bf16 %v2340, %v2336
  %2345 = vst [vmem:[#allocation3 + $0x60] sm:$0xff] %v2341
  %2346 = vst [vmem:[#allocation3 + $0x68] sm:$0xff] %v2342
  %2347 = vst [vmem:[#allocation3 + $0x70] sm:$0xff] %v2343
  %2348 = vst [vmem:[#allocation3 + $0x78] sm:$0xff] %v2344
  %v2349 = vpack.c.bf16 %v1423, %v1419
  %v2350 = vpack.c.bf16 %v1424, %v1420
  %v2351 = vpack.c.bf16 %v1425, %v1421
  %v2352 = vpack.c.bf16 %v1426, %v1422
  %2353 = vst [vmem:[#allocation3 + $0x80] sm:$0xff] %v2349
  %2354 = vst [vmem:[#allocation3 + $0x88] sm:$0xff] %v2350
  %2355 = vst [vmem:[#allocation3 + $0x90] sm:$0xff] %v2351
  %2356 = vst [vmem:[#allocation3 + $0x98] sm:$0xff] %v2352
  %2357 = vrot.lane.b32.xlu0 %v1419, 127
  %v2358 = vpop.permute.xlu0 %2357
  %2359 = vrot.lane.b32.xlu0 %v1423, 127
  %v2360 = vpop.permute.xlu0 %2359
  %2361 = vrot.lane.b32.xlu0 %v1420, 127
  %v2362 = vpop.permute.xlu0 %2361
  %2363 = vrot.lane.b32.xlu0 %v1424, 127
  %v2364 = vpop.permute.xlu0 %2363
  %2365 = vrot.lane.b32.xlu0 %v1421, 127
  %v2366 = vpop.permute.xlu0 %2365
  %2367 = vrot.lane.b32.xlu0 %v1425, 127
  %v2368 = vpop.permute.xlu0 %2367
  %2369 = vrot.lane.b32.xlu0 %v1422, 127
  %v2370 = vpop.permute.xlu0 %2369
  %2371 = vrot.lane.b32.xlu0 %v1426, 127
  %v2372 = vpop.permute.xlu0 %2371
  %v2373 = vsel %vm316, %v2366, %v2370
  %v2374 = vsel %vm316, %v2368, %v2372
  %v2375 = vsel %vm316, %v2362, %v2366
  %v2376 = vsel %vm316, %v2364, %v2368
  %v2377 = vsel %vm316, %v2358, %v2362
  %v2378 = vsel %vm316, %v2360, %v2364
  %v2379 = vsel %vm316, %v2370, %v2358
  %v2380 = vsel %vm316, %v2372, %v2360
  %v2381 = vld [vmem:[%s321] ss:$8 sm:$0xf]
  %v2383 = vlaneseq
  %v2384 = vshrl.u32 %v2383, 7
  %v2385 = vsub.s32 0, %v2384
  %v2386 = vrot.slane %v2381, %v2385
  %v2387 = vlaneseq
  %v2388 = vshrl.u32 %v2387, 7
  %v2389 = vsub.s32 1, %v2388
  %v2390 = vrot.slane %v2381, %v2389
  %v2391 = vlaneseq
  %v2392 = vshrl.u32 %v2391, 7
  %v2393 = vsub.s32 2, %v2392
  %v2394 = vrot.slane %v2381, %v2393
  %v2395 = vlaneseq
  %v2396 = vshrl.u32 %v2395, 7
  %v2397 = vsub.s32 3, %v2396
  %v2398 = vrot.slane %v2381, %v2397
  %v2403 = vmul.f32 %v2377, %v2386
  %v2404 = vmul.f32 %v2375, %v2390
  %v2405 = vmul.f32 %v2373, %v2394
  %v2406 = vmul.f32 %v2379, %v2398
  %v2407 = vmul.f32 %v2378, %v2386
  %v2408 = vmul.f32 %v2376, %v2390
  %v2409 = vmul.f32 %v2374, %v2394
  %v2410 = vmul.f32 %v2380, %v2398
  %v2411 = vpack.c.bf16 %v2407, %v2403
  %v2412 = vpack.c.bf16 %v2408, %v2404
  %v2413 = vpack.c.bf16 %v2409, %v2405
  %v2414 = vpack.c.bf16 %v2410, %v2406
  %2415 = vst [vmem:[#allocation3 + $0xa0] sm:$0xff] %v2411
  %2416 = vst [vmem:[#allocation3 + $0xa8] sm:$0xff] %v2412
  %2417 = vst [vmem:[#allocation3 + $0xb0] sm:$0xff] %v2413
  %2418 = vst [vmem:[#allocation3 + $0xb8] sm:$0xff] %v2414
  %2419 = vrot.lane.b32.xlu0 %v1419, 113
  %v2420 = vpop.permute.xlu0 %2419
  %2421 = vrot.lane.b32.xlu0 %v1423, 113
  %v2422 = vpop.permute.xlu0 %2421
  %2423 = vrot.lane.b32.xlu0 %v1420, 113
  %v2424 = vpop.permute.xlu0 %2423
  %2425 = vrot.lane.b32.xlu0 %v1424, 113
  %v2426 = vpop.permute.xlu0 %2425
  %2427 = vrot.lane.b32.xlu0 %v1421, 113
  %v2428 = vpop.permute.xlu0 %2427
  %2429 = vrot.lane.b32.xlu0 %v1425, 113
  %v2430 = vpop.permute.xlu0 %2429
  %2431 = vrot.lane.b32.xlu0 %v1422, 113
  %v2432 = vpop.permute.xlu0 %2431
  %2433 = vrot.lane.b32.xlu0 %v1426, 113
  %v2434 = vpop.permute.xlu0 %2433
  %v2435 = vsel %vm376, %v2428, %v2432
  %v2436 = vsel %vm376, %v2430, %v2434
  %v2437 = vsel %vm376, %v2424, %v2428
  %v2438 = vsel %vm376, %v2426, %v2430
  %v2439 = vsel %vm376, %v2420, %v2424
  %v2440 = vsel %vm376, %v2422, %v2426
  %v2441 = vsel %vm376, %v2432, %v2420
  %v2442 = vsel %vm376, %v2434, %v2422
  %v2443 = vld [vmem:[%s381] ss:$8 sm:$0xf]
  %v2445 = vlaneseq
  %v2446 = vshrl.u32 %v2445, 7
  %v2447 = vsub.s32 0, %v2446
  %v2448 = vrot.slane %v2443, %v2447
  %v2449 = vlaneseq
  %v2450 = vshrl.u32 %v2449, 7
  %v2451 = vsub.s32 1, %v2450
  %v2452 = vrot.slane %v2443, %v2451
  %v2453 = vlaneseq
  %v2454 = vshrl.u32 %v2453, 7
  %v2455 = vsub.s32 2, %v2454
  %v2456 = vrot.slane %v2443, %v2455
  %v2457 = vlaneseq
  %v2458 = vshrl.u32 %v2457, 7
  %v2459 = vsub.s32 3, %v2458
  %v2460 = vrot.slane %v2443, %v2459
  %v2465 = vmul.f32 %v2439, %v2448
  %v2466 = vmul.f32 %v2437, %v2452
  %v2467 = vmul.f32 %v2435, %v2456
  %v2468 = vmul.f32 %v2441, %v2460
  %v2469 = vmul.f32 %v2440, %v2448
  %v2470 = vmul.f32 %v2438, %v2452
  %v2471 = vmul.f32 %v2436, %v2456
  %v2472 = vmul.f32 %v2442, %v2460
  %v2473 = vpack.c.bf16 %v2469, %v2465
  %v2474 = vpack.c.bf16 %v2470, %v2466
  %v2475 = vpack.c.bf16 %v2471, %v2467
  %v2476 = vpack.c.bf16 %v2472, %v2468
  %2477 = vst [vmem:[#allocation3 + $0xc0] sm:$0xff] %v2473
  %2478 = vst [vmem:[#allocation3 + $0xc8] sm:$0xff] %v2474
  %2479 = vst [vmem:[#allocation3 + $0xd0] sm:$0xff] %v2475
  %2480 = vst [vmem:[#allocation3 + $0xd8] sm:$0xff] %v2476
  %2481 = vrot.lane.b32.xlu0 %v1419, 112
  %v2482 = vpop.permute.xlu0 %2481
  %2483 = vrot.lane.b32.xlu0 %v1423, 112
  %v2484 = vpop.permute.xlu0 %2483
  %2485 = vrot.lane.b32.xlu0 %v1420, 112
  %v2486 = vpop.permute.xlu0 %2485
  %2487 = vrot.lane.b32.xlu0 %v1424, 112
  %v2488 = vpop.permute.xlu0 %2487
  %2489 = vrot.lane.b32.xlu0 %v1421, 112
  %v2490 = vpop.permute.xlu0 %2489
  %2491 = vrot.lane.b32.xlu0 %v1425, 112
  %v2492 = vpop.permute.xlu0 %2491
  %2493 = vrot.lane.b32.xlu0 %v1422, 112
  %v2494 = vpop.permute.xlu0 %2493
  %2495 = vrot.lane.b32.xlu0 %v1426, 112
  %v2496 = vpop.permute.xlu0 %2495
  %v2497 = vsel %vm434, %v2490, %v2494
  %v2498 = vsel %vm434, %v2492, %v2496
  %v2499 = vsel %vm434, %v2486, %v2490
  %v2500 = vsel %vm434, %v2488, %v2492
  %v2501 = vsel %vm434, %v2482, %v2486
  %v2502 = vsel %vm434, %v2484, %v2488
  %v2503 = vsel %vm434, %v2494, %v2482
  %v2504 = vsel %vm434, %v2496, %v2484
  %v2505 = vld [vmem:[%s439] ss:$8 sm:$0xf]
  %v2507 = vlaneseq
  %v2508 = vshrl.u32 %v2507, 7
  %v2509 = vsub.s32 0, %v2508
  %v2510 = vrot.slane %v2505, %v2509
  %v2511 = vlaneseq
  %v2512 = vshrl.u32 %v2511, 7
  %v2513 = vsub.s32 1, %v2512
  %v2514 = vrot.slane %v2505, %v2513
  %v2515 = vlaneseq
  %v2516 = vshrl.u32 %v2515, 7
  %v2517 = vsub.s32 2, %v2516
  %v2518 = vrot.slane %v2505, %v2517
  %v2519 = vlaneseq
  %v2520 = vshrl.u32 %v2519, 7
  %v2521 = vsub.s32 3, %v2520
  %v2522 = vrot.slane %v2505, %v2521
  %v2527 = vmul.f32 %v2501, %v2510
  %v2528 = vmul.f32 %v2499, %v2514
  %v2529 = vmul.f32 %v2497, %v2518
  %v2530 = vmul.f32 %v2503, %v2522
  %v2531 = vmul.f32 %v2502, %v2510
  %v2532 = vmul.f32 %v2500, %v2514
  %v2533 = vmul.f32 %v2498, %v2518
  %v2534 = vmul.f32 %v2504, %v2522
  %v2535 = vpack.c.bf16 %v2531, %v2527
  %v2536 = vpack.c.bf16 %v2532, %v2528
  %v2537 = vpack.c.bf16 %v2533, %v2529
  %v2538 = vpack.c.bf16 %v2534, %v2530
  %2539 = vst [vmem:[#allocation3 + $0xe0] sm:$0xff] %v2535
  %2540 = vst [vmem:[#allocation3 + $0xe8] sm:$0xff] %v2536
  %2541 = vst [vmem:[#allocation3 + $0xf0] sm:$0xff] %v2537
  %2542 = vst [vmem:[#allocation3 + $0xf8] sm:$0xff] %v2538
  %2543 = vrot.lane.b32.xlu0 %v1419, 111
  %v2544 = vpop.permute.xlu0 %2543
  %2545 = vrot.lane.b32.xlu0 %v1423, 111
  %v2546 = vpop.permute.xlu0 %2545
  %2547 = vrot.lane.b32.xlu0 %v1420, 111
  %v2548 = vpop.permute.xlu0 %2547
  %2549 = vrot.lane.b32.xlu0 %v1424, 111
  %v2550 = vpop.permute.xlu0 %2549
  %2551 = vrot.lane.b32.xlu0 %v1421, 111
  %v2552 = vpop.permute.xlu0 %2551
  %2553 = vrot.lane.b32.xlu0 %v1425, 111
  %v2554 = vpop.permute.xlu0 %2553
  %2555 = vrot.lane.b32.xlu0 %v1422, 111
  %v2556 = vpop.permute.xlu0 %2555
  %2557 = vrot.lane.b32.xlu0 %v1426, 111
  %v2558 = vpop.permute.xlu0 %2557
  %v2559 = vsel %vm494, %v2552, %v2556
  %v2560 = vsel %vm494, %v2554, %v2558
  %v2561 = vsel %vm494, %v2548, %v2552
  %v2562 = vsel %vm494, %v2550, %v2554
  %v2563 = vsel %vm494, %v2544, %v2548
  %v2564 = vsel %vm494, %v2546, %v2550
  %v2565 = vsel %vm494, %v2556, %v2544
  %v2566 = vsel %vm494, %v2558, %v2546
  %v2567 = vld [vmem:[%s499] ss:$8 sm:$0xf]
  %v2569 = vlaneseq
  %v2570 = vshrl.u32 %v2569, 7
  %v2571 = vsub.s32 0, %v2570
  %v2572 = vrot.slane %v2567, %v2571
  %v2573 = vlaneseq
  %v2574 = vshrl.u32 %v2573, 7
  %v2575 = vsub.s32 1, %v2574
  %v2576 = vrot.slane %v2567, %v2575
  %v2577 = vlaneseq
  %v2578 = vshrl.u32 %v2577, 7
  %v2579 = vsub.s32 2, %v2578
  %v2580 = vrot.slane %v2567, %v2579
  %v2581 = vlaneseq
  %v2582 = vshrl.u32 %v2581, 7
  %v2583 = vsub.s32 3, %v2582
  %v2584 = vrot.slane %v2567, %v2583
  %v2589 = vmul.f32 %v2563, %v2572
  %v2590 = vmul.f32 %v2561, %v2576
  %v2591 = vmul.f32 %v2559, %v2580
  %v2592 = vmul.f32 %v2565, %v2584
  %v2593 = vmul.f32 %v2564, %v2572
  %v2594 = vmul.f32 %v2562, %v2576
  %v2595 = vmul.f32 %v2560, %v2580
  %v2596 = vmul.f32 %v2566, %v2584
  %v2597 = vpack.c.bf16 %v2593, %v2589
  %v2598 = vpack.c.bf16 %v2594, %v2590
  %v2599 = vpack.c.bf16 %v2595, %v2591
  %v2600 = vpack.c.bf16 %v2596, %v2592
  %2601 = vst [vmem:[#allocation3 + $0x100] sm:$0xff] %v2597
  %2602 = vst [vmem:[#allocation3 + $0x108] sm:$0xff] %v2598
  %2603 = vst [vmem:[#allocation3 + $0x110] sm:$0xff] %v2599
  %2604 = vst [vmem:[#allocation3 + $0x118] sm:$0xff] %v2600
  %v2605 = vld [vmem:[%s6] sm:$0xff]
  %v2606 = vld [vmem:[%s6 + $0x8] sm:$0xff]
  %v2607 = vld [vmem:[%s6 + $0x10] sm:$0xff]
  %v2608 = vld [vmem:[#allocation3] sm:$0xff]
  %v2609 = vld [vmem:[#allocation3 + $0x8] sm:$0xff]
  %v2610 = vld [vmem:[#allocation3 + $0x10] sm:$0xff]
  %v2611 = vld [vmem:[#allocation3 + $0x18] sm:$0xff]
  %v2612 = vld [vmem:[#allocation3 + $0x20] sm:$0xff]
  %v2613 = vld [vmem:[#allocation3 + $0x28] sm:$0xff]
  %v2614 = vld [vmem:[#allocation3 + $0x30] sm:$0xff]
  %v2615 = vld [vmem:[#allocation3 + $0x38] sm:$0xff]
  %v2616 = vld [vmem:[#allocation3 + $0x40] sm:$0xff]
  %v2617 = vld [vmem:[#allocation3 + $0x48] sm:$0xff]
  %v2618 = vld [vmem:[#allocation3 + $0x50] sm:$0xff]
  %v2619 = vld [vmem:[#allocation3 + $0x58] sm:$0xff]
  %v2620 = vld [vmem:[#allocation3 + $0x60] sm:$0xff]
  %v2621 = vld [vmem:[#allocation3 + $0x68] sm:$0xff]
  %v2622 = vld [vmem:[#allocation3 + $0x70] sm:$0xff]
  %v2623 = vld [vmem:[#allocation3 + $0x78] sm:$0xff]
  %v2624 = vld [vmem:[#allocation3 + $0x80] sm:$0xff]
  %v2625 = vld [vmem:[#allocation3 + $0x88] sm:$0xff]
  %v2626 = vld [vmem:[#allocation3 + $0x90] sm:$0xff]
  %v2627 = vld [vmem:[#allocation3 + $0x98] sm:$0xff]
  %v2628 = vld [vmem:[#allocation3 + $0xa0] sm:$0xff]
  %v2629 = vld [vmem:[#allocation3 + $0xa8] sm:$0xff]
  %v2630 = vld [vmem:[#allocation3 + $0xb0] sm:$0xff]
  %v2631 = vld [vmem:[#allocation3 + $0xb8] sm:$0xff]
  %v2632 = vld [vmem:[#allocation3 + $0xc0] sm:$0xff]
  %v2633 = vld [vmem:[#allocation3 + $0xc8] sm:$0xff]
  %v2634 = vld [vmem:[#allocation3 + $0xd0] sm:$0xff]
  %v2635 = vld [vmem:[#allocation3 + $0xd8] sm:$0xff]
  %v2636 = vld [vmem:[#allocation3 + $0xe0] sm:$0xff]
  %v2637 = vld [vmem:[#allocation3 + $0xe8] sm:$0xff]
  %v2638 = vld [vmem:[#allocation3 + $0xf0] sm:$0xff]
  %v2639 = vld [vmem:[#allocation3 + $0xf8] sm:$0xff]
  %v2640 = vld [vmem:[#allocation3 + $0x100] sm:$0xff]
  %v2641 = vld [vmem:[#allocation3 + $0x108] sm:$0xff]
  %v2642 = vld [vmem:[#allocation3 + $0x110] sm:$0xff]
  %v2643 = vld [vmem:[#allocation3 + $0x118] sm:$0xff]
  %v2644 = vld [vmem:[%s7] sm:$0xff]
  %v2645 = vld [vmem:[%s7 + $0x8] sm:$0xff]
  %v2646 = vld [vmem:[%s7 + $0x10] sm:$0xff]
  %2648 = vset.pattern.permute.xlu0 0
  %2649 = vperm.xlu0 %2648, %v2644
  %v2650 = vpop.permute.xlu0 %2649
  %2653 = vset.pattern.permute.xlu0 0
  %2654 = vperm.xlu0 %2653, %v2645
  %v2655 = vpop.permute.xlu0 %2654
  %2658 = vset.pattern.permute.xlu0 0
  %2659 = vperm.xlu0 %2658, %v2646
  %v2660 = vpop.permute.xlu0 %2659
  %v2665 = vunpack.c.l.b16 %v2605
  %v2666 = vunpack.c.h.b16 %v2605
  %v2667 = vunpack.c.l.b16 %v2606
  %v2668 = vunpack.c.h.b16 %v2606
  %v2669 = vunpack.c.l.b16 %v2607
  %v2670 = vunpack.c.h.b16 %v2607
  %v2671 = vpack.c.b16 %v2667, %v2665
  %v2672 = vpack.c.b16 %v2668, %v2666
  %v2673 = vpack.c.b16 %v2669, %v2669
  %v2674 = vpack.c.b16 %v2670, %v2670
  %v2678 = vsel %vm1310, %v2672, 0
  %v2681 = vsel %vm1310, %v2674, 0
  %2683 = vmatprep.subr.bf16.mxu0 %v2609
  %2684 = vmatpush1.bf16.msra.mxu0 %v2608
  %2685 = vmatprep.subr.bf16.mxu0 %v2613
  %2686 = vmatpush1.bf16.msra.mxu0 %v2612
  %2687 = vmatprep.subr.bf16.mxu0 %v2617
  %2688 = vmatpush1.bf16.msra.mxu0 %v2616
  %2689 = vmatprep.subr.bf16.mxu0 %v2621
  %2690 = vmatpush1.bf16.msra.mxu0 %v2620
  %2691 = vmatprep.subr.bf16.mxu0 %v2625
  %2692 = vmatpush1.bf16.msra.mxu0 %v2624
  %2693 = vmatprep.subr.bf16.mxu0 %v2629
  %2694 = vmatpush1.bf16.msra.mxu0 %v2628
  %2695 = vmatprep.subr.bf16.mxu0 %v2633
  %2696 = vmatpush1.bf16.msra.mxu0 %v2632
  %2697 = vmatprep.subr.bf16.mxu0 %v2637
  %2698 = vmatpush1.bf16.msra.mxu0 %v2636
  %2699 = vmatprep.subr.bf16.mxu0 %v2641
  %2700 = vmatpush1.bf16.msra.mxu0 %v2640
  %2701 = vmatprep.subr.bf16.mxu0 0
  %2702 = vmatpush1.bf16.msra.mxu0 0
  %2703 = vmatprep.subr.bf16.mxu0 0
  %2704 = vmatpush1.bf16.msra.mxu0 0
  %2705 = vmatprep.subr.bf16.mxu0 0
  %2706 = vmatpush1.bf16.msra.mxu0 0
  %2707 = vmatprep.subr.bf16.mxu0 0
  %2708 = vmatpush1.bf16.msra.mxu0 0
  %2709 = vmatprep.subr.bf16.mxu0 0
  %2710 = vmatpush1.bf16.msra.mxu0 0
  %2711 = vmatprep.subr.bf16.mxu0 0
  %2712 = vmatpush1.bf16.msra.mxu0 0
  %2713 = vmatprep.subr.bf16.mxu0 0
  %2714 = vmatpush1.bf16.msra.mxu0 0
  %2715 = vmatprep.mubr.bf16.mxu0 %v2678
  %2716 = vmatmul.mubr.bf16.gmra.mrb[0].mxu0 %v2671
  %v2717 = vpop.f32.mrb[0].mxu0
  %v2718 = vadd.f32 %v2650, %v2717
  %v2719 = vpop.f32.mrb[0].mxu0
  %v2720 = vadd.f32 %v2650, %v2719
  %v2721 = vpop.f32.mrb[0].mxu0
  %v2722 = vadd.f32 %v2655, %v2721
  %v2723 = vpop.f32.mrb[0].mxu0
  %v2724 = vadd.f32 %v2655, %v2723
  %2725 = vmatprep.mubr.bf16.mxu0 %v2681
  %2726 = vmatmul.mubr.bf16.gmra.mrb[0].mxu0 %v2673
  %v2727 = vpop.f32.mrb[0].mxu0
  %v2728 = vadd.f32 %v2660, %v2727
  %v2729 = vpop.f32.mrb[0].mxu0
  %v2730 = vadd.f32 %v2660, %v2729
  %v2731 = vpop.f32.mrb[0].mxu0
  %v2732 = vpop.f32.mrb[0].mxu0
  %2733 = vdwg.mxu0
  %2734 = vmatprep.subr.bf16.mxu0 %v2611
  %2735 = vmatpush1.bf16.msra.mxu0 %v2610
  %2736 = vmatprep.subr.bf16.mxu0 %v2615
  %2737 = vmatpush1.bf16.msra.mxu0 %v2614
  %2738 = vmatprep.subr.bf16.mxu0 %v2619
  %2739 = vmatpush1.bf16.msra.mxu0 %v2618
  %2740 = vmatprep.subr.bf16.mxu0 %v2623
  %2741 = vmatpush1.bf16.msra.mxu0 %v2622
  %2742 = vmatprep.subr.bf16.mxu0 %v2627
  %2743 = vmatpush1.bf16.msra.mxu0 %v2626
  %2744 = vmatprep.subr.bf16.mxu0 %v2631
  %2745 = vmatpush1.bf16.msra.mxu0 %v2630
  %2746 = vmatprep.subr.bf16.mxu0 %v2635
  %2747 = vmatpush1.bf16.msra.mxu0 %v2634
  %2748 = vmatprep.subr.bf16.mxu0 %v2639
  %2749 = vmatpush1.bf16.msra.mxu0 %v2638
  %2750 = vmatprep.subr.bf16.mxu0 %v2643
  %2751 = vmatpush1.bf16.msra.mxu0 %v2642
  %2752 = vmatprep.subr.bf16.mxu0 0
  %2753 = vmatpush1.bf16.msra.mxu0 0
  %2754 = vmatprep.subr.bf16.mxu0 0
  %2755 = vmatpush1.bf16.msra.mxu0 0
  %2756 = vmatprep.subr.bf16.mxu0 0
  %2757 = vmatpush1.bf16.msra.mxu0 0
  %2758 = vmatprep.subr.bf16.mxu0 0
  %2759 = vmatpush1.bf16.msra.mxu0 0
  %2760 = vmatprep.subr.bf16.mxu0 0
  %2761 = vmatpush1.bf16.msra.mxu0 0
  %2762 = vmatprep.subr.bf16.mxu0 0
  %2763 = vmatpush1.bf16.msra.mxu0 0
  %2764 = vmatprep.subr.bf16.mxu0 0
  %2765 = vmatpush1.bf16.msra.mxu0 0
  %2766 = vmatprep.mubr.bf16.mxu0 %v2678
  %2767 = vmatmul.mubr.bf16.gmra.mrb[0].mxu0 %v2671
  %v2768 = vpop.f32.mrb[0].mxu0
  %v2769 = vadd.f32 %v2650, %v2768
  %v2770 = vpop.f32.mrb[0].mxu0
  %v2771 = vadd.f32 %v2650, %v2770
  %v2772 = vpop.f32.mrb[0].mxu0
  %v2773 = vadd.f32 %v2655, %v2772
  %v2774 = vpop.f32.mrb[0].mxu0
  %v2775 = vadd.f32 %v2655, %v2774
  %2776 = vmatprep.mubr.bf16.mxu0 %v2681
  %2777 = vmatmul.mubr.bf16.gmra.mrb[0].mxu0 %v2673
  %v2778 = vpop.f32.mrb[0].mxu0
  %v2779 = vadd.f32 %v2660, %v2778
  %v2780 = vpop.f32.mrb[0].mxu0
  %v2781 = vadd.f32 %v2660, %v2780
  %v2782 = vpop.f32.mrb[0].mxu0
  %v2783 = vpop.f32.mrb[0].mxu0
  %2784 = vdwg.mxu0
  %v2785 = vmax.f32 %v2718, 0.0
  %v2786 = vmax.f32 %v2720, 0.0
  %v2787 = vmax.f32 %v2769, 0.0
  %v2788 = vmax.f32 %v2771, 0.0
  %v2789 = vmax.f32 %v2722, 0.0
  %v2790 = vmax.f32 %v2724, 0.0
  %v2791 = vmax.f32 %v2773, 0.0
  %v2792 = vmax.f32 %v2775, 0.0
  %v2793 = vadd.f32 %v2728, %v2054
  %v2794 = vadd.f32 %v2730, %v2056
  %v2795 = vadd.f32 %v2779, %v2095
  %v2796 = vadd.f32 %v2781, %v2097
  %2797 = vrot.lane.b32.xlu0 %v2793, 17
  %v2798 = vpop.permute.xlu0 %2797
  %2799 = vrot.lane.b32.xlu0 %v2794, 17
  %v2800 = vpop.permute.xlu0 %2799
  %2801 = vrot.lane.b32.xlu0 %v2795, 17
  %v2802 = vpop.permute.xlu0 %2801
  %2803 = vrot.lane.b32.xlu0 %v2796, 17
  %v2804 = vpop.permute.xlu0 %2803
  %v2805 = vsel %vm63, %v2802, %v2804
  %v2806 = vsel %vm63, %v2800, %v2802
  %v2807 = vsel %vm63, %v2798, %v2800
  %v2808 = vsel %vm63, %v2804, %v2798
  %v2809 = vld [vmem:[%s1] ss:$8 sm:$0xf]
  %v2811 = vlaneseq
  %v2812 = vshrl.u32 %v2811, 7
  %v2813 = vsub.s32 0, %v2812
  %v2814 = vrot.slane %v2809, %v2813
  %v2815 = vlaneseq
  %v2816 = vshrl.u32 %v2815, 7
  %v2817 = vsub.s32 1, %v2816
  %v2818 = vrot.slane %v2809, %v2817
  %v2819 = vlaneseq
  %v2820 = vshrl.u32 %v2819, 7
  %v2821 = vsub.s32 2, %v2820
  %v2822 = vrot.slane %v2809, %v2821
  %v2823 = vlaneseq
  %v2824 = vshrl.u32 %v2823, 7
  %v2825 = vsub.s32 3, %v2824
  %v2826 = vrot.slane %v2809, %v2825
  %v2831 = vmul.f32 %v2808, %v2814
  %v2832 = vmul.f32 %v2807, %v2818
  %v2833 = vmul.f32 %v2806, %v2822
  %v2834 = vmul.f32 %v2805, %v2826
  %v2835 = vpack.c.bf16 %v2831, %v2831
  %v2836 = vpack.c.bf16 %v2832, %v2832
  %v2837 = vpack.c.bf16 %v2833, %v2833
  %v2838 = vpack.c.bf16 %v2834, %v2834
  %v2843 = vunpack.c.l.b16 %v2835
  %v2844 = vunpack.c.l.b16 %v2836
  %v2845 = vunpack.c.l.b16 %v2837
  %v2846 = vunpack.c.l.b16 %v2838
  %v2847 = vpack.c.b16 %v2844, %v2843
  %v2848 = vpack.c.b16 %v2846, %v2845
  %2851 = vst [vmem:[#allocation4] sm:$0xff] %v2847
  %2852 = vst [vmem:[#allocation4 + $0x8] sm:$0xff] %v2848
  %2853 = vrot.lane.b32.xlu0 %v2793, 16
  %v2854 = vpop.permute.xlu0 %2853
  %2855 = vrot.lane.b32.xlu0 %v2794, 16
  %v2856 = vpop.permute.xlu0 %2855
  %2857 = vrot.lane.b32.xlu0 %v2795, 16
  %v2858 = vpop.permute.xlu0 %2857
  %2859 = vrot.lane.b32.xlu0 %v2796, 16
  %v2860 = vpop.permute.xlu0 %2859
  %v2861 = vsel %vm120, %v2858, %v2860
  %v2862 = vsel %vm120, %v2856, %v2858
  %v2863 = vsel %vm120, %v2854, %v2856
  %v2864 = vsel %vm120, %v2860, %v2854
  %v2865 = vld [vmem:[%s125] ss:$8 sm:$0xf]
  %v2867 = vlaneseq
  %v2868 = vshrl.u32 %v2867, 7
  %v2869 = vsub.s32 0, %v2868
  %v2870 = vrot.slane %v2865, %v2869
  %v2871 = vlaneseq
  %v2872 = vshrl.u32 %v2871, 7
  %v2873 = vsub.s32 1, %v2872
  %v2874 = vrot.slane %v2865, %v2873
  %v2875 = vlaneseq
  %v2876 = vshrl.u32 %v2875, 7
  %v2877 = vsub.s32 2, %v2876
  %v2878 = vrot.slane %v2865, %v2877
  %v2879 = vlaneseq
  %v2880 = vshrl.u32 %v2879, 7
  %v2881 = vsub.s32 3, %v2880
  %v2882 = vrot.slane %v2865, %v2881
  %v2887 = vmul.f32 %v2864, %v2870
  %v2888 = vmul.f32 %v2863, %v2874
  %v2889 = vmul.f32 %v2862, %v2878
  %v2890 = vmul.f32 %v2861, %v2882
  %v2891 = vpack.c.bf16 %v2887, %v2887
  %v2892 = vpack.c.bf16 %v2888, %v2888
  %v2893 = vpack.c.bf16 %v2889, %v2889
  %v2894 = vpack.c.bf16 %v2890, %v2890
  %v2899 = vunpack.c.l.b16 %v2891
  %v2900 = vunpack.c.l.b16 %v2892
  %v2901 = vunpack.c.l.b16 %v2893
  %v2902 = vunpack.c.l.b16 %v2894
  %v2903 = vpack.c.b16 %v2900, %v2899
  %v2904 = vpack.c.b16 %v2902, %v2901
  %2907 = vst [vmem:[#allocation4 + $0x10] sm:$0xff] %v2903
  %2908 = vst [vmem:[#allocation4 + $0x18] sm:$0xff] %v2904
  %2909 = vrot.lane.b32.xlu0 %v2793, 15
  %v2910 = vpop.permute.xlu0 %2909
  %2911 = vrot.lane.b32.xlu0 %v2794, 15
  %v2912 = vpop.permute.xlu0 %2911
  %2913 = vrot.lane.b32.xlu0 %v2795, 15
  %v2914 = vpop.permute.xlu0 %2913
  %2915 = vrot.lane.b32.xlu0 %v2796, 15
  %v2916 = vpop.permute.xlu0 %2915
  %v2917 = vsel %vm180, %v2914, %v2916
  %v2918 = vsel %vm180, %v2912, %v2914
  %v2919 = vsel %vm180, %v2910, %v2912
  %v2920 = vsel %vm180, %v2916, %v2910
  %v2921 = vld [vmem:[%s185] ss:$8 sm:$0xf]
  %v2923 = vlaneseq
  %v2924 = vshrl.u32 %v2923, 7
  %v2925 = vsub.s32 0, %v2924
  %v2926 = vrot.slane %v2921, %v2925
  %v2927 = vlaneseq
  %v2928 = vshrl.u32 %v2927, 7
  %v2929 = vsub.s32 1, %v2928
  %v2930 = vrot.slane %v2921, %v2929
  %v2931 = vlaneseq
  %v2932 = vshrl.u32 %v2931, 7
  %v2933 = vsub.s32 2, %v2932
  %v2934 = vrot.slane %v2921, %v2933
  %v2935 = vlaneseq
  %v2936 = vshrl.u32 %v2935, 7
  %v2937 = vsub.s32 3, %v2936
  %v2938 = vrot.slane %v2921, %v2937
  %v2943 = vmul.f32 %v2920, %v2926
  %v2944 = vmul.f32 %v2919, %v2930
  %v2945 = vmul.f32 %v2918, %v2934
  %v2946 = vmul.f32 %v2917, %v2938
  %v2947 = vpack.c.bf16 %v2943, %v2943
  %v2948 = vpack.c.bf16 %v2944, %v2944
  %v2949 = vpack.c.bf16 %v2945, %v2945
  %v2950 = vpack.c.bf16 %v2946, %v2946
  %v2955 = vunpack.c.l.b16 %v2947
  %v2956 = vunpack.c.l.b16 %v2948
  %v2957 = vunpack.c.l.b16 %v2949
  %v2958 = vunpack.c.l.b16 %v2950
  %v2959 = vpack.c.b16 %v2956, %v2955
  %v2960 = vpack.c.b16 %v2958, %v2957
  %2963 = vst [vmem:[#allocation4 + $0x20] sm:$0xff] %v2959
  %2964 = vst [vmem:[#allocation4 + $0x28] sm:$0xff] %v2960
  %2965 = vrot.lane.b32.xlu0 %v2793, 1
  %v2966 = vpop.permute.xlu0 %2965
  %2967 = vrot.lane.b32.xlu0 %v2794, 1
  %v2968 = vpop.permute.xlu0 %2967
  %2969 = vrot.lane.b32.xlu0 %v2795, 1
  %v2970 = vpop.permute.xlu0 %2969
  %2971 = vrot.lane.b32.xlu0 %v2796, 1
  %v2972 = vpop.permute.xlu0 %2971
  %v2973 = vsel %vm238, %v2970, %v2972
  %v2974 = vsel %vm238, %v2968, %v2970
  %v2975 = vsel %vm238, %v2966, %v2968
  %v2976 = vsel %vm238, %v2972, %v2966
  %v2977 = vld [vmem:[%s243] ss:$8 sm:$0xf]
  %v2979 = vlaneseq
  %v2980 = vshrl.u32 %v2979, 7
  %v2981 = vsub.s32 0, %v2980
  %v2982 = vrot.slane %v2977, %v2981
  %v2983 = vlaneseq
  %v2984 = vshrl.u32 %v2983, 7
  %v2985 = vsub.s32 1, %v2984
  %v2986 = vrot.slane %v2977, %v2985
  %v2987 = vlaneseq
  %v2988 = vshrl.u32 %v2987, 7
  %v2989 = vsub.s32 2, %v2988
  %v2990 = vrot.slane %v2977, %v2989
  %v2991 = vlaneseq
  %v2992 = vshrl.u32 %v2991, 7
  %v2993 = vsub.s32 3, %v2992
  %v2994 = vrot.slane %v2977, %v2993
  %v2999 = vmul.f32 %v2976, %v2982
  %v3000 = vmul.f32 %v2975, %v2986
  %v3001 = vmul.f32 %v2974, %v2990
  %v3002 = vmul.f32 %v2973, %v2994
  %v3003 = vpack.c.bf16 %v2999, %v2999
  %v3004 = vpack.c.bf16 %v3000, %v3000
  %v3005 = vpack.c.bf16 %v3001, %v3001
  %v3006 = vpack.c.bf16 %v3002, %v3002
  %v3011 = vunpack.c.l.b16 %v3003
  %v3012 = vunpack.c.l.b16 %v3004
  %v3013 = vunpack.c.l.b16 %v3005
  %v3014 = vunpack.c.l.b16 %v3006
  %v3015 = vpack.c.b16 %v3012, %v3011
  %v3016 = vpack.c.b16 %v3014, %v3013
  %3019 = vst [vmem:[#allocation4 + $0x30] sm:$0xff] %v3015
  %3020 = vst [vmem:[#allocation4 + $0x38] sm:$0xff] %v3016
  %v3021 = vpack.c.bf16 %v2793, %v2793
  %v3022 = vpack.c.bf16 %v2794, %v2794
  %v3023 = vpack.c.bf16 %v2795, %v2795
  %v3024 = vpack.c.bf16 %v2796, %v2796
  %v3029 = vunpack.c.l.b16 %v3021
  %v3030 = vunpack.c.l.b16 %v3022
  %v3031 = vunpack.c.l.b16 %v3023
  %v3032 = vunpack.c.l.b16 %v3024
  %v3033 = vpack.c.b16 %v3030, %v3029
  %v3034 = vpack.c.b16 %v3032, %v3031
  %3037 = vst [vmem:[#allocation4 + $0x40] sm:$0xff] %v3033
  %3038 = vst [vmem:[#allocation4 + $0x48] sm:$0xff] %v3034
  %3039 = vrot.lane.b32.xlu0 %v2793, 127
  %v3040 = vpop.permute.xlu0 %3039
  %3041 = vrot.lane.b32.xlu0 %v2794, 127
  %v3042 = vpop.permute.xlu0 %3041
  %3043 = vrot.lane.b32.xlu0 %v2795, 127
  %v3044 = vpop.permute.xlu0 %3043
  %3045 = vrot.lane.b32.xlu0 %v2796, 127
  %v3046 = vpop.permute.xlu0 %3045
  %v3047 = vsel %vm316, %v3044, %v3046
  %v3048 = vsel %vm316, %v3042, %v3044
  %v3049 = vsel %vm316, %v3040, %v3042
  %v3050 = vsel %vm316, %v3046, %v3040
  %v3051 = vld [vmem:[%s321] ss:$8 sm:$0xf]
  %v3053 = vlaneseq
  %v3054 = vshrl.u32 %v3053, 7
  %v3055 = vsub.s32 0, %v3054
  %v3056 = vrot.slane %v3051, %v3055
  %v3057 = vlaneseq
  %v3058 = vshrl.u32 %v3057, 7
  %v3059 = vsub.s32 1, %v3058
  %v3060 = vrot.slane %v3051, %v3059
  %v3061 = vlaneseq
  %v3062 = vshrl.u32 %v3061, 7
  %v3063 = vsub.s32 2, %v3062
  %v3064 = vrot.slane %v3051, %v3063
  %v3065 = vlaneseq
  %v3066 = vshrl.u32 %v3065, 7
  %v3067 = vsub.s32 3, %v3066
  %v3068 = vrot.slane %v3051, %v3067
  %v3073 = vmul.f32 %v3049, %v3056
  %v3074 = vmul.f32 %v3048, %v3060
  %v3075 = vmul.f32 %v3047, %v3064
  %v3076 = vmul.f32 %v3050, %v3068
  %v3077 = vpack.c.bf16 %v3073, %v3073
  %v3078 = vpack.c.bf16 %v3074, %v3074
  %v3079 = vpack.c.bf16 %v3075, %v3075
  %v3080 = vpack.c.bf16 %v3076, %v3076
  %v3085 = vunpack.c.l.b16 %v3077
  %v3086 = vunpack.c.l.b16 %v3078
  %v3087 = vunpack.c.l.b16 %v3079
  %v3088 = vunpack.c.l.b16 %v3080
  %v3089 = vpack.c.b16 %v3086, %v3085
  %v3090 = vpack.c.b16 %v3088, %v3087
  %3093 = vst [vmem:[#allocation4 + $0x50] sm:$0xff] %v3089
  %3094 = vst [vmem:[#allocation4 + $0x58] sm:$0xff] %v3090
  %3095 = vrot.lane.b32.xlu0 %v2793, 113
  %v3096 = vpop.permute.xlu0 %3095
  %3097 = vrot.lane.b32.xlu0 %v2794, 113
  %v3098 = vpop.permute.xlu0 %3097
  %3099 = vrot.lane.b32.xlu0 %v2795, 113
  %v3100 = vpop.permute.xlu0 %3099
  %3101 = vrot.lane.b32.xlu0 %v2796, 113
  %v3102 = vpop.permute.xlu0 %3101
  %v3103 = vsel %vm376, %v3100, %v3102
  %v3104 = vsel %vm376, %v3098, %v3100
  %v3105 = vsel %vm376, %v3096, %v3098
  %v3106 = vsel %vm376, %v3102, %v3096
  %v3107 = vld [vmem:[%s381] ss:$8 sm:$0xf]
  %v3109 = vlaneseq
  %v3110 = vshrl.u32 %v3109, 7
  %v3111 = vsub.s32 0, %v3110
  %v3112 = vrot.slane %v3107, %v3111
  %v3113 = vlaneseq
  %v3114 = vshrl.u32 %v3113, 7
  %v3115 = vsub.s32 1, %v3114
  %v3116 = vrot.slane %v3107, %v3115
  %v3117 = vlaneseq
  %v3118 = vshrl.u32 %v3117, 7
  %v3119 = vsub.s32 2, %v3118
  %v3120 = vrot.slane %v3107, %v3119
  %v3121 = vlaneseq
  %v3122 = vshrl.u32 %v3121, 7
  %v3123 = vsub.s32 3, %v3122
  %v3124 = vrot.slane %v3107, %v3123
  %v3129 = vmul.f32 %v3105, %v3112
  %v3130 = vmul.f32 %v3104, %v3116
  %v3131 = vmul.f32 %v3103, %v3120
  %v3132 = vmul.f32 %v3106, %v3124
  %v3133 = vpack.c.bf16 %v3129, %v3129
  %v3134 = vpack.c.bf16 %v3130, %v3130
  %v3135 = vpack.c.bf16 %v3131, %v3131
  %v3136 = vpack.c.bf16 %v3132, %v3132
  %v3141 = vunpack.c.l.b16 %v3133
  %v3142 = vunpack.c.l.b16 %v3134
  %v3143 = vunpack.c.l.b16 %v3135
  %v3144 = vunpack.c.l.b16 %v3136
  %v3145 = vpack.c.b16 %v3142, %v3141
  %v3146 = vpack.c.b16 %v3144, %v3143
  %3149 = vst [vmem:[#allocation4 + $0x60] sm:$0xff] %v3145
  %3150 = vst [vmem:[#allocation4 + $0x68] sm:$0xff] %v3146
  %3151 = vrot.lane.b32.xlu0 %v2793, 112
  %v3152 = vpop.permute.xlu0 %3151
  %3153 = vrot.lane.b32.xlu0 %v2794, 112
  %v3154 = vpop.permute.xlu0 %3153
  %3155 = vrot.lane.b32.xlu0 %v2795, 112
  %v3156 = vpop.permute.xlu0 %3155
  %3157 = vrot.lane.b32.xlu0 %v2796, 112
  %v3158 = vpop.permute.xlu0 %3157
  %v3159 = vsel %vm434, %v3156, %v3158
  %v3160 = vsel %vm434, %v3154, %v3156
  %v3161 = vsel %vm434, %v3152, %v3154
  %v3162 = vsel %vm434, %v3158, %v3152
  %v3163 = vld [vmem:[%s439] ss:$8 sm:$0xf]
  %v3165 = vlaneseq
  %v3166 = vshrl.u32 %v3165, 7
  %v3167 = vsub.s32 0, %v3166
  %v3168 = vrot.slane %v3163, %v3167
  %v3169 = vlaneseq
  %v3170 = vshrl.u32 %v3169, 7
  %v3171 = vsub.s32 1, %v3170
  %v3172 = vrot.slane %v3163, %v3171
  %v3173 = vlaneseq
  %v3174 = vshrl.u32 %v3173, 7
  %v3175 = vsub.s32 2, %v3174
  %v3176 = vrot.slane %v3163, %v3175
  %v3177 = vlaneseq
  %v3178 = vshrl.u32 %v3177, 7
  %v3179 = vsub.s32 3, %v3178
  %v3180 = vrot.slane %v3163, %v3179
  %v3185 = vmul.f32 %v3161, %v3168
  %v3186 = vmul.f32 %v3160, %v3172
  %v3187 = vmul.f32 %v3159, %v3176
  %v3188 = vmul.f32 %v3162, %v3180
  %v3189 = vpack.c.bf16 %v3185, %v3185
  %v3190 = vpack.c.bf16 %v3186, %v3186
  %v3191 = vpack.c.bf16 %v3187, %v3187
  %v3192 = vpack.c.bf16 %v3188, %v3188
  %v3197 = vunpack.c.l.b16 %v3189
  %v3198 = vunpack.c.l.b16 %v3190
  %v3199 = vunpack.c.l.b16 %v3191
  %v3200 = vunpack.c.l.b16 %v3192
  %v3201 = vpack.c.b16 %v3198, %v3197
  %v3202 = vpack.c.b16 %v3200, %v3199
  %3205 = vst [vmem:[#allocation4 + $0x70] sm:$0xff] %v3201
  %3206 = vst [vmem:[#allocation4 + $0x78] sm:$0xff] %v3202
  %3207 = vrot.lane.b32.xlu0 %v2793, 111
  %v3208 = vpop.permute.xlu0 %3207
  %3209 = vrot.lane.b32.xlu0 %v2794, 111
  %v3210 = vpop.permute.xlu0 %3209
  %3211 = vrot.lane.b32.xlu0 %v2795, 111
  %v3212 = vpop.permute.xlu0 %3211
  %3213 = vrot.lane.b32.xlu0 %v2796, 111
  %v3214 = vpop.permute.xlu0 %3213
  %v3215 = vsel %vm494, %v3212, %v3214
  %v3216 = vsel %vm494, %v3210, %v3212
  %v3217 = vsel %vm494, %v3208, %v3210
  %v3218 = vsel %vm494, %v3214, %v3208
  %v3219 = vld [vmem:[%s499] ss:$8 sm:$0xf]
  %v3221 = vlaneseq
  %v3222 = vshrl.u32 %v3221, 7
  %v3223 = vsub.s32 0, %v3222
  %v3224 = vrot.slane %v3219, %v3223
  %v3225 = vlaneseq
  %v3226 = vshrl.u32 %v3225, 7
  %v3227 = vsub.s32 1, %v3226
  %v3228 = vrot.slane %v3219, %v3227
  %v3229 = vlaneseq
  %v3230 = vshrl.u32 %v3229, 7
  %v3231 = vsub.s32 2, %v3230
  %v3232 = vrot.slane %v3219, %v3231
  %v3233 = vlaneseq
  %v3234 = vshrl.u32 %v3233, 7
  %v3235 = vsub.s32 3, %v3234
  %v3236 = vrot.slane %v3219, %v3235
  %v3241 = vmul.f32 %v3217, %v3224
  %v3242 = vmul.f32 %v3216, %v3228
  %v3243 = vmul.f32 %v3215, %v3232
  %v3244 = vmul.f32 %v3218, %v3236
  %v3245 = vpack.c.bf16 %v3241, %v3241
  %v3246 = vpack.c.bf16 %v3242, %v3242
  %v3247 = vpack.c.bf16 %v3243, %v3243
  %v3248 = vpack.c.bf16 %v3244, %v3244
  %v3253 = vunpack.c.l.b16 %v3245
  %v3254 = vunpack.c.l.b16 %v3246
  %v3255 = vunpack.c.l.b16 %v3247
  %v3256 = vunpack.c.l.b16 %v3248
  %v3257 = vpack.c.b16 %v3254, %v3253
  %v3258 = vpack.c.b16 %v3256, %v3255
  %3261 = vst [vmem:[#allocation4 + $0x80] sm:$0xff] %v3257
  %3262 = vst [vmem:[#allocation4 + $0x88] sm:$0xff] %v3258
  %v3263 = vld [vmem:[%s10] sm:$0xf]
  %v3264 = vld [vmem:[#allocation4] sm:$0xff]
  %v3265 = vld [vmem:[#allocation4 + $0x8] sm:$0xff]
  %v3266 = vld [vmem:[#allocation4 + $0x10] sm:$0xff]
  %v3267 = vld [vmem:[#allocation4 + $0x18] sm:$0xff]
  %v3268 = vld [vmem:[#allocation4 + $0x20] sm:$0xff]
  %v3269 = vld [vmem:[#allocation4 + $0x28] sm:$0xff]
  %v3270 = vld [vmem:[#allocation4 + $0x30] sm:$0xff]
  %v3271 = vld [vmem:[#allocation4 + $0x38] sm:$0xff]
  %v3272 = vld [vmem:[#allocation4 + $0x40] sm:$0xff]
  %v3273 = vld [vmem:[#allocation4 + $0x48] sm:$0xff]
  %v3274 = vld [vmem:[#allocation4 + $0x50] sm:$0xff]
  %v3275 = vld [vmem:[#allocation4 + $0x58] sm:$0xff]
  %v3276 = vld [vmem:[#allocation4 + $0x60] sm:$0xff]
  %v3277 = vld [vmem:[#allocation4 + $0x68] sm:$0xff]
  %v3278 = vld [vmem:[#allocation4 + $0x70] sm:$0xff]
  %v3279 = vld [vmem:[#allocation4 + $0x78] sm:$0xff]
  %v3280 = vld [vmem:[#allocation4 + $0x80] sm:$0xff]
  %v3281 = vld [vmem:[#allocation4 + $0x88] sm:$0xff]
  %v3300 = vunpack.c.l.b16 %v3264
  %v3301 = vunpack.c.h.b16 %v3264
  %v3302 = vunpack.c.l.b16 %v3265
  %v3303 = vunpack.c.h.b16 %v3265
  %v3304 = vunpack.c.l.b16 %v3266
  %v3305 = vunpack.c.h.b16 %v3266
  %v3306 = vunpack.c.l.b16 %v3267
  %v3307 = vunpack.c.h.b16 %v3267
  %v3308 = vunpack.c.l.b16 %v3268
  %v3309 = vunpack.c.h.b16 %v3268
  %v3310 = vunpack.c.l.b16 %v3269
  %v3311 = vunpack.c.h.b16 %v3269
  %v3312 = vunpack.c.l.b16 %v3270
  %v3313 = vunpack.c.h.b16 %v3270
  %v3314 = vunpack.c.l.b16 %v3271
  %v3315 = vunpack.c.h.b16 %v3271
  %v3316 = vunpack.c.l.b16 %v3272
  %v3317 = vunpack.c.h.b16 %v3272
  %v3318 = vunpack.c.l.b16 %v3273
  %v3319 = vunpack.c.h.b16 %v3273
  %v3320 = vunpack.c.l.b16 %v3274
  %v3321 = vunpack.c.h.b16 %v3274
  %v3322 = vunpack.c.l.b16 %v3275
  %v3323 = vunpack.c.h.b16 %v3275
  %v3324 = vunpack.c.l.b16 %v3276
  %v3325 = vunpack.c.h.b16 %v3276
  %v3326 = vunpack.c.l.b16 %v3277
  %v3327 = vunpack.c.h.b16 %v3277
  %v3328 = vunpack.c.l.b16 %v3278
  %v3329 = vunpack.c.h.b16 %v3278
  %v3330 = vunpack.c.l.b16 %v3279
  %v3331 = vunpack.c.h.b16 %v3279
  %v3332 = vunpack.c.l.b16 %v3280
  %v3333 = vunpack.c.h.b16 %v3280
  %v3334 = vunpack.c.l.b16 %v3281
  %v3335 = vunpack.c.h.b16 %v3281
  %v3336 = vpack.c.b16 %v3304, %v3300
  %v3337 = vpack.c.b16 %v3305, %v3301
  %v3338 = vpack.c.b16 %v3306, %v3302
  %v3339 = vpack.c.b16 %v3307, %v3303
  %v3340 = vpack.c.b16 %v3312, %v3308
  %v3341 = vpack.c.b16 %v3313, %v3309
  %v3342 = vpack.c.b16 %v3314, %v3310
  %v3343 = vpack.c.b16 %v3315, %v3311
  %v3344 = vpack.c.b16 %v3320, %v3316
  %v3345 = vpack.c.b16 %v3321, %v3317
  %v3346 = vpack.c.b16 %v3322, %v3318
  %v3347 = vpack.c.b16 %v3323, %v3319
  %v3348 = vpack.c.b16 %v3328, %v3324
  %v3349 = vpack.c.b16 %v3329, %v3325
  %v3350 = vpack.c.b16 %v3330, %v3326
  %v3351 = vpack.c.b16 %v3331, %v3327
  %v3352 = vpack.c.b16 %v3332, %v3332
  %v3353 = vpack.c.b16 %v3333, %v3333
  %v3354 = vpack.c.b16 %v3334, %v3334
  %v3355 = vpack.c.b16 %v3335, %v3335
  %v3373 = vsel %vm2002, %v3263, 0
  %v3376 = vsel %vm2006, %v3352, 0
  %v3379 = vsel %vm2006, %v3353, 0
  %v3382 = vsel %vm2006, %v3354, 0
  %v3385 = vsel %vm2006, %v3355, 0
  %3387 = vmatprep.subr.bf16.mxu0 %v3337
  %3388 = vmatpush1.bf16.msra.mxu0 %v3336
  %3389 = vmatprep.subr.bf16.mxu0 %v3341
  %3390 = vmatpush1.bf16.msra.mxu0 %v3340
  %3391 = vmatprep.subr.bf16.mxu0 %v3345
  %3392 = vmatpush1.bf16.msra.mxu0 %v3344
  %3393 = vmatprep.subr.bf16.mxu0 %v3349
  %3394 = vmatpush1.bf16.msra.mxu0 %v3348
  %3395 = vmatprep.subr.bf16.mxu0 %v3379
  %3396 = vmatpush1.bf16.msra.mxu0 %v3376
  %3397 = vmatprep.subr.bf16.mxu0 0
  %3398 = vmatpush1.bf16.msra.mxu0 0
  %3399 = vmatprep.subr.bf16.mxu0 0
  %3400 = vmatpush1.bf16.msra.mxu0 0
  %3401 = vmatprep.subr.bf16.mxu0 0
  %3402 = vmatpush1.bf16.msra.mxu0 0
  %3403 = vmatprep.subr.bf16.mxu0 0
  %3404 = vmatpush1.bf16.msra.mxu0 0
  %3405 = vmatprep.subr.bf16.mxu0 0
  %3406 = vmatpush1.bf16.msra.mxu0 0
  %3407 = vmatprep.subr.bf16.mxu0 0
  %3408 = vmatpush1.bf16.msra.mxu0 0
  %3409 = vmatprep.subr.bf16.mxu0 0
  %3410 = vmatpush1.bf16.msra.mxu0 0
  %3411 = vmatprep.subr.bf16.mxu0 0
  %3412 = vmatpush1.bf16.msra.mxu0 0
  %3413 = vmatprep.subr.bf16.mxu0 0
  %3414 = vmatpush1.bf16.msra.mxu0 0
  %3415 = vmatprep.subr.bf16.mxu0 0
  %3416 = vmatpush1.bf16.msra.mxu0 0
  %3417 = vmatprep.subr.bf16.mxu0 0
  %3418 = vmatpush1.bf16.msra.mxu0 0
  %3419 = vmatprep.mubr.bf16.mxu0 0
  %3420 = vmatmul.mubr.bf16.gmra.mrb[0].mxu0 %v3373
  %v3421 = vpop.f32.mrb[0].mxu0
  %v3422 = vadd.f32 0.0, %v3421
  %v3423 = vpop.f32.mrb[0].mxu0
  %v3424 = vadd.f32 0.0, %v3423
  %v3425 = vpop.f32.mrb[0].mxu0
  %v3426 = vpop.f32.mrb[0].mxu0
  %3427 = vdwg.mxu0
  %3428 = vmatprep.subr.bf16.mxu0 %v3339
  %3429 = vmatpush1.bf16.msra.mxu0 %v3338
  %3430 = vmatprep.subr.bf16.mxu0 %v3343
  %3431 = vmatpush1.bf16.msra.mxu0 %v3342
  %3432 = vmatprep.subr.bf16.mxu0 %v3347
  %3433 = vmatpush1.bf16.msra.mxu0 %v3346
  %3434 = vmatprep.subr.bf16.mxu0 %v3351
  %3435 = vmatpush1.bf16.msra.mxu0 %v3350
  %3436 = vmatprep.subr.bf16.mxu0 %v3385
  %3437 = vmatpush1.bf16.msra.mxu0 %v3382
  %3438 = vmatprep.subr.bf16.mxu0 0
  %3439 = vmatpush1.bf16.msra.mxu0 0
  %3440 = vmatprep.subr.bf16.mxu0 0
  %3441 = vmatpush1.bf16.msra.mxu0 0
  %3442 = vmatprep.subr.bf16.mxu0 0
  %3443 = vmatpush1.bf16.msra.mxu0 0
  %3444 = vmatprep.subr.bf16.mxu0 0
  %3445 = vmatpush1.bf16.msra.mxu0 0
  %3446 = vmatprep.subr.bf16.mxu0 0
  %3447 = vmatpush1.bf16.msra.mxu0 0
  %3448 = vmatprep.subr.bf16.mxu0 0
  %3449 = vmatpush1.bf16.msra.mxu0 0
  %3450 = vmatprep.subr.bf16.mxu0 0
  %3451 = vmatpush1.bf16.msra.mxu0 0
  %3452 = vmatprep.subr.bf16.mxu0 0
  %3453 = vmatpush1.bf16.msra.mxu0 0
  %3454 = vmatprep.subr.bf16.mxu0 0
  %3455 = vmatpush1.bf16.msra.mxu0 0
  %3456 = vmatprep.subr.bf16.mxu0 0
  %3457 = vmatpush1.bf16.msra.mxu0 0
  %3458 = vmatprep.subr.bf16.mxu0 0
  %3459 = vmatpush1.bf16.msra.mxu0 0
  %3460 = vmatprep.mubr.bf16.mxu0 0
  %3461 = vmatmul.mubr.bf16.gmra.mrb[0].mxu0 %v3373
  %v3462 = vpop.f32.mrb[0].mxu0
  %v3463 = vadd.f32 0.0, %v3462
  %v3464 = vpop.f32.mrb[0].mxu0
  %v3465 = vadd.f32 0.0, %v3464
  %v3466 = vpop.f32.mrb[0].mxu0
  %v3467 = vpop.f32.mrb[0].mxu0
  %3468 = vdwg.mxu0
  %3469 = vrot.lane.b32.xlu0 %v2785, 17
  %v3470 = vpop.permute.xlu0 %3469
  %3471 = vrot.lane.b32.xlu0 %v2789, 17
  %v3472 = vpop.permute.xlu0 %3471
  %3473 = vrot.lane.b32.xlu0 %v2786, 17
  %v3474 = vpop.permute.xlu0 %3473
  %3475 = vrot.lane.b32.xlu0 %v2790, 17
  %v3476 = vpop.permute.xlu0 %3475
  %3477 = vrot.lane.b32.xlu0 %v2787, 17
  %v3478 = vpop.permute.xlu0 %3477
  %3479 = vrot.lane.b32.xlu0 %v2791, 17
  %v3480 = vpop.permute.xlu0 %3479
  %3481 = vrot.lane.b32.xlu0 %v2788, 17
  %v3482 = vpop.permute.xlu0 %3481
  %3483 = vrot.lane.b32.xlu0 %v2792, 17
  %v3484 = vpop.permute.xlu0 %3483
  %v3485 = vsel %vm63, %v3478, %v3482
  %v3486 = vsel %vm63, %v3480, %v3484
  %v3487 = vsel %vm63, %v3474, %v3478
  %v3488 = vsel %vm63, %v3476, %v3480
  %v3489 = vsel %vm63, %v3470, %v3474
  %v3490 = vsel %vm63, %v3472, %v3476
  %v3491 = vsel %vm63, %v3482, %v3470
  %v3492 = vsel %vm63, %v3484, %v3472
  %v3493 = vld [vmem:[%s1] ss:$8 sm:$0xf]
  %v3495 = vlaneseq
  %v3496 = vshrl.u32 %v3495, 7
  %v3497 = vsub.s32 0, %v3496
  %v3498 = vrot.slane %v3493, %v3497
  %v3499 = vlaneseq
  %v3500 = vshrl.u32 %v3499, 7
  %v3501 = vsub.s32 1, %v3500
  %v3502 = vrot.slane %v3493, %v3501
  %v3503 = vlaneseq
  %v3504 = vshrl.u32 %v3503, 7
  %v3505 = vsub.s32 2, %v3504
  %v3506 = vrot.slane %v3493, %v3505
  %v3507 = vlaneseq
  %v3508 = vshrl.u32 %v3507, 7
  %v3509 = vsub.s32 3, %v3508
  %v3510 = vrot.slane %v3493, %v3509
  %v3515 = vmul.f32 %v3491, %v3498
  %v3516 = vmul.f32 %v3489, %v3502
  %v3517 = vmul.f32 %v3487, %v3506
  %v3518 = vmul.f32 %v3485, %v3510
  %v3519 = vmul.f32 %v3492, %v3498
  %v3520 = vmul.f32 %v3490, %v3502
  %v3521 = vmul.f32 %v3488, %v3506
  %v3522 = vmul.f32 %v3486, %v3510
  %v3523 = vpack.c.bf16 %v3519, %v3515
  %v3524 = vpack.c.bf16 %v3520, %v3516
  %v3525 = vpack.c.bf16 %v3521, %v3517
  %v3526 = vpack.c.bf16 %v3522, %v3518
  %3527 = vst [vmem:[#allocation3] sm:$0xff] %v3523
  %3528 = vst [vmem:[#allocation3 + $0x8] sm:$0xff] %v3524
  %3529 = vst [vmem:[#allocation3 + $0x10] sm:$0xff] %v3525
  %3530 = vst [vmem:[#allocation3 + $0x18] sm:$0xff] %v3526
  %3531 = vrot.lane.b32.xlu0 %v2785, 16
  %v3532 = vpop.permute.xlu0 %3531
  %3533 = vrot.lane.b32.xlu0 %v2789, 16
  %v3534 = vpop.permute.xlu0 %3533
  %3535 = vrot.lane.b32.xlu0 %v2786, 16
  %v3536 = vpop.permute.xlu0 %3535
  %3537 = vrot.lane.b32.xlu0 %v2790, 16
  %v3538 = vpop.permute.xlu0 %3537
  %3539 = vrot.lane.b32.xlu0 %v2787, 16
  %v3540 = vpop.permute.xlu0 %3539
  %3541 = vrot.lane.b32.xlu0 %v2791, 16
  %v3542 = vpop.permute.xlu0 %3541
  %3543 = vrot.lane.b32.xlu0 %v2788, 16
  %v3544 = vpop.permute.xlu0 %3543
  %3545 = vrot.lane.b32.xlu0 %v2792, 16
  %v3546 = vpop.permute.xlu0 %3545
  %v3547 = vsel %vm120, %v3540, %v3544
  %v3548 = vsel %vm120, %v3542, %v3546
  %v3549 = vsel %vm120, %v3536, %v3540
  %v3550 = vsel %vm120, %v3538, %v3542
  %v3551 = vsel %vm120, %v3532, %v3536
  %v3552 = vsel %vm120, %v3534, %v3538
  %v3553 = vsel %vm120, %v3544, %v3532
  %v3554 = vsel %vm120, %v3546, %v3534
  %v3555 = vld [vmem:[%s125] ss:$8 sm:$0xf]
  %v3557 = vlaneseq
  %v3558 = vshrl.u32 %v3557, 7
  %v3559 = vsub.s32 0, %v3558
  %v3560 = vrot.slane %v3555, %v3559
  %v3561 = vlaneseq
  %v3562 = vshrl.u32 %v3561, 7
  %v3563 = vsub.s32 1, %v3562
  %v3564 = vrot.slane %v3555, %v3563
  %v3565 = vlaneseq
  %v3566 = vshrl.u32 %v3565, 7
  %v3567 = vsub.s32 2, %v3566
  %v3568 = vrot.slane %v3555, %v3567
  %v3569 = vlaneseq
  %v3570 = vshrl.u32 %v3569, 7
  %v3571 = vsub.s32 3, %v3570
  %v3572 = vrot.slane %v3555, %v3571
  %v3577 = vmul.f32 %v3553, %v3560
  %v3578 = vmul.f32 %v3551, %v3564
  %v3579 = vmul.f32 %v3549, %v3568
  %v3580 = vmul.f32 %v3547, %v3572
  %v3581 = vmul.f32 %v3554, %v3560
  %v3582 = vmul.f32 %v3552, %v3564
  %v3583 = vmul.f32 %v3550, %v3568
  %v3584 = vmul.f32 %v3548, %v3572
  %v3585 = vpack.c.bf16 %v3581, %v3577
  %v3586 = vpack.c.bf16 %v3582, %v3578
  %v3587 = vpack.c.bf16 %v3583, %v3579
  %v3588 = vpack.c.bf16 %v3584, %v3580
  %3589 = vst [vmem:[#allocation3 + $0x20] sm:$0xff] %v3585
  %3590 = vst [vmem:[#allocation3 + $0x28] sm:$0xff] %v3586
  %3591 = vst [vmem:[#allocation3 + $0x30] sm:$0xff] %v3587
  %3592 = vst [vmem:[#allocation3 + $0x38] sm:$0xff] %v3588
  %3593 = vrot.lane.b32.xlu0 %v2785, 15
  %v3594 = vpop.permute.xlu0 %3593
  %3595 = vrot.lane.b32.xlu0 %v2789, 15
  %v3596 = vpop.permute.xlu0 %3595
  %3597 = vrot.lane.b32.xlu0 %v2786, 15
  %v3598 = vpop.permute.xlu0 %3597
  %3599 = vrot.lane.b32.xlu0 %v2790, 15
  %v3600 = vpop.permute.xlu0 %3599
  %3601 = vrot.lane.b32.xlu0 %v2787, 15
  %v3602 = vpop.permute.xlu0 %3601
  %3603 = vrot.lane.b32.xlu0 %v2791, 15
  %v3604 = vpop.permute.xlu0 %3603
  %3605 = vrot.lane.b32.xlu0 %v2788, 15
  %v3606 = vpop.permute.xlu0 %3605
  %3607 = vrot.lane.b32.xlu0 %v2792, 15
  %v3608 = vpop.permute.xlu0 %3607
  %v3609 = vsel %vm180, %v3602, %v3606
  %v3610 = vsel %vm180, %v3604, %v3608
  %v3611 = vsel %vm180, %v3598, %v3602
  %v3612 = vsel %vm180, %v3600, %v3604
  %v3613 = vsel %vm180, %v3594, %v3598
  %v3614 = vsel %vm180, %v3596, %v3600
  %v3615 = vsel %vm180, %v3606, %v3594
  %v3616 = vsel %vm180, %v3608, %v3596
  %v3617 = vld [vmem:[%s185] ss:$8 sm:$0xf]
  %v3619 = vlaneseq
  %v3620 = vshrl.u32 %v3619, 7
  %v3621 = vsub.s32 0, %v3620
  %v3622 = vrot.slane %v3617, %v3621
  %v3623 = vlaneseq
  %v3624 = vshrl.u32 %v3623, 7
  %v3625 = vsub.s32 1, %v3624
  %v3626 = vrot.slane %v3617, %v3625
  %v3627 = vlaneseq
  %v3628 = vshrl.u32 %v3627, 7
  %v3629 = vsub.s32 2, %v3628
  %v3630 = vrot.slane %v3617, %v3629
  %v3631 = vlaneseq
  %v3632 = vshrl.u32 %v3631, 7
  %v3633 = vsub.s32 3, %v3632
  %v3634 = vrot.slane %v3617, %v3633
  %v3639 = vmul.f32 %v3615, %v3622
  %v3640 = vmul.f32 %v3613, %v3626
  %v3641 = vmul.f32 %v3611, %v3630
  %v3642 = vmul.f32 %v3609, %v3634
  %v3643 = vmul.f32 %v3616, %v3622
  %v3644 = vmul.f32 %v3614, %v3626
  %v3645 = vmul.f32 %v3612, %v3630
  %v3646 = vmul.f32 %v3610, %v3634
  %v3647 = vpack.c.bf16 %v3643, %v3639
  %v3648 = vpack.c.bf16 %v3644, %v3640
  %v3649 = vpack.c.bf16 %v3645, %v3641
  %v3650 = vpack.c.bf16 %v3646, %v3642
  %3651 = vst [vmem:[#allocation3 + $0x40] sm:$0xff] %v3647
  %3652 = vst [vmem:[#allocation3 + $0x48] sm:$0xff] %v3648
  %3653 = vst [vmem:[#allocation3 + $0x50] sm:$0xff] %v3649
  %3654 = vst [vmem:[#allocation3 + $0x58] sm:$0xff] %v3650
  %3655 = vrot.lane.b32.xlu0 %v2785, 1
  %v3656 = vpop.permute.xlu0 %3655
  %3657 = vrot.lane.b32.xlu0 %v2789, 1
  %v3658 = vpop.permute.xlu0 %3657
  %3659 = vrot.lane.b32.xlu0 %v2786, 1
  %v3660 = vpop.permute.xlu0 %3659
  %3661 = vrot.lane.b32.xlu0 %v2790, 1
  %v3662 = vpop.permute.xlu0 %3661
  %3663 = vrot.lane.b32.xlu0 %v2787, 1
  %v3664 = vpop.permute.xlu0 %3663
  %3665 = vrot.lane.b32.xlu0 %v2791, 1
  %v3666 = vpop.permute.xlu0 %3665
  %3667 = vrot.lane.b32.xlu0 %v2788, 1
  %v3668 = vpop.permute.xlu0 %3667
  %3669 = vrot.lane.b32.xlu0 %v2792, 1
  %v3670 = vpop.permute.xlu0 %3669
  %v3671 = vsel %vm238, %v3664, %v3668
  %v3672 = vsel %vm238, %v3666, %v3670
  %v3673 = vsel %vm238, %v3660, %v3664
  %v3674 = vsel %vm238, %v3662, %v3666
  %v3675 = vsel %vm238, %v3656, %v3660
  %v3676 = vsel %vm238, %v3658, %v3662
  %v3677 = vsel %vm238, %v3668, %v3656
  %v3678 = vsel %vm238, %v3670, %v3658
  %v3679 = vld [vmem:[%s243] ss:$8 sm:$0xf]
  %v3681 = vlaneseq
  %v3682 = vshrl.u32 %v3681, 7
  %v3683 = vsub.s32 0, %v3682
  %v3684 = vrot.slane %v3679, %v3683
  %v3685 = vlaneseq
  %v3686 = vshrl.u32 %v3685, 7
  %v3687 = vsub.s32 1, %v3686
  %v3688 = vrot.slane %v3679, %v3687
  %v3689 = vlaneseq
  %v3690 = vshrl.u32 %v3689, 7
  %v3691 = vsub.s32 2, %v3690
  %v3692 = vrot.slane %v3679, %v3691
  %v3693 = vlaneseq
  %v3694 = vshrl.u32 %v3693, 7
  %v3695 = vsub.s32 3, %v3694
  %v3696 = vrot.slane %v3679, %v3695
  %v3701 = vmul.f32 %v3677, %v3684
  %v3702 = vmul.f32 %v3675, %v3688
  %v3703 = vmul.f32 %v3673, %v3692
  %v3704 = vmul.f32 %v3671, %v3696
  %v3705 = vmul.f32 %v3678, %v3684
  %v3706 = vmul.f32 %v3676, %v3688
  %v3707 = vmul.f32 %v3674, %v3692
  %v3708 = vmul.f32 %v3672, %v3696
  %v3709 = vpack.c.bf16 %v3705, %v3701
  %v3710 = vpack.c.bf16 %v3706, %v3702
  %v3711 = vpack.c.bf16 %v3707, %v3703
  %v3712 = vpack.c.bf16 %v3708, %v3704
  %3713 = vst [vmem:[#allocation3 + $0x60] sm:$0xff] %v3709
  %3714 = vst [vmem:[#allocation3 + $0x68] sm:$0xff] %v3710
  %3715 = vst [vmem:[#allocation3 + $0x70] sm:$0xff] %v3711
  %3716 = vst [vmem:[#allocation3 + $0x78] sm:$0xff] %v3712
  %v3717 = vpack.c.bf16 %v2789, %v2785
  %v3718 = vpack.c.bf16 %v2790, %v2786
  %v3719 = vpack.c.bf16 %v2791, %v2787
  %v3720 = vpack.c.bf16 %v2792, %v2788
  %3721 = vst [vmem:[#allocation3 + $0x80] sm:$0xff] %v3717
  %3722 = vst [vmem:[#allocation3 + $0x88] sm:$0xff] %v3718
  %3723 = vst [vmem:[#allocation3 + $0x90] sm:$0xff] %v3719
  %3724 = vst [vmem:[#allocation3 + $0x98] sm:$0xff] %v3720
  %3725 = vrot.lane.b32.xlu0 %v2785, 127
  %v3726 = vpop.permute.xlu0 %3725
  %3727 = vrot.lane.b32.xlu0 %v2789, 127
  %v3728 = vpop.permute.xlu0 %3727
  %3729 = vrot.lane.b32.xlu0 %v2786, 127
  %v3730 = vpop.permute.xlu0 %3729
  %3731 = vrot.lane.b32.xlu0 %v2790, 127
  %v3732 = vpop.permute.xlu0 %3731
  %3733 = vrot.lane.b32.xlu0 %v2787, 127
  %v3734 = vpop.permute.xlu0 %3733
  %3735 = vrot.lane.b32.xlu0 %v2791, 127
  %v3736 = vpop.permute.xlu0 %3735
  %3737 = vrot.lane.b32.xlu0 %v2788, 127
  %v3738 = vpop.permute.xlu0 %3737
  %3739 = vrot.lane.b32.xlu0 %v2792, 127
  %v3740 = vpop.permute.xlu0 %3739
  %v3741 = vsel %vm316, %v3734, %v3738
  %v3742 = vsel %vm316, %v3736, %v3740
  %v3743 = vsel %vm316, %v3730, %v3734
  %v3744 = vsel %vm316, %v3732, %v3736
  %v3745 = vsel %vm316, %v3726, %v3730
  %v3746 = vsel %vm316, %v3728, %v3732
  %v3747 = vsel %vm316, %v3738, %v3726
  %v3748 = vsel %vm316, %v3740, %v3728
  %v3749 = vld [vmem:[%s321] ss:$8 sm:$0xf]
  %v3751 = vlaneseq
  %v3752 = vshrl.u32 %v3751, 7
  %v3753 = vsub.s32 0, %v3752
  %v3754 = vrot.slane %v3749, %v3753
  %v3755 = vlaneseq
  %v3756 = vshrl.u32 %v3755, 7
  %v3757 = vsub.s32 1, %v3756
  %v3758 = vrot.slane %v3749, %v3757
  %v3759 = vlaneseq
  %v3760 = vshrl.u32 %v3759, 7
  %v3761 = vsub.s32 2, %v3760
  %v3762 = vrot.slane %v3749, %v3761
  %v3763 = vlaneseq
  %v3764 = vshrl.u32 %v3763, 7
  %v3765 = vsub.s32 3, %v3764
  %v3766 = vrot.slane %v3749, %v3765
  %v3771 = vmul.f32 %v3745, %v3754
  %v3772 = vmul.f32 %v3743, %v3758
  %v3773 = vmul.f32 %v3741, %v3762
  %v3774 = vmul.f32 %v3747, %v3766
  %v3775 = vmul.f32 %v3746, %v3754
  %v3776 = vmul.f32 %v3744, %v3758
  %v3777 = vmul.f32 %v3742, %v3762
  %v3778 = vmul.f32 %v3748, %v3766
  %v3779 = vpack.c.bf16 %v3775, %v3771
  %v3780 = vpack.c.bf16 %v3776, %v3772
  %v3781 = vpack.c.bf16 %v3777, %v3773
  %v3782 = vpack.c.bf16 %v3778, %v3774
  %3783 = vst [vmem:[#allocation3 + $0xa0] sm:$0xff] %v3779
  %3784 = vst [vmem:[#allocation3 + $0xa8] sm:$0xff] %v3780
  %3785 = vst [vmem:[#allocation3 + $0xb0] sm:$0xff] %v3781
  %3786 = vst [vmem:[#allocation3 + $0xb8] sm:$0xff] %v3782
  %3787 = vrot.lane.b32.xlu0 %v2785, 113
  %v3788 = vpop.permute.xlu0 %3787
  %3789 = vrot.lane.b32.xlu0 %v2789, 113
  %v3790 = vpop.permute.xlu0 %3789
  %3791 = vrot.lane.b32.xlu0 %v2786, 113
  %v3792 = vpop.permute.xlu0 %3791
  %3793 = vrot.lane.b32.xlu0 %v2790, 113
  %v3794 = vpop.permute.xlu0 %3793
  %3795 = vrot.lane.b32.xlu0 %v2787, 113
  %v3796 = vpop.permute.xlu0 %3795
  %3797 = vrot.lane.b32.xlu0 %v2791, 113
  %v3798 = vpop.permute.xlu0 %3797
  %3799 = vrot.lane.b32.xlu0 %v2788, 113
  %v3800 = vpop.permute.xlu0 %3799
  %3801 = vrot.lane.b32.xlu0 %v2792, 113
  %v3802 = vpop.permute.xlu0 %3801
  %v3803 = vsel %vm376, %v3796, %v3800
  %v3804 = vsel %vm376, %v3798, %v3802
  %v3805 = vsel %vm376, %v3792, %v3796
  %v3806 = vsel %vm376, %v3794, %v3798
  %v3807 = vsel %vm376, %v3788, %v3792
  %v3808 = vsel %vm376, %v3790, %v3794
  %v3809 = vsel %vm376, %v3800, %v3788
  %v3810 = vsel %vm376, %v3802, %v3790
  %v3811 = vld [vmem:[%s381] ss:$8 sm:$0xf]
  %v3813 = vlaneseq
  %v3814 = vshrl.u32 %v3813, 7
  %v3815 = vsub.s32 0, %v3814
  %v3816 = vrot.slane %v3811, %v3815
  %v3817 = vlaneseq
  %v3818 = vshrl.u32 %v3817, 7
  %v3819 = vsub.s32 1, %v3818
  %v3820 = vrot.slane %v3811, %v3819
  %v3821 = vlaneseq
  %v3822 = vshrl.u32 %v3821, 7
  %v3823 = vsub.s32 2, %v3822
  %v3824 = vrot.slane %v3811, %v3823
  %v3825 = vlaneseq
  %v3826 = vshrl.u32 %v3825, 7
  %v3827 = vsub.s32 3, %v3826
  %v3828 = vrot.slane %v3811, %v3827
  %v3833 = vmul.f32 %v3807, %v3816
  %v3834 = vmul.f32 %v3805, %v3820
  %v3835 = vmul.f32 %v3803, %v3824
  %v3836 = vmul.f32 %v3809, %v3828
  %v3837 = vmul.f32 %v3808, %v3816
  %v3838 = vmul.f32 %v3806, %v3820
  %v3839 = vmul.f32 %v3804, %v3824
  %v3840 = vmul.f32 %v3810, %v3828
  %v3841 = vpack.c.bf16 %v3837, %v3833
  %v3842 = vpack.c.bf16 %v3838, %v3834
  %v3843 = vpack.c.bf16 %v3839, %v3835
  %v3844 = vpack.c.bf16 %v3840, %v3836
  %3845 = vst [vmem:[#allocation3 + $0xc0] sm:$0xff] %v3841
  %3846 = vst [vmem:[#allocation3 + $0xc8] sm:$0xff] %v3842
  %3847 = vst [vmem:[#allocation3 + $0xd0] sm:$0xff] %v3843
  %3848 = vst [vmem:[#allocation3 + $0xd8] sm:$0xff] %v3844
  %3849 = vrot.lane.b32.xlu0 %v2785, 112
  %v3850 = vpop.permute.xlu0 %3849
  %3851 = vrot.lane.b32.xlu0 %v2789, 112
  %v3852 = vpop.permute.xlu0 %3851
  %3853 = vrot.lane.b32.xlu0 %v2786, 112
  %v3854 = vpop.permute.xlu0 %3853
  %3855 = vrot.lane.b32.xlu0 %v2790, 112
  %v3856 = vpop.permute.xlu0 %3855
  %3857 = vrot.lane.b32.xlu0 %v2787, 112
  %v3858 = vpop.permute.xlu0 %3857
  %3859 = vrot.lane.b32.xlu0 %v2791, 112
  %v3860 = vpop.permute.xlu0 %3859
  %3861 = vrot.lane.b32.xlu0 %v2788, 112
  %v3862 = vpop.permute.xlu0 %3861
  %3863 = vrot.lane.b32.xlu0 %v2792, 112
  %v3864 = vpop.permute.xlu0 %3863
  %v3865 = vsel %vm434, %v3858, %v3862
  %v3866 = vsel %vm434, %v3860, %v3864
  %v3867 = vsel %vm434, %v3854, %v3858
  %v3868 = vsel %vm434, %v3856, %v3860
  %v3869 = vsel %vm434, %v3850, %v3854
  %v3870 = vsel %vm434, %v3852, %v3856
  %v3871 = vsel %vm434, %v3862, %v3850
  %v3872 = vsel %vm434, %v3864, %v3852
  %v3873 = vld [vmem:[%s439] ss:$8 sm:$0xf]
  %v3875 = vlaneseq
  %v3876 = vshrl.u32 %v3875, 7
  %v3877 = vsub.s32 0, %v3876
  %v3878 = vrot.slane %v3873, %v3877
  %v3879 = vlaneseq
  %v3880 = vshrl.u32 %v3879, 7
  %v3881 = vsub.s32 1, %v3880
  %v3882 = vrot.slane %v3873, %v3881
  %v3883 = vlaneseq
  %v3884 = vshrl.u32 %v3883, 7
  %v3885 = vsub.s32 2, %v3884
  %v3886 = vrot.slane %v3873, %v3885
  %v3887 = vlaneseq
  %v3888 = vshrl.u32 %v3887, 7
  %v3889 = vsub.s32 3, %v3888
  %v3890 = vrot.slane %v3873, %v3889
  %v3895 = vmul.f32 %v3869, %v3878
  %v3896 = vmul.f32 %v3867, %v3882
  %v3897 = vmul.f32 %v3865, %v3886
  %v3898 = vmul.f32 %v3871, %v3890
  %v3899 = vmul.f32 %v3870, %v3878
  %v3900 = vmul.f32 %v3868, %v3882
  %v3901 = vmul.f32 %v3866, %v3886
  %v3902 = vmul.f32 %v3872, %v3890
  %v3903 = vpack.c.bf16 %v3899, %v3895
  %v3904 = vpack.c.bf16 %v3900, %v3896
  %v3905 = vpack.c.bf16 %v3901, %v3897
  %v3906 = vpack.c.bf16 %v3902, %v3898
  %3907 = vst [vmem:[#allocation3 + $0xe0] sm:$0xff] %v3903
  %3908 = vst [vmem:[#allocation3 + $0xe8] sm:$0xff] %v3904
  %3909 = vst [vmem:[#allocation3 + $0xf0] sm:$0xff] %v3905
  %3910 = vst [vmem:[#allocation3 + $0xf8] sm:$0xff] %v3906
  %3911 = vrot.lane.b32.xlu0 %v2785, 111
  %v3912 = vpop.permute.xlu0 %3911
  %3913 = vrot.lane.b32.xlu0 %v2789, 111
  %v3914 = vpop.permute.xlu0 %3913
  %3915 = vrot.lane.b32.xlu0 %v2786, 111
  %v3916 = vpop.permute.xlu0 %3915
  %3917 = vrot.lane.b32.xlu0 %v2790, 111
  %v3918 = vpop.permute.xlu0 %3917
  %3919 = vrot.lane.b32.xlu0 %v2787, 111
  %v3920 = vpop.permute.xlu0 %3919
  %3921 = vrot.lane.b32.xlu0 %v2791, 111
  %v3922 = vpop.permute.xlu0 %3921
  %3923 = vrot.lane.b32.xlu0 %v2788, 111
  %v3924 = vpop.permute.xlu0 %3923
  %3925 = vrot.lane.b32.xlu0 %v2792, 111
  %v3926 = vpop.permute.xlu0 %3925
  %v3927 = vsel %vm494, %v3920, %v3924
  %v3928 = vsel %vm494, %v3922, %v3926
  %v3929 = vsel %vm494, %v3916, %v3920
  %v3930 = vsel %vm494, %v3918, %v3922
  %v3931 = vsel %vm494, %v3912, %v3916
  %v3932 = vsel %vm494, %v3914, %v3918
  %v3933 = vsel %vm494, %v3924, %v3912
  %v3934 = vsel %vm494, %v3926, %v3914
  %v3935 = vld [vmem:[%s499] ss:$8 sm:$0xf]
  %v3937 = vlaneseq
  %v3938 = vshrl.u32 %v3937, 7
  %v3939 = vsub.s32 0, %v3938
  %v3940 = vrot.slane %v3935, %v3939
  %v3941 = vlaneseq
  %v3942 = vshrl.u32 %v3941, 7
  %v3943 = vsub.s32 1, %v3942
  %v3944 = vrot.slane %v3935, %v3943
  %v3945 = vlaneseq
  %v3946 = vshrl.u32 %v3945, 7
  %v3947 = vsub.s32 2, %v3946
  %v3948 = vrot.slane %v3935, %v3947
  %v3949 = vlaneseq
  %v3950 = vshrl.u32 %v3949, 7
  %v3951 = vsub.s32 3, %v3950
  %v3952 = vrot.slane %v3935, %v3951
  %v3957 = vmul.f32 %v3931, %v3940
  %v3958 = vmul.f32 %v3929, %v3944
  %v3959 = vmul.f32 %v3927, %v3948
  %v3960 = vmul.f32 %v3933, %v3952
  %v3961 = vmul.f32 %v3932, %v3940
  %v3962 = vmul.f32 %v3930, %v3944
  %v3963 = vmul.f32 %v3928, %v3948
  %v3964 = vmul.f32 %v3934, %v3952
  %v3965 = vpack.c.bf16 %v3961, %v3957
  %v3966 = vpack.c.bf16 %v3962, %v3958
  %v3967 = vpack.c.bf16 %v3963, %v3959
  %v3968 = vpack.c.bf16 %v3964, %v3960
  %3969 = vst [vmem:[#allocation3 + $0x100] sm:$0xff] %v3965
  %3970 = vst [vmem:[#allocation3 + $0x108] sm:$0xff] %v3966
  %3971 = vst [vmem:[#allocation3 + $0x110] sm:$0xff] %v3967
  %3972 = vst [vmem:[#allocation3 + $0x118] sm:$0xff] %v3968
  %v3973 = vld [vmem:[%s9] sm:$0xff]
  %v3974 = vld [vmem:[#allocation3] sm:$0xff]
  %v3975 = vld [vmem:[#allocation3 + $0x8] sm:$0xff]
  %v3976 = vld [vmem:[#allocation3 + $0x10] sm:$0xff]
  %v3977 = vld [vmem:[#allocation3 + $0x18] sm:$0xff]
  %v3978 = vld [vmem:[#allocation3 + $0x20] sm:$0xff]
  %v3979 = vld [vmem:[#allocation3 + $0x28] sm:$0xff]
  %v3980 = vld [vmem:[#allocation3 + $0x30] sm:$0xff]
  %v3981 = vld [vmem:[#allocation3 + $0x38] sm:$0xff]
  %v3982 = vld [vmem:[#allocation3 + $0x40] sm:$0xff]
  %v3983 = vld [vmem:[#allocation3 + $0x48] sm:$0xff]
  %v3984 = vld [vmem:[#allocation3 + $0x50] sm:$0xff]
  %v3985 = vld [vmem:[#allocation3 + $0x58] sm:$0xff]
  %v3986 = vld [vmem:[#allocation3 + $0x60] sm:$0xff]
  %v3987 = vld [vmem:[#allocation3 + $0x68] sm:$0xff]
  %v3988 = vld [vmem:[#allocation3 + $0x70] sm:$0xff]
  %v3989 = vld [vmem:[#allocation3 + $0x78] sm:$0xff]
  %v3990 = vld [vmem:[#allocation3 + $0x80] sm:$0xff]
  %v3991 = vld [vmem:[#allocation3 + $0x88] sm:$0xff]
  %v3992 = vld [vmem:[#allocation3 + $0x90] sm:$0xff]
  %v3993 = vld [vmem:[#allocation3 + $0x98] sm:$0xff]
  %v3994 = vld [vmem:[#allocation3 + $0xa0] sm:$0xff]
  %v3995 = vld [vmem:[#allocation3 + $0xa8] sm:$0xff]
  %v3996 = vld [vmem:[#allocation3 + $0xb0] sm:$0xff]
  %v3997 = vld [vmem:[#allocation3 + $0xb8] sm:$0xff]
  %v3998 = vld [vmem:[#allocation3 + $0xc0] sm:$0xff]
  %v3999 = vld [vmem:[#allocation3 + $0xc8] sm:$0xff]
  %v4000 = vld [vmem:[#allocation3 + $0xd0] sm:$0xff]
  %v4001 = vld [vmem:[#allocation3 + $0xd8] sm:$0xff]
  %v4002 = vld [vmem:[#allocation3 + $0xe0] sm:$0xff]
  %v4003 = vld [vmem:[#allocation3 + $0xe8] sm:$0xff]
  %v4004 = vld [vmem:[#allocation3 + $0xf0] sm:$0xff]
  %v4005 = vld [vmem:[#allocation3 + $0xf8] sm:$0xff]
  %v4006 = vld [vmem:[#allocation3 + $0x100] sm:$0xff]
  %v4007 = vld [vmem:[#allocation3 + $0x108] sm:$0xff]
  %v4008 = vld [vmem:[#allocation3 + $0x110] sm:$0xff]
  %v4009 = vld [vmem:[#allocation3 + $0x118] sm:$0xff]
  %v4011 = vunpack.c.l.b16 %v3973
  %v4012 = vunpack.c.h.b16 %v3973
  %v4013 = vpack.c.b16 %v4011, %v4011
  %v4014 = vpack.c.b16 %v4012, %v4012
  %v4017 = vsel %vm1310, %v4014, 0
  %4019 = vmatprep.subr.bf16.mxu0 %v3975
  %4020 = vmatpush1.bf16.msra.mxu0 %v3974
  %4021 = vmatprep.subr.bf16.mxu0 %v3979
  %4022 = vmatpush1.bf16.msra.mxu0 %v3978
  %4023 = vmatprep.subr.bf16.mxu0 %v3983
  %4024 = vmatpush1.bf16.msra.mxu0 %v3982
  %4025 = vmatprep.subr.bf16.mxu0 %v3987
  %4026 = vmatpush1.bf16.msra.mxu0 %v3986
  %4027 = vmatprep.subr.bf16.mxu0 %v3991
  %4028 = vmatpush1.bf16.msra.mxu0 %v3990
  %4029 = vmatprep.subr.bf16.mxu0 %v3995
  %4030 = vmatpush1.bf16.msra.mxu0 %v3994
  %4031 = vmatprep.subr.bf16.mxu0 %v3999
  %4032 = vmatpush1.bf16.msra.mxu0 %v3998
  %4033 = vmatprep.subr.bf16.mxu0 %v4003
  %4034 = vmatpush1.bf16.msra.mxu0 %v4002
  %4035 = vmatprep.subr.bf16.mxu0 %v4007
  %4036 = vmatpush1.bf16.msra.mxu0 %v4006
  %4037 = vmatprep.subr.bf16.mxu0 0
  %4038 = vmatpush1.bf16.msra.mxu0 0
  %4039 = vmatprep.subr.bf16.mxu0 0
  %4040 = vmatpush1.bf16.msra.mxu0 0
  %4041 = vmatprep.subr.bf16.mxu0 0
  %4042 = vmatpush1.bf16.msra.mxu0 0
  %4043 = vmatprep.subr.bf16.mxu0 0
  %4044 = vmatpush1.bf16.msra.mxu0 0
  %4045 = vmatprep.subr.bf16.mxu0 0
  %4046 = vmatpush1.bf16.msra.mxu0 0
  %4047 = vmatprep.subr.bf16.mxu0 0
  %4048 = vmatpush1.bf16.msra.mxu0 0
  %4049 = vmatprep.subr.bf16.mxu0 0
  %4050 = vmatpush1.bf16.msra.mxu0 0
  %4051 = vmatprep.mubr.bf16.mxu0 %v4017
  %4052 = vmatmul.mubr.bf16.gmra.mrb[0].mxu0 %v4013
  %v4053 = vpop.f32.mrb[0].mxu0
  %v4054 = vadd.f32 %v3422, %v4053
  %v4055 = vpop.f32.mrb[0].mxu0
  %v4056 = vadd.f32 %v3424, %v4055
  %v4057 = vpop.f32.mrb[0].mxu0
  %v4058 = vpop.f32.mrb[0].mxu0
  %4059 = vdwg.mxu0
  %4060 = vmatprep.subr.bf16.mxu0 %v3977
  %4061 = vmatpush1.bf16.msra.mxu0 %v3976
  %4062 = vmatprep.subr.bf16.mxu0 %v3981
  %4063 = vmatpush1.bf16.msra.mxu0 %v3980
  %4064 = vmatprep.subr.bf16.mxu0 %v3985
  %4065 = vmatpush1.bf16.msra.mxu0 %v3984
  %4066 = vmatprep.subr.bf16.mxu0 %v3989
  %4067 = vmatpush1.bf16.msra.mxu0 %v3988
  %4068 = vmatprep.subr.bf16.mxu0 %v3993
  %4069 = vmatpush1.bf16.msra.mxu0 %v3992
  %4070 = vmatprep.subr.bf16.mxu0 %v3997
  %4071 = vmatpush1.bf16.msra.mxu0 %v3996
  %4072 = vmatprep.subr.bf16.mxu0 %v4001
  %4073 = vmatpush1.bf16.msra.mxu0 %v4000
  %4074 = vmatprep.subr.bf16.mxu0 %v4005
  %4075 = vmatpush1.bf16.msra.mxu0 %v4004
  %4076 = vmatprep.subr.bf16.mxu0 %v4009
  %4077 = vmatpush1.bf16.msra.mxu0 %v4008
  %4078 = vmatprep.subr.bf16.mxu0 0
  %4079 = vmatpush1.bf16.msra.mxu0 0
  %4080 = vmatprep.subr.bf16.mxu0 0
  %4081 = vmatpush1.bf16.msra.mxu0 0
  %4082 = vmatprep.subr.bf16.mxu0 0
  %4083 = vmatpush1.bf16.msra.mxu0 0
  %4084 = vmatprep.subr.bf16.mxu0 0
  %4085 = vmatpush1.bf16.msra.mxu0 0
  %4086 = vmatprep.subr.bf16.mxu0 0
  %4087 = vmatpush1.bf16.msra.mxu0 0
  %4088 = vmatprep.subr.bf16.mxu0 0
  %4089 = vmatpush1.bf16.msra.mxu0 0
  %4090 = vmatprep.subr.bf16.mxu0 0
  %4091 = vmatpush1.bf16.msra.mxu0 0
  %4092 = vmatprep.mubr.bf16.mxu0 %v4017
  %4093 = vmatmul.mubr.bf16.gmra.mrb[0].mxu0 %v4013
  %v4094 = vpop.f32.mrb[0].mxu0
  %v4095 = vadd.f32 %v3463, %v4094
  %v4096 = vpop.f32.mrb[0].mxu0
  %v4097 = vadd.f32 %v3465, %v4096
  %v4098 = vpop.f32.mrb[0].mxu0
  %v4099 = vpop.f32.mrb[0].mxu0
  %4100 = vdwg.mxu0
  %v4101 = vld [vmem:[%s11] sm:$0xff]
  %4103 = vset.pattern.permute.xlu0 0
  %4104 = vperm.xlu0 %4103, %v4101
  %v4105 = vpop.permute.xlu0 %4104
  %v4107 = vadd.f32 %v4054, %v4105
  %v4108 = vadd.f32 %v4056, %v4105
  %v4109 = vadd.f32 %v4095, %v4105
  %v4110 = vadd.f32 %v4097, %v4105
  %4111 = vst [vmem:[%s12] sm:$0xff] %v1362
  %4112 = vst [vmem:[%s12 + $0x8] sm:$0xff] %v1364
  %4113 = vst [vmem:[%s12 + $0x10] sm:$0xff] %v1413
  %4114 = vst [vmem:[%s12 + $0x18] sm:$0xff] %v1415
  %4115 = vst [vmem:[%s13] sm:$0xff] %v2793
  %4116 = vst [vmem:[%s13 + $0x8] sm:$0xff] %v2794
  %4117 = vst [vmem:[%s13 + $0x10] sm:$0xff] %v2795
  %4118 = vst [vmem:[%s13 + $0x18] sm:$0xff] %v2796
  %4119 = vst [vmem:[%s14] sm:$0xff] %v4107
  %4120 = vst [vmem:[%s14 + $0x8] sm:$0xff] %v4108
  %4121 = vst [vmem:[%s14 + $0x10] sm:$0xff] %v4109
  %4122 = vst [vmem:[%s14 + $0x18] sm:$0xff] %v4110
  // Predicated region
  $region50: #{msrnet_forward.1} parent=0 // pred_check
    _
  $region51: #{msrnet_forward.1} parent=0 // pred_check_branch
    %4124 = sbr.rel (0) target = $region53
  $region52: #{msrnet_forward.1} parent=0 // pred_region
    _
  $region53: #{msrnet_forward.1} parent=0 // pred_fallthru
    _
  // Predicated region
  $region54: #{msrnet_forward.1} parent=0 // pred_check
    _
  $region55: #{msrnet_forward.1} parent=0 // pred_check_branch
    %4126 = sbr.rel (0) target = $region57
  $region56: #{msrnet_forward.1} parent=0 // pred_region
    _
  $region57: #{msrnet_forward.1} parent=0 // pred_fallthru
    _
  // Predicated region
  $region58: #{msrnet_forward.1} parent=0 // pred_check
    _
  $region59: #{msrnet_forward.1} parent=0 // pred_check_branch
    %4128 = sbr.rel (0) target = $region61
  $region60: #{msrnet_forward.1} parent=0 // pred_region
    _
  $region61: #{msrnet_forward.1} parent=0 // pred_fallthru
    _
  // Predicated region
  $region62: #{msrnet_forward.1} parent=0 // pred_check
    _
  $region63: #{msrnet_forward.1} parent=0 // pred_check_branch
    %4130 = sbr.rel (0) target = $region65
  $region64: #{msrnet_forward.1} parent=0 // pred_region
    _
  $region65: #{msrnet_forward.1} parent=0 // pred_fallthru
    _
  // Predicated region
  $region66: #{msrnet_forward.1} parent=0 // pred_check
    _
  $region67: #{msrnet_forward.1} parent=0 // pred_check_branch
    %4132 = sbr.rel (0) target = $region69
  $region68: #{msrnet_forward.1} parent=0 // pred_region
    _
  $region69: #{msrnet_forward.1} parent=0 // pred_fallthru
    _
  // Predicated region
  $region70: #{msrnet_forward.1} parent=0 // pred_check
    _
  $region71: #{msrnet_forward.1} parent=0 // pred_check_branch
    %4134 = sbr.rel (0) target = $region73
  $region72: #{msrnet_forward.1} parent=0 // pred_region
    _
  $region73: #{msrnet_forward.1} parent=0 // pred_fallthru
    _

</llo_original>
